<compile_context>
chip_gen: v6e
topology: v6e:2x2x1
jax: 0.10.0
libtpu: 0.0.40
codegen_flags: <defaults>
</compile_context>

<pallas_src>
import math
import functools

import jax
import jax.numpy as jnp
from jax.experimental import pallas as pl
from jax.experimental.pallas import tpu as pltpu

# ---------------- model hyper-params (small, consistent with the module) ----
VOCAB_SIZE = 64
EMBED_DIM = 32      # embedding_dim == hidden_dim (required for weight tying)
HIDDEN_DIM = 32
NUM_LAYERS = 2
BATCH = 2
SEQ = 8

# ---------------- TPU-native padded layout constants -------------------------
BATCH_PAD = 8                                     # one full f32 sublane tile
H_PAD = 128                                       # one full lane tile per gate
GATES_PAD = 4 * H_PAD                             # [ i | f | g | o ] blocks
VOCAB_PAD = ((VOCAB_SIZE + 127) // 128) * 128     # lane-dense one-hot / FC width


# ---------------- fused forward kernel ---------------------------------------
def _fused_lm_kernel(ids_ref, emb_fused_ref, w_ihL_ref, w_hh_ref, b_ref,
                     fc_wt_ref, fc_b_ref, h0_ref, c0_ref,
                     pred_ref, hT_ref, cT_ref, x_scr,
                     *, seq_len, batch_pad, hidden_pad):
    """Single-invocation fused forward (all tensors pre-padded to tile sizes).

    ids_ref:       (T*Bp, 1)        int32 token ids, time-major flattened
    emb_fused_ref: (Vp, 4*Hp)       tied_W @ W_ih0^T, gate-block padded (f32)
    w_ihL_ref:     (L-1, Hp, 4*Hp)  input-hidden weights for layers >= 1
    w_hh_ref:      (L, Hp, 4*Hp)    hidden-hidden weights (gate order i,f,g,o)
    b_ref:         (L, 1, 4*Hp)     combined b_ih + b_hh (gate-block padded)
    fc_wt_ref:     (Hp, Vp)         tied FC weight, transposed + padded
    fc_b_ref:      (1, Vp)          FC bias (padded)
    h0/c0:         (L, Bp, Hp)      initial state (padded)
    pred_ref:      (T*Bp, Vp)       logits (time-major flattened, padded)
    hT/cT:         (L, Bp, Hp)      final state (padded)
    x_scr:         (T*Bp, Hp)       VMEM scratch: per-layer output sequence
    """
    T, Bp, Hp = seq_len, batch_pad, hidden_pad
    N = T * Bp
    Vp = emb_fused_ref.shape[0]
    L = hT_ref.shape[0]

    # ---- one-hot token rows (lane-dense, exact f32 gather via MXU) ----------
    ids = ids_ref[...]                                              # (N, 1) i32
    onehot = (ids == jax.lax.broadcasted_iota(jnp.int32, (N, Vp), 1)
              ).astype(jnp.float32)                                 # (N, Vp)
    # nn.Dropout(embedding): identity in eval mode.

    # ---- stacked LSTM layers (static unroll over layers and time) -----------
    for layer in range(L):
        # Hoisted input projection for ALL timesteps: one MXU pass per layer.
        if layer == 0:
            # Embedding folded into the layer-0 projection (exact f32 gather).
            gx = (jnp.dot(onehot, emb_fused_ref[...],
                          preferred_element_type=jnp.float32)
                  + b_ref[0])                                       # (N, 4*Hp)
        else:
            # Inter-layer dropout: identity in eval mode.
            gx = (jnp.dot(x_scr[...], w_ihL_ref[layer - 1],
                          preferred_element_type=jnp.float32)
                  + b_ref[layer])                                   # (N, 4*Hp)

        w_hh_l = w_hh_ref[layer]                                    # (Hp, 4*Hp)
        h = h0_ref[layer]                                           # (Bp, Hp)
        c = c0_ref[layer]                                           # (Bp, Hp)

        for t in range(T):        # fully unrolled serial recurrence
            gates = gx[t * Bp:(t + 1) * Bp, :] + jnp.dot(
                h, w_hh_l, preferred_element_type=jnp.float32)      # (Bp, 4*Hp)
            # Gate blocks are lane-tile aligned: each slice is one (8,128) vreg.
            i_g = jax.nn.sigmoid(gates[:, 0 * Hp:1 * Hp])
            f_g = jax.nn.sigmoid(gates[:, 1 * Hp:2 * Hp])
            g_g = jnp.tanh(gates[:, 2 * Hp:3 * Hp])
            o_g = jax.nn.sigmoid(gates[:, 3 * Hp:4 * Hp])
            c = f_g * c + i_g * g_g
            h = o_g * jnp.tanh(c)
            # One aligned full-vreg store per step (bounds live ranges, no concat).
            x_scr[t * Bp:(t + 1) * Bp, :] = h

        # Final states written exactly once per layer.
        hT_ref[layer] = h
        cT_ref[layer] = c

    # ---- tied FC projection (pre-transposed, lane-padded -> dense stores) ---
    # nn.Dropout(output): identity in eval mode.
    pred_ref[...] = (jnp.dot(x_scr[...], fc_wt_ref[...],
                             preferred_element_type=jnp.float32)
                     + fc_b_ref[...])


# ---------------- full forward ------------------------------------------------
def lstm_lm_forward(src, hidden, params):
    """src: (B, T) int32; hidden = (h0, c0) each (num_layers, B, H)."""
    h0, c0 = hidden
    B, T = src.shape

    # Pad batch to a full sublane tile; time-major flatten so each timestep's
    # rows are one contiguous (8, ...) block inside the kernel.
    src_pad = jnp.zeros((BATCH_PAD, T), jnp.int32).at[:B, :].set(
        src.astype(jnp.int32))
    ids_tm = jnp.transpose(src_pad).reshape(T * BATCH_PAD, 1)

    h0_pad = jnp.zeros((NUM_LAYERS, BATCH_PAD, H_PAD), jnp.float32
                       ).at[:, :B, :HIDDEN_DIM].set(h0)
    c0_pad = jnp.zeros((NUM_LAYERS, BATCH_PAD, H_PAD), jnp.float32
                       ).at[:, :B, :HIDDEN_DIM].set(c0)

    kernel = functools.partial(_fused_lm_kernel, seq_len=T,
                               batch_pad=BATCH_PAD, hidden_pad=H_PAD)
    vmem = pl.BlockSpec(memory_space=pltpu.MemorySpace.VMEM)

    pred_pad, hn_pad, cn_pad = pl.pallas_call(
        kernel,
        out_shape=(
            jax.ShapeDtypeStruct((T * BATCH_PAD, VOCAB_PAD), jnp.float32),
            jax.ShapeDtypeStruct((NUM_LAYERS, BATCH_PAD, H_PAD), jnp.float32),
            jax.ShapeDtypeStruct((NUM_LAYERS, BATCH_PAD, H_PAD), jnp.float32),
        ),
        in_specs=[vmem] * 9,
        out_specs=(vmem, vmem, vmem),
        scratch_shapes=[pltpu.VMEM((T * BATCH_PAD, H_PAD), jnp.float32)],
    )(ids_tm, params["emb_fused_pad"], params["w_ihL_pad"], params["w_hh_pad"],
      params["b_pad"], params["fc_wt_pad"], params["fc_b_pad"], h0_pad, c0_pad)

    # (T*Bp, Vp) time-major -> (B, T, V); slice away batch / lane padding.
    pred = pred_pad.reshape(T, BATCH_PAD, VOCAB_PAD)[:, :B, :VOCAB_SIZE]
    prediction = jnp.transpose(pred, (1, 0, 2))
    h_n = hn_pad[:, :B, :HIDDEN_DIM]
    c_n = cn_pad[:, :B, :HIDDEN_DIM]
    return prediction, (h_n, c_n)


# ---------------- deterministic parameter init --------------------------------
def _pad_gate_cols(w):
    """(rows, 4*H) gate blocks [i,f,g,o] -> (rows, 4*H_PAD), each block zero-padded."""
    rows = w.shape[0]
    out = jnp.zeros((rows, GATES_PAD), jnp.float32)
    for g in range(4):
        out = out.at[:, g * H_PAD:g * H_PAD + HIDDEN_DIM].set(
            w[:, g * HIDDEN_DIM:(g + 1) * HIDDEN_DIM])
    return out


def _pad_rows(w, rows_pad):
    out = jnp.zeros((rows_pad, w.shape[1]), jnp.float32)
    return out.at[:w.shape[0], :].set(w)


def init_params(key):
    bound = 1.0 / math.sqrt(HIDDEN_DIM)
    keys = jax.random.split(key, 1 + 4 * NUM_LAYERS)

    # Tied embedding / FC weight: the PyTorch code ties then re-inits the shared
    # tensor with uniform(-1/sqrt(H), 1/sqrt(H)); fc bias is zeroed.
    tied_w = jax.random.uniform(keys[0], (VOCAB_SIZE, EMBED_DIM),
                                jnp.float32, -bound, bound)
    fc_b = jnp.zeros((VOCAB_SIZE,), jnp.float32)

    w_ih_t, w_hh_t, b = [], [], []
    for layer in range(NUM_LAYERS):
        in_dim = EMBED_DIM if layer == 0 else HIDDEN_DIM
        k0, k1, k2, k3 = keys[1 + 4 * layer: 5 + 4 * layer]
        w_ih = jax.random.uniform(k0, (4 * HIDDEN_DIM, in_dim),
                                  jnp.float32, -bound, bound)
        w_hh = jax.random.uniform(k1, (4 * HIDDEN_DIM, HIDDEN_DIM),
                                  jnp.float32, -bound, bound)
        b_ih = jax.random.uniform(k2, (4 * HIDDEN_DIM,), jnp.float32,
                                  -bound, bound)
        b_hh = jax.random.uniform(k3, (4 * HIDDEN_DIM,), jnp.float32,
                                  -bound, bound)
        w_ih_t.append(jnp.transpose(w_ih))                  # (in_dim, 4H)
        w_hh_t.append(jnp.transpose(w_hh))                  # (H, 4H)
        b.append((b_ih + b_hh).reshape(1, 4 * HIDDEN_DIM))  # (1, 4H)

    # Layer-0 input projection folded with the embedding (kept in f32 so the
    # in-kernel one-hot gather stays exact), gate-block + row padded.
    emb_fused = jnp.dot(tied_w, w_ih_t[0])                  # (V, 4H)
    emb_fused_pad = _pad_rows(_pad_gate_cols(emb_fused), VOCAB_PAD)

    # Input-hidden weights for layers >= 1, padded to (H_PAD, 4*H_PAD).
    w_ihL_pad = jnp.stack([_pad_rows(_pad_gate_cols(w_ih_t[l]), H_PAD)
                           for l in range(1, NUM_LAYERS)])  # (L-1, Hp, 4Hp)

    # Hidden-hidden weights / biases, gate-block padded (padded lanes stay 0).
    w_hh_pad = jnp.stack([_pad_rows(_pad_gate_cols(w_hh_t[l]), H_PAD)
                          for l in range(NUM_LAYERS)])      # (L, Hp, 4Hp)
    b_pad = jnp.stack([_pad_gate_cols(b[l])
                       for l in range(NUM_LAYERS)])         # (L, 1, 4Hp)

    # Tied FC weight transposed + padded (rows H:H_PAD and cols V:V_PAD are 0).
    fc_wt_pad = jnp.zeros((H_PAD, VOCAB_PAD), jnp.float32)
    fc_wt_pad = fc_wt_pad.at[:HIDDEN_DIM, :VOCAB_SIZE].set(jnp.transpose(tied_w))
    fc_b_pad = jnp.zeros((1, VOCAB_PAD), jnp.float32)
    fc_b_pad = fc_b_pad.at[0, :VOCAB_SIZE].set(fc_b)

    return {
        "emb_fused_pad": emb_fused_pad,       # (V_PAD, 4*H_PAD)
        "w_ihL_pad": w_ihL_pad,               # (L-1, H_PAD, 4*H_PAD)
        "w_hh_pad": w_hh_pad,                 # (L, H_PAD, 4*H_PAD)
        "b_pad": b_pad,                       # (L, 1, 4*H_PAD)
        "fc_wt_pad": fc_wt_pad,               # (H_PAD, VOCAB_PAD)
        "fc_b_pad": fc_b_pad,                 # (1, VOCAB_PAD)
    }


def init_hidden(batch_size):
    h = jnp.zeros((NUM_LAYERS, batch_size, HIDDEN_DIM), jnp.float32)
    c = jnp.zeros((NUM_LAYERS, batch_size, HIDDEN_DIM), jnp.float32)
    return h, c


if __name__ == "__main__":
    key = jax.random.PRNGKey(0)
    pkey, dkey = jax.random.split(key)
    params = init_params(pkey)

    src = jax.random.randint(dkey, (BATCH, SEQ), 0, VOCAB_SIZE, jnp.int32)
    hidden = init_hidden(BATCH)

    prediction, (h_n, c_n) = lstm_lm_forward(src, hidden, params)
    jax.block_until_ready((prediction, h_n, c_n))

    assert prediction.shape == (BATCH, SEQ, VOCAB_SIZE)
    assert h_n.shape == (NUM_LAYERS, BATCH, HIDDEN_DIM)
    assert c_n.shape == (NUM_LAYERS, BATCH, HIDDEN_DIM)
    assert bool(jnp.all(jnp.isfinite(prediction)))
    assert bool(jnp.all(jnp.isfinite(h_n))) and bool(jnp.all(jnp.isfinite(c_n)))
    print("KERNEL_OK")
</pallas_src>

<mosaic_0001>
module attributes {stable_mosaic.version = 11 : i64} {
  func.func @_fused_lm_kernel(%arg0: memref<64x1xi32, #tpu.memory_space<vmem>>, %arg1: memref<128x512xf32, #tpu.memory_space<vmem>>, %arg2: memref<1x128x512xf32, #tpu.memory_space<vmem>>, %arg3: memref<2x128x512xf32, #tpu.memory_space<vmem>>, %arg4: memref<2x1x512xf32, #tpu.memory_space<vmem>>, %arg5: memref<128x128xf32, #tpu.memory_space<vmem>>, %arg6: memref<1x128xf32, #tpu.memory_space<vmem>>, %arg7: memref<2x8x128xf32, #tpu.memory_space<vmem>>, %arg8: memref<2x8x128xf32, #tpu.memory_space<vmem>>, %arg9: memref<64x128xf32, #tpu.memory_space<vmem>>, %arg10: memref<2x8x128xf32, #tpu.memory_space<vmem>>, %arg11: memref<2x8x128xf32, #tpu.memory_space<vmem>>, %arg12: memref<64x128xf32, #tpu.memory_space<vmem>>) attributes {dimension_semantics = [], scalar_prefetch = 0 : i64, scratch_operands = 1 : i64, tpu.core_type = #tpu.core_type<tc>} {
    %c0 = arith.constant 0 : index
    %c0_0 = arith.constant 0 : index
    %0 = vector.load %arg0[%c0, %c0_0] : memref<64x1xi32, #tpu.memory_space<vmem>>, vector<64x1xi32>
    %1 = tpu.iota {dimensions = array<i32: 1>} : vector<64x128xi32>
    %2 = vector.broadcast %0 : vector<64x1xi32> to vector<64x128xi32>
    %3 = arith.cmpi eq, %2, %1 : vector<64x128xi32>
    %4 = arith.extui %3 : vector<64x128xi1> to vector<64x128xi32>
    %5 = arith.sitofp %4 : vector<64x128xi32> to vector<64x128xf32>
    %c0_1 = arith.constant 0 : index
    %c0_2 = arith.constant 0 : index
    %6 = vector.load %arg1[%c0_1, %c0_2] : memref<128x512xf32, #tpu.memory_space<vmem>>, vector<128x512xf32>
    %cst = arith.constant dense<0.000000e+00> : vector<64x512xf32>
    %7 = tpu.matmul %5, %6, %cst {dimension_numbers = #tpu.dot_dimension_numbers<[1], [0], [0], [1], [0, 0, 1, 1], [], []>} : vector<64x128xf32>, vector<128x512xf32>, vector<64x512xf32> -> vector<64x512xf32>
    %c0_3 = arith.constant 0 : index
    %c0_4 = arith.constant 0 : index
    %c0_5 = arith.constant 0 : index
    %8 = vector.load %arg4[%c0_3, %c0_4, %c0_5] : memref<2x1x512xf32, #tpu.memory_space<vmem>>, vector<1x1x512xf32>
    %9 = vector.shape_cast %8 : vector<1x1x512xf32> to vector<1x512xf32>
    %10 = vector.broadcast %9 : vector<1x512xf32> to vector<64x512xf32>
    %11 = arith.addf %7, %10 : vector<64x512xf32>
    %c0_6 = arith.constant 0 : index
    %c0_7 = arith.constant 0 : index
    %c0_8 = arith.constant 0 : index
    %12 = vector.load %arg3[%c0_6, %c0_7, %c0_8] : memref<2x128x512xf32, #tpu.memory_space<vmem>>, vector<1x128x512xf32>
    %13 = vector.shape_cast %12 : vector<1x128x512xf32> to vector<128x512xf32>
    %c0_9 = arith.constant 0 : index
    %c0_10 = arith.constant 0 : index
    %c0_11 = arith.constant 0 : index
    %14 = vector.load %arg7[%c0_9, %c0_10, %c0_11] : memref<2x8x128xf32, #tpu.memory_space<vmem>>, vector<1x8x128xf32>
    %15 = vector.shape_cast %14 : vector<1x8x128xf32> to vector<8x128xf32>
    %c0_12 = arith.constant 0 : index
    %c0_13 = arith.constant 0 : index
    %c0_14 = arith.constant 0 : index
    %16 = vector.load %arg8[%c0_12, %c0_13, %c0_14] : memref<2x8x128xf32, #tpu.memory_space<vmem>>, vector<1x8x128xf32>
    %17 = vector.shape_cast %16 : vector<1x8x128xf32> to vector<8x128xf32>
    %18 = vector.extract_strided_slice %11 {offsets = [0, 0], sizes = [8, 512], strides = [1, 1]} : vector<64x512xf32> to vector<8x512xf32>
    %cst_15 = arith.constant dense<0.000000e+00> : vector<8x512xf32>
    %19 = tpu.matmul %15, %13, %cst_15 {dimension_numbers = #tpu.dot_dimension_numbers<[1], [0], [0], [1], [0, 0, 1, 1], [], []>} : vector<8x128xf32>, vector<128x512xf32>, vector<8x512xf32> -> vector<8x512xf32>
    %20 = arith.addf %18, %19 : vector<8x512xf32>
    %21 = vector.extract_strided_slice %20 {offsets = [0, 0], sizes = [8, 128], strides = [1, 1]} : vector<8x512xf32> to vector<8x128xf32>
    %22 = arith.negf %21 : vector<8x128xf32>
    %23 = math.exp %22 : vector<8x128xf32>
    %cst_16 = arith.constant 1.000000e+00 : f32
    %24 = vector.broadcast %cst_16 : f32 to vector<8x128xf32>
    %25 = arith.addf %24, %23 : vector<8x128xf32>
    %26 = arith.divf %24, %25 : vector<8x128xf32>
    %27 = vector.extract_strided_slice %20 {offsets = [0, 128], sizes = [8, 128], strides = [1, 1]} : vector<8x512xf32> to vector<8x128xf32>
    %28 = arith.negf %27 : vector<8x128xf32>
    %29 = math.exp %28 : vector<8x128xf32>
    %cst_17 = arith.constant 1.000000e+00 : f32
    %30 = vector.broadcast %cst_17 : f32 to vector<8x128xf32>
    %31 = arith.addf %30, %29 : vector<8x128xf32>
    %32 = arith.divf %30, %31 : vector<8x128xf32>
    %33 = vector.extract_strided_slice %20 {offsets = [0, 256], sizes = [8, 128], strides = [1, 1]} : vector<8x512xf32> to vector<8x128xf32>
    %34 = math.tanh %33 : vector<8x128xf32>
    %35 = vector.extract_strided_slice %20 {offsets = [0, 384], sizes = [8, 128], strides = [1, 1]} : vector<8x512xf32> to vector<8x128xf32>
    %36 = arith.negf %35 : vector<8x128xf32>
    %37 = math.exp %36 : vector<8x128xf32>
    %cst_18 = arith.constant 1.000000e+00 : f32
    %38 = vector.broadcast %cst_18 : f32 to vector<8x128xf32>
    %39 = arith.addf %38, %37 : vector<8x128xf32>
    %40 = arith.divf %38, %39 : vector<8x128xf32>
    %41 = arith.mulf %32, %17 : vector<8x128xf32>
    %42 = arith.mulf %26, %34 : vector<8x128xf32>
    %43 = arith.addf %41, %42 : vector<8x128xf32>
    %44 = math.tanh %43 : vector<8x128xf32>
    %45 = arith.mulf %40, %44 : vector<8x128xf32>
    %c0_19 = arith.constant 0 : index
    %c0_20 = arith.constant 0 : index
    %46 = vector.load %arg12[%c0_19, %c0_20] : memref<64x128xf32, #tpu.memory_space<vmem>>, vector<8x128xf32>
    tpu.vector_store %arg12[%c0_19, %c0_20], %45 {strides = array<i32>} : memref<64x128xf32, #tpu.memory_space<vmem>>, vector<8x128xf32>,
    %47 = vector.extract_strided_slice %11 {offsets = [8, 0], sizes = [8, 512], strides = [1, 1]} : vector<64x512xf32> to vector<8x512xf32>
    %cst_21 = arith.constant dense<0.000000e+00> : vector<8x512xf32>
    %48 = tpu.matmul %45, %13, %cst_21 {dimension_numbers = #tpu.dot_dimension_numbers<[1], [0], [0], [1], [0, 0, 1, 1], [], []>} : vector<8x128xf32>, vector<128x512xf32>, vector<8x512xf32> -> vector<8x512xf32>
    %49 = arith.addf %47, %48 : vector<8x512xf32>
    %50 = vector.extract_strided_slice %49 {offsets = [0, 0], sizes = [8, 128], strides = [1, 1]} : vector<8x512xf32> to vector<8x128xf32>
    %51 = arith.negf %50 : vector<8x128xf32>
    %52 = math.exp %51 : vector<8x128xf32>
    %cst_22 = arith.constant 1.000000e+00 : f32
    %53 = vector.broadcast %cst_22 : f32 to vector<8x128xf32>
    %54 = arith.addf %53, %52 : vector<8x128xf32>
    %55 = arith.divf %53, %54 : vector<8x128xf32>
    %56 = vector.extract_strided_slice %49 {offsets = [0, 128], sizes = [8, 128], strides = [1, 1]} : vector<8x512xf32> to vector<8x128xf32>
    %57 = arith.negf %56 : vector<8x128xf32>
    %58 = math.exp %57 : vector<8x128xf32>
    %cst_23 = arith.constant 1.000000e+00 : f32
    %59 = vector.broadcast %cst_23 : f32 to vector<8x128xf32>
    %60 = arith.addf %59, %58 : vector<8x128xf32>
    %61 = arith.divf %59, %60 : vector<8x128xf32>
    %62 = vector.extract_strided_slice %49 {offsets = [0, 256], sizes = [8, 128], strides = [1, 1]} : vector<8x512xf32> to vector<8x128xf32>
    %63 = math.tanh %62 : vector<8x128xf32>
    %64 = vector.extract_strided_slice %49 {offsets = [0, 384], sizes = [8, 128], strides = [1, 1]} : vector<8x512xf32> to vector<8x128xf32>
    %65 = arith.negf %64 : vector<8x128xf32>
    %66 = math.exp %65 : vector<8x128xf32>
    %cst_24 = arith.constant 1.000000e+00 : f32
    %67 = vector.broadcast %cst_24 : f32 to vector<8x128xf32>
    %68 = arith.addf %67, %66 : vector<8x128xf32>
    %69 = arith.divf %67, %68 : vector<8x128xf32>
    %70 = arith.mulf %61, %43 : vector<8x128xf32>
    %71 = arith.mulf %55, %63 : vector<8x128xf32>
    %72 = arith.addf %70, %71 : vector<8x128xf32>
    %73 = math.tanh %72 : vector<8x128xf32>
    %74 = arith.mulf %69, %73 : vector<8x128xf32>
    %c8 = arith.constant 8 : index
    %c0_25 = arith.constant 0 : index
    %75 = vector.load %arg12[%c8, %c0_25] : memref<64x128xf32, #tpu.memory_space<vmem>>, vector<8x128xf32>
    tpu.vector_store %arg12[%c8, %c0_25], %74 {strides = array<i32>} : memref<64x128xf32, #tpu.memory_space<vmem>>, vector<8x128xf32>,
    %76 = vector.extract_strided_slice %11 {offsets = [16, 0], sizes = [8, 512], strides = [1, 1]} : vector<64x512xf32> to vector<8x512xf32>
    %cst_26 = arith.constant dense<0.000000e+00> : vector<8x512xf32>
    %77 = tpu.matmul %74, %13, %cst_26 {dimension_numbers = #tpu.dot_dimension_numbers<[1], [0], [0], [1], [0, 0, 1, 1], [], []>} : vector<8x128xf32>, vector<128x512xf32>, vector<8x512xf32> -> vector<8x512xf32>
    %78 = arith.addf %76, %77 : vector<8x512xf32>
    %79 = vector.extract_strided_slice %78 {offsets = [0, 0], sizes = [8, 128], strides = [1, 1]} : vector<8x512xf32> to vector<8x128xf32>
    %80 = arith.negf %79 : vector<8x128xf32>
    %81 = math.exp %80 : vector<8x128xf32>
    %cst_27 = arith.constant 1.000000e+00 : f32
    %82 = vector.broadcast %cst_27 : f32 to vector<8x128xf32>
    %83 = arith.addf %82, %81 : vector<8x128xf32>
    %84 = arith.divf %82, %83 : vector<8x128xf32>
    %85 = vector.extract_strided_slice %78 {offsets = [0, 128], sizes = [8, 128], strides = [1, 1]} : vector<8x512xf32> to vector<8x128xf32>
    %86 = arith.negf %85 : vector<8x128xf32>
    %87 = math.exp %86 : vector<8x128xf32>
    %cst_28 = arith.constant 1.000000e+00 : f32
    %88 = vector.broadcast %cst_28 : f32 to vector<8x128xf32>
    %89 = arith.addf %88, %87 : vector<8x128xf32>
    %90 = arith.divf %88, %89 : vector<8x128xf32>
    %91 = vector.extract_strided_slice %78 {offsets = [0, 256], sizes = [8, 128], strides = [1, 1]} : vector<8x512xf32> to vector<8x128xf32>
    %92 = math.tanh %91 : vector<8x128xf32>
    %93 = vector.extract_strided_slice %78 {offsets = [0, 384], sizes = [8, 128], strides = [1, 1]} : vector<8x512xf32> to vector<8x128xf32>
    %94 = arith.negf %93 : vector<8x128xf32>
    %95 = math.exp %94 : vector<8x128xf32>
    %cst_29 = arith.constant 1.000000e+00 : f32
    %96 = vector.broadcast %cst_29 : f32 to vector<8x128xf32>
    %97 = arith.addf %96, %95 : vector<8x128xf32>
    %98 = arith.divf %96, %97 : vector<8x128xf32>
    %99 = arith.mulf %90, %72 : vector<8x128xf32>
    %100 = arith.mulf %84, %92 : vector<8x128xf32>
    %101 = arith.addf %99, %100 : vector<8x128xf32>
    %102 = math.tanh %101 : vector<8x128xf32>
    %103 = arith.mulf %98, %102 : vector<8x128xf32>
    %c16 = arith.constant 16 : index
    %c0_30 = arith.constant 0 : index
    %104 = vector.load %arg12[%c16, %c0_30] : memref<64x128xf32, #tpu.memory_space<vmem>>, vector<8x128xf32>
    tpu.vector_store %arg12[%c16, %c0_30], %103 {strides = array<i32>} : memref<64x128xf32, #tpu.memory_space<vmem>>, vector<8x128xf32>,
    %105 = vector.extract_strided_slice %11 {offsets = [24, 0], sizes = [8, 512], strides = [1, 1]} : vector<64x512xf32> to vector<8x512xf32>
    %cst_31 = arith.constant dense<0.000000e+00> : vector<8x512xf32>
    %106 = tpu.matmul %103, %13, %cst_31 {dimension_numbers = #tpu.dot_dimension_numbers<[1], [0], [0], [1], [0, 0, 1, 1], [], []>} : vector<8x128xf32>, vector<128x512xf32>, vector<8x512xf32> -> vector<8x512xf32>
    %107 = arith.addf %105, %106 : vector<8x512xf32>
    %108 = vector.extract_strided_slice %107 {offsets = [0, 0], sizes = [8, 128], strides = [1, 1]} : vector<8x512xf32> to vector<8x128xf32>
    %109 = arith.negf %108 : vector<8x128xf32>
    %110 = math.exp %109 : vector<8x128xf32>
    %cst_32 = arith.constant 1.000000e+00 : f32
    %111 = vector.broadcast %cst_32 : f32 to vector<8x128xf32>
    %112 = arith.addf %111, %110 : vector<8x128xf32>
    %113 = arith.divf %111, %112 : vector<8x128xf32>
    %114 = vector.extract_strided_slice %107 {offsets = [0, 128], sizes = [8, 128], strides = [1, 1]} : vector<8x512xf32> to vector<8x128xf32>
    %115 = arith.negf %114 : vector<8x128xf32>
    %116 = math.exp %115 : vector<8x128xf32>
    %cst_33 = arith.constant 1.000000e+00 : f32
    %117 = vector.broadcast %cst_33 : f32 to vector<8x128xf32>
    %118 = arith.addf %117, %116 : vector<8x128xf32>
    %119 = arith.divf %117, %118 : vector<8x128xf32>
    %120 = vector.extract_strided_slice %107 {offsets = [0, 256], sizes = [8, 128], strides = [1, 1]} : vector<8x512xf32> to vector<8x128xf32>
    %121 = math.tanh %120 : vector<8x128xf32>
    %122 = vector.extract_strided_slice %107 {offsets = [0, 384], sizes = [8, 128], strides = [1, 1]} : vector<8x512xf32> to vector<8x128xf32>
    %123 = arith.negf %122 : vector<8x128xf32>
    %124 = math.exp %123 : vector<8x128xf32>
    %cst_34 = arith.constant 1.000000e+00 : f32
    %125 = vector.broadcast %cst_34 : f32 to vector<8x128xf32>
    %126 = arith.addf %125, %124 : vector<8x128xf32>
    %127 = arith.divf %125, %126 : vector<8x128xf32>
    %128 = arith.mulf %119, %101 : vector<8x128xf32>
    %129 = arith.mulf %113, %121 : vector<8x128xf32>
    %130 = arith.addf %128, %129 : vector<8x128xf32>
    %131 = math.tanh %130 : vector<8x128xf32>
    %132 = arith.mulf %127, %131 : vector<8x128xf32>
    %c24 = arith.constant 24 : index
    %c0_35 = arith.constant 0 : index
    %133 = vector.load %arg12[%c24, %c0_35] : memref<64x128xf32, #tpu.memory_space<vmem>>, vector<8x128xf32>
    tpu.vector_store %arg12[%c24, %c0_35], %132 {strides = array<i32>} : memref<64x128xf32, #tpu.memory_space<vmem>>, vector<8x128xf32>,
    %134 = vector.extract_strided_slice %11 {offsets = [32, 0], sizes = [8, 512], strides = [1, 1]} : vector<64x512xf32> to vector<8x512xf32>
    %cst_36 = arith.constant dense<0.000000e+00> : vector<8x512xf32>
    %135 = tpu.matmul %132, %13, %cst_36 {dimension_numbers = #tpu.dot_dimension_numbers<[1], [0], [0], [1], [0, 0, 1, 1], [], []>} : vector<8x128xf32>, vector<128x512xf32>, vector<8x512xf32> -> vector<8x512xf32>
    %136 = arith.addf %134, %135 : vector<8x512xf32>
    %137 = vector.extract_strided_slice %136 {offsets = [0, 0], sizes = [8, 128], strides = [1, 1]} : vector<8x512xf32> to vector<8x128xf32>
    %138 = arith.negf %137 : vector<8x128xf32>
    %139 = math.exp %138 : vector<8x128xf32>
    %cst_37 = arith.constant 1.000000e+00 : f32
    %140 = vector.broadcast %cst_37 : f32 to vector<8x128xf32>
    %141 = arith.addf %140, %139 : vector<8x128xf32>
    %142 = arith.divf %140, %141 : vector<8x128xf32>
    %143 = vector.extract_strided_slice %136 {offsets = [0, 128], sizes = [8, 128], strides = [1, 1]} : vector<8x512xf32> to vector<8x128xf32>
    %144 = arith.negf %143 : vector<8x128xf32>
    %145 = math.exp %144 : vector<8x128xf32>
    %cst_38 = arith.constant 1.000000e+00 : f32
    %146 = vector.broadcast %cst_38 : f32 to vector<8x128xf32>
    %147 = arith.addf %146, %145 : vector<8x128xf32>
    %148 = arith.divf %146, %147 : vector<8x128xf32>
    %149 = vector.extract_strided_slice %136 {offsets = [0, 256], sizes = [8, 128], strides = [1, 1]} : vector<8x512xf32> to vector<8x128xf32>
    %150 = math.tanh %149 : vector<8x128xf32>
    %151 = vector.extract_strided_slice %136 {offsets = [0, 384], sizes = [8, 128], strides = [1, 1]} : vector<8x512xf32> to vector<8x128xf32>
    %152 = arith.negf %151 : vector<8x128xf32>
    %153 = math.exp %152 : vector<8x128xf32>
    %cst_39 = arith.constant 1.000000e+00 : f32
    %154 = vector.broadcast %cst_39 : f32 to vector<8x128xf32>
    %155 = arith.addf %154, %153 : vector<8x128xf32>
    %156 = arith.divf %154, %155 : vector<8x128xf32>
    %157 = arith.mulf %148, %130 : vector<8x128xf32>
    %158 = arith.mulf %142, %150 : vector<8x128xf32>
    %159 = arith.addf %157, %158 : vector<8x128xf32>
    %160 = math.tanh %159 : vector<8x128xf32>
    %161 = arith.mulf %156, %160 : vector<8x128xf32>
    %c32 = arith.constant 32 : index
    %c0_40 = arith.constant 0 : index
    %162 = vector.load %arg12[%c32, %c0_40] : memref<64x128xf32, #tpu.memory_space<vmem>>, vector<8x128xf32>
    tpu.vector_store %arg12[%c32, %c0_40], %161 {strides = array<i32>} : memref<64x128xf32, #tpu.memory_space<vmem>>, vector<8x128xf32>,
    %163 = vector.extract_strided_slice %11 {offsets = [40, 0], sizes = [8, 512], strides = [1, 1]} : vector<64x512xf32> to vector<8x512xf32>
    %cst_41 = arith.constant dense<0.000000e+00> : vector<8x512xf32>
    %164 = tpu.matmul %161, %13, %cst_41 {dimension_numbers = #tpu.dot_dimension_numbers<[1], [0], [0], [1], [0, 0, 1, 1], [], []>} : vector<8x128xf32>, vector<128x512xf32>, vector<8x512xf32> -> vector<8x512xf32>
    %165 = arith.addf %163, %164 : vector<8x512xf32>
    %166 = vector.extract_strided_slice %165 {offsets = [0, 0], sizes = [8, 128], strides = [1, 1]} : vector<8x512xf32> to vector<8x128xf32>
    %167 = arith.negf %166 : vector<8x128xf32>
    %168 = math.exp %167 : vector<8x128xf32>
    %cst_42 = arith.constant 1.000000e+00 : f32
    %169 = vector.broadcast %cst_42 : f32 to vector<8x128xf32>
    %170 = arith.addf %169, %168 : vector<8x128xf32>
    %171 = arith.divf %169, %170 : vector<8x128xf32>
    %172 = vector.extract_strided_slice %165 {offsets = [0, 128], sizes = [8, 128], strides = [1, 1]} : vector<8x512xf32> to vector<8x128xf32>
    %173 = arith.negf %172 : vector<8x128xf32>
    %174 = math.exp %173 : vector<8x128xf32>
    %cst_43 = arith.constant 1.000000e+00 : f32
    %175 = vector.broadcast %cst_43 : f32 to vector<8x128xf32>
    %176 = arith.addf %175, %174 : vector<8x128xf32>
    %177 = arith.divf %175, %176 : vector<8x128xf32>
    %178 = vector.extract_strided_slice %165 {offsets = [0, 256], sizes = [8, 128], strides = [1, 1]} : vector<8x512xf32> to vector<8x128xf32>
    %179 = math.tanh %178 : vector<8x128xf32>
    %180 = vector.extract_strided_slice %165 {offsets = [0, 384], sizes = [8, 128], strides = [1, 1]} : vector<8x512xf32> to vector<8x128xf32>
    %181 = arith.negf %180 : vector<8x128xf32>
    %182 = math.exp %181 : vector<8x128xf32>
    %cst_44 = arith.constant 1.000000e+00 : f32
    %183 = vector.broadcast %cst_44 : f32 to vector<8x128xf32>
    %184 = arith.addf %183, %182 : vector<8x128xf32>
    %185 = arith.divf %183, %184 : vector<8x128xf32>
    %186 = arith.mulf %177, %159 : vector<8x128xf32>
    %187 = arith.mulf %171, %179 : vector<8x128xf32>
    %188 = arith.addf %186, %187 : vector<8x128xf32>
    %189 = math.tanh %188 : vector<8x128xf32>
    %190 = arith.mulf %185, %189 : vector<8x128xf32>
    %c40 = arith.constant 40 : index
    %c0_45 = arith.constant 0 : index
    %191 = vector.load %arg12[%c40, %c0_45] : memref<64x128xf32, #tpu.memory_space<vmem>>, vector<8x128xf32>
    tpu.vector_store %arg12[%c40, %c0_45], %190 {strides = array<i32>} : memref<64x128xf32, #tpu.memory_space<vmem>>, vector<8x128xf32>,
    %192 = vector.extract_strided_slice %11 {offsets = [48, 0], sizes = [8, 512], strides = [1, 1]} : vector<64x512xf32> to vector<8x512xf32>
    %cst_46 = arith.constant dense<0.000000e+00> : vector<8x512xf32>
    %193 = tpu.matmul %190, %13, %cst_46 {dimension_numbers = #tpu.dot_dimension_numbers<[1], [0], [0], [1], [0, 0, 1, 1], [], []>} : vector<8x128xf32>, vector<128x512xf32>, vector<8x512xf32> -> vector<8x512xf32>
    %194 = arith.addf %192, %193 : vector<8x512xf32>
    %195 = vector.extract_strided_slice %194 {offsets = [0, 0], sizes = [8, 128], strides = [1, 1]} : vector<8x512xf32> to vector<8x128xf32>
    %196 = arith.negf %195 : vector<8x128xf32>
    %197 = math.exp %196 : vector<8x128xf32>
    %cst_47 = arith.constant 1.000000e+00 : f32
    %198 = vector.broadcast %cst_47 : f32 to vector<8x128xf32>
    %199 = arith.addf %198, %197 : vector<8x128xf32>
    %200 = arith.divf %198, %199 : vector<8x128xf32>
    %201 = vector.extract_strided_slice %194 {offsets = [0, 128], sizes = [8, 128], strides = [1, 1]} : vector<8x512xf32> to vector<8x128xf32>
    %202 = arith.negf %201 : vector<8x128xf32>
    %203 = math.exp %202 : vector<8x128xf32>
    %cst_48 = arith.constant 1.000000e+00 : f32
    %204 = vector.broadcast %cst_48 : f32 to vector<8x128xf32>
    %205 = arith.addf %204, %203 : vector<8x128xf32>
    %206 = arith.divf %204, %205 : vector<8x128xf32>
    %207 = vector.extract_strided_slice %194 {offsets = [0, 256], sizes = [8, 128], strides = [1, 1]} : vector<8x512xf32> to vector<8x128xf32>
    %208 = math.tanh %207 : vector<8x128xf32>
    %209 = vector.extract_strided_slice %194 {offsets = [0, 384], sizes = [8, 128], strides = [1, 1]} : vector<8x512xf32> to vector<8x128xf32>
    %210 = arith.negf %209 : vector<8x128xf32>
    %211 = math.exp %210 : vector<8x128xf32>
    %cst_49 = arith.constant 1.000000e+00 : f32
    %212 = vector.broadcast %cst_49 : f32 to vector<8x128xf32>
    %213 = arith.addf %212, %211 : vector<8x128xf32>
    %214 = arith.divf %212, %213 : vector<8x128xf32>
    %215 = arith.mulf %206, %188 : vector<8x128xf32>
    %216 = arith.mulf %200, %208 : vector<8x128xf32>
    %217 = arith.addf %215, %216 : vector<8x128xf32>
    %218 = math.tanh %217 : vector<8x128xf32>
    %219 = arith.mulf %214, %218 : vector<8x128xf32>
    %c48 = arith.constant 48 : index
    %c0_50 = arith.constant 0 : index
    %220 = vector.load %arg12[%c48, %c0_50] : memref<64x128xf32, #tpu.memory_space<vmem>>, vector<8x128xf32>
    tpu.vector_store %arg12[%c48, %c0_50], %219 {strides = array<i32>} : memref<64x128xf32, #tpu.memory_space<vmem>>, vector<8x128xf32>,
    %221 = vector.extract_strided_slice %11 {offsets = [56, 0], sizes = [8, 512], strides = [1, 1]} : vector<64x512xf32> to vector<8x512xf32>
    %cst_51 = arith.constant dense<0.000000e+00> : vector<8x512xf32>
    %222 = tpu.matmul %219, %13, %cst_51 {dimension_numbers = #tpu.dot_dimension_numbers<[1], [0], [0], [1], [0, 0, 1, 1], [], []>} : vector<8x128xf32>, vector<128x512xf32>, vector<8x512xf32> -> vector<8x512xf32>
    %223 = arith.addf %221, %222 : vector<8x512xf32>
    %224 = vector.extract_strided_slice %223 {offsets = [0, 0], sizes = [8, 128], strides = [1, 1]} : vector<8x512xf32> to vector<8x128xf32>
    %225 = arith.negf %224 : vector<8x128xf32>
    %226 = math.exp %225 : vector<8x128xf32>
    %cst_52 = arith.constant 1.000000e+00 : f32
    %227 = vector.broadcast %cst_52 : f32 to vector<8x128xf32>
    %228 = arith.addf %227, %226 : vector<8x128xf32>
    %229 = arith.divf %227, %228 : vector<8x128xf32>
    %230 = vector.extract_strided_slice %223 {offsets = [0, 128], sizes = [8, 128], strides = [1, 1]} : vector<8x512xf32> to vector<8x128xf32>
    %231 = arith.negf %230 : vector<8x128xf32>
    %232 = math.exp %231 : vector<8x128xf32>
    %cst_53 = arith.constant 1.000000e+00 : f32
    %233 = vector.broadcast %cst_53 : f32 to vector<8x128xf32>
    %234 = arith.addf %233, %232 : vector<8x128xf32>
    %235 = arith.divf %233, %234 : vector<8x128xf32>
    %236 = vector.extract_strided_slice %223 {offsets = [0, 256], sizes = [8, 128], strides = [1, 1]} : vector<8x512xf32> to vector<8x128xf32>
    %237 = math.tanh %236 : vector<8x128xf32>
    %238 = vector.extract_strided_slice %223 {offsets = [0, 384], sizes = [8, 128], strides = [1, 1]} : vector<8x512xf32> to vector<8x128xf32>
    %239 = arith.negf %238 : vector<8x128xf32>
    %240 = math.exp %239 : vector<8x128xf32>
    %cst_54 = arith.constant 1.000000e+00 : f32
    %241 = vector.broadcast %cst_54 : f32 to vector<8x128xf32>
    %242 = arith.addf %241, %240 : vector<8x128xf32>
    %243 = arith.divf %241, %242 : vector<8x128xf32>
    %244 = arith.mulf %235, %217 : vector<8x128xf32>
    %245 = arith.mulf %229, %237 : vector<8x128xf32>
    %246 = arith.addf %244, %245 : vector<8x128xf32>
    %247 = math.tanh %246 : vector<8x128xf32>
    %248 = arith.mulf %243, %247 : vector<8x128xf32>
    %c56 = arith.constant 56 : index
    %c0_55 = arith.constant 0 : index
    %249 = vector.load %arg12[%c56, %c0_55] : memref<64x128xf32, #tpu.memory_space<vmem>>, vector<8x128xf32>
    tpu.vector_store %arg12[%c56, %c0_55], %248 {strides = array<i32>} : memref<64x128xf32, #tpu.memory_space<vmem>>, vector<8x128xf32>,
    %c0_56 = arith.constant 0 : index
    %c0_57 = arith.constant 0 : index
    %c0_58 = arith.constant 0 : index
    %250 = vector.load %arg10[%c0_56, %c0_57, %c0_58] : memref<2x8x128xf32, #tpu.memory_space<vmem>>, vector<1x8x128xf32>
    %251 = vector.shape_cast %250 : vector<1x8x128xf32> to vector<8x128xf32>
    %252 = vector.shape_cast %248 : vector<8x128xf32> to vector<1x8x128xf32>
    tpu.vector_store %arg10[%c0_56, %c0_57, %c0_58], %252 {strides = array<i32>} : memref<2x8x128xf32, #tpu.memory_space<vmem>>, vector<1x8x128xf32>,
    %c0_59 = arith.constant 0 : index
    %c0_60 = arith.constant 0 : index
    %c0_61 = arith.constant 0 : index
    %253 = vector.load %arg11[%c0_59, %c0_60, %c0_61] : memref<2x8x128xf32, #tpu.memory_space<vmem>>, vector<1x8x128xf32>
    %254 = vector.shape_cast %253 : vector<1x8x128xf32> to vector<8x128xf32>
    %255 = vector.shape_cast %246 : vector<8x128xf32> to vector<1x8x128xf32>
    tpu.vector_store %arg11[%c0_59, %c0_60, %c0_61], %255 {strides = array<i32>} : memref<2x8x128xf32, #tpu.memory_space<vmem>>, vector<1x8x128xf32>,
    %c0_62 = arith.constant 0 : index
    %c0_63 = arith.constant 0 : index
    %256 = vector.load %arg12[%c0_62, %c0_63] : memref<64x128xf32, #tpu.memory_space<vmem>>, vector<64x128xf32>
    %c0_64 = arith.constant 0 : index
    %c0_65 = arith.constant 0 : index
    %c0_66 = arith.constant 0 : index
    %257 = vector.load %arg2[%c0_64, %c0_65, %c0_66] : memref<1x128x512xf32, #tpu.memory_space<vmem>>, vector<1x128x512xf32>
    %258 = vector.shape_cast %257 : vector<1x128x512xf32> to vector<128x512xf32>
    %cst_67 = arith.constant dense<0.000000e+00> : vector<64x512xf32>
    %259 = tpu.matmul %256, %258, %cst_67 {dimension_numbers = #tpu.dot_dimension_numbers<[1], [0], [0], [1], [0, 0, 1, 1], [], []>} : vector<64x128xf32>, vector<128x512xf32>, vector<64x512xf32> -> vector<64x512xf32>
    %c1 = arith.constant 1 : index
    %c0_68 = arith.constant 0 : index
    %c0_69 = arith.constant 0 : index
    %260 = vector.load %arg4[%c1, %c0_68, %c0_69] : memref<2x1x512xf32, #tpu.memory_space<vmem>>, vector<1x1x512xf32>
    %261 = vector.shape_cast %260 : vector<1x1x512xf32> to vector<1x512xf32>
    %262 = vector.broadcast %261 : vector<1x512xf32> to vector<64x512xf32>
    %263 = arith.addf %259, %262 : vector<64x512xf32>
    %c1_70 = arith.constant 1 : index
    %c0_71 = arith.constant 0 : index
    %c0_72 = arith.constant 0 : index
    %264 = vector.load %arg3[%c1_70, %c0_71, %c0_72] : memref<2x128x512xf32, #tpu.memory_space<vmem>>, vector<1x128x512xf32>
    %265 = vector.shape_cast %264 : vector<1x128x512xf32> to vector<128x512xf32>
    %c1_73 = arith.constant 1 : index
    %c0_74 = arith.constant 0 : index
    %c0_75 = arith.constant 0 : index
    %266 = vector.load %arg7[%c1_73, %c0_74, %c0_75] : memref<2x8x128xf32, #tpu.memory_space<vmem>>, vector<1x8x128xf32>
    %267 = vector.shape_cast %266 : vector<1x8x128xf32> to vector<8x128xf32>
    %c1_76 = arith.constant 1 : index
    %c0_77 = arith.constant 0 : index
    %c0_78 = arith.constant 0 : index
    %268 = vector.load %arg8[%c1_76, %c0_77, %c0_78] : memref<2x8x128xf32, #tpu.memory_space<vmem>>, vector<1x8x128xf32>
    %269 = vector.shape_cast %268 : vector<1x8x128xf32> to vector<8x128xf32>
    %270 = vector.extract_strided_slice %263 {offsets = [0, 0], sizes = [8, 512], strides = [1, 1]} : vector<64x512xf32> to vector<8x512xf32>
    %cst_79 = arith.constant dense<0.000000e+00> : vector<8x512xf32>
    %271 = tpu.matmul %267, %265, %cst_79 {dimension_numbers = #tpu.dot_dimension_numbers<[1], [0], [0], [1], [0, 0, 1, 1], [], []>} : vector<8x128xf32>, vector<128x512xf32>, vector<8x512xf32> -> vector<8x512xf32>
    %272 = arith.addf %270, %271 : vector<8x512xf32>
    %273 = vector.extract_strided_slice %272 {offsets = [0, 0], sizes = [8, 128], strides = [1, 1]} : vector<8x512xf32> to vector<8x128xf32>
    %274 = arith.negf %273 : vector<8x128xf32>
    %275 = math.exp %274 : vector<8x128xf32>
    %cst_80 = arith.constant 1.000000e+00 : f32
    %276 = vector.broadcast %cst_80 : f32 to vector<8x128xf32>
    %277 = arith.addf %276, %275 : vector<8x128xf32>
    %278 = arith.divf %276, %277 : vector<8x128xf32>
    %279 = vector.extract_strided_slice %272 {offsets = [0, 128], sizes = [8, 128], strides = [1, 1]} : vector<8x512xf32> to vector<8x128xf32>
    %280 = arith.negf %279 : vector<8x128xf32>
    %281 = math.exp %280 : vector<8x128xf32>
    %cst_81 = arith.constant 1.000000e+00 : f32
    %282 = vector.broadcast %cst_81 : f32 to vector<8x128xf32>
    %283 = arith.addf %282, %281 : vector<8x128xf32>
    %284 = arith.divf %282, %283 : vector<8x128xf32>
    %285 = vector.extract_strided_slice %272 {offsets = [0, 256], sizes = [8, 128], strides = [1, 1]} : vector<8x512xf32> to vector<8x128xf32>
    %286 = math.tanh %285 : vector<8x128xf32>
    %287 = vector.extract_strided_slice %272 {offsets = [0, 384], sizes = [8, 128], strides = [1, 1]} : vector<8x512xf32> to vector<8x128xf32>
    %288 = arith.negf %287 : vector<8x128xf32>
    %289 = math.exp %288 : vector<8x128xf32>
    %cst_82 = arith.constant 1.000000e+00 : f32
    %290 = vector.broadcast %cst_82 : f32 to vector<8x128xf32>
    %291 = arith.addf %290, %289 : vector<8x128xf32>
    %292 = arith.divf %290, %291 : vector<8x128xf32>
    %293 = arith.mulf %284, %269 : vector<8x128xf32>
    %294 = arith.mulf %278, %286 : vector<8x128xf32>
    %295 = arith.addf %293, %294 : vector<8x128xf32>
    %296 = math.tanh %295 : vector<8x128xf32>
    %297 = arith.mulf %292, %296 : vector<8x128xf32>
    %c0_83 = arith.constant 0 : index
    %c0_84 = arith.constant 0 : index
    %298 = vector.load %arg12[%c0_83, %c0_84] : memref<64x128xf32, #tpu.memory_space<vmem>>, vector<8x128xf32>
    tpu.vector_store %arg12[%c0_83, %c0_84], %297 {strides = array<i32>} : memref<64x128xf32, #tpu.memory_space<vmem>>, vector<8x128xf32>,
    %299 = vector.extract_strided_slice %263 {offsets = [8, 0], sizes = [8, 512], strides = [1, 1]} : vector<64x512xf32> to vector<8x512xf32>
    %cst_85 = arith.constant dense<0.000000e+00> : vector<8x512xf32>
    %300 = tpu.matmul %297, %265, %cst_85 {dimension_numbers = #tpu.dot_dimension_numbers<[1], [0], [0], [1], [0, 0, 1, 1], [], []>} : vector<8x128xf32>, vector<128x512xf32>, vector<8x512xf32> -> vector<8x512xf32>
    %301 = arith.addf %299, %300 : vector<8x512xf32>
    %302 = vector.extract_strided_slice %301 {offsets = [0, 0], sizes = [8, 128], strides = [1, 1]} : vector<8x512xf32> to vector<8x128xf32>
    %303 = arith.negf %302 : vector<8x128xf32>
    %304 = math.exp %303 : vector<8x128xf32>
    %cst_86 = arith.constant 1.000000e+00 : f32
    %305 = vector.broadcast %cst_86 : f32 to vector<8x128xf32>
    %306 = arith.addf %305, %304 : vector<8x128xf32>
    %307 = arith.divf %305, %306 : vector<8x128xf32>
    %308 = vector.extract_strided_slice %301 {offsets = [0, 128], sizes = [8, 128], strides = [1, 1]} : vector<8x512xf32> to vector<8x128xf32>
    %309 = arith.negf %308 : vector<8x128xf32>
    %310 = math.exp %309 : vector<8x128xf32>
    %cst_87 = arith.constant 1.000000e+00 : f32
    %311 = vector.broadcast %cst_87 : f32 to vector<8x128xf32>
    %312 = arith.addf %311, %310 : vector<8x128xf32>
    %313 = arith.divf %311, %312 : vector<8x128xf32>
    %314 = vector.extract_strided_slice %301 {offsets = [0, 256], sizes = [8, 128], strides = [1, 1]} : vector<8x512xf32> to vector<8x128xf32>
    %315 = math.tanh %314 : vector<8x128xf32>
    %316 = vector.extract_strided_slice %301 {offsets = [0, 384], sizes = [8, 128], strides = [1, 1]} : vector<8x512xf32> to vector<8x128xf32>
    %317 = arith.negf %316 : vector<8x128xf32>
    %318 = math.exp %317 : vector<8x128xf32>
    %cst_88 = arith.constant 1.000000e+00 : f32
    %319 = vector.broadcast %cst_88 : f32 to vector<8x128xf32>
    %320 = arith.addf %319, %318 : vector<8x128xf32>
    %321 = arith.divf %319, %320 : vector<8x128xf32>
    %322 = arith.mulf %313, %295 : vector<8x128xf32>
    %323 = arith.mulf %307, %315 : vector<8x128xf32>
    %324 = arith.addf %322, %323 : vector<8x128xf32>
    %325 = math.tanh %324 : vector<8x128xf32>
    %326 = arith.mulf %321, %325 : vector<8x128xf32>
    %c8_89 = arith.constant 8 : index
    %c0_90 = arith.constant 0 : index
    %327 = vector.load %arg12[%c8_89, %c0_90] : memref<64x128xf32, #tpu.memory_space<vmem>>, vector<8x128xf32>
    tpu.vector_store %arg12[%c8_89, %c0_90], %326 {strides = array<i32>} : memref<64x128xf32, #tpu.memory_space<vmem>>, vector<8x128xf32>,
    %328 = vector.extract_strided_slice %263 {offsets = [16, 0], sizes = [8, 512], strides = [1, 1]} : vector<64x512xf32> to vector<8x512xf32>
    %cst_91 = arith.constant dense<0.000000e+00> : vector<8x512xf32>
    %329 = tpu.matmul %326, %265, %cst_91 {dimension_numbers = #tpu.dot_dimension_numbers<[1], [0], [0], [1], [0, 0, 1, 1], [], []>} : vector<8x128xf32>, vector<128x512xf32>, vector<8x512xf32> -> vector<8x512xf32>
    %330 = arith.addf %328, %329 : vector<8x512xf32>
    %331 = vector.extract_strided_slice %330 {offsets = [0, 0], sizes = [8, 128], strides = [1, 1]} : vector<8x512xf32> to vector<8x128xf32>
    %332 = arith.negf %331 : vector<8x128xf32>
    %333 = math.exp %332 : vector<8x128xf32>
    %cst_92 = arith.constant 1.000000e+00 : f32
    %334 = vector.broadcast %cst_92 : f32 to vector<8x128xf32>
    %335 = arith.addf %334, %333 : vector<8x128xf32>
    %336 = arith.divf %334, %335 : vector<8x128xf32>
    %337 = vector.extract_strided_slice %330 {offsets = [0, 128], sizes = [8, 128], strides = [1, 1]} : vector<8x512xf32> to vector<8x128xf32>
    %338 = arith.negf %337 : vector<8x128xf32>
    %339 = math.exp %338 : vector<8x128xf32>
    %cst_93 = arith.constant 1.000000e+00 : f32
    %340 = vector.broadcast %cst_93 : f32 to vector<8x128xf32>
    %341 = arith.addf %340, %339 : vector<8x128xf32>
    %342 = arith.divf %340, %341 : vector<8x128xf32>
    %343 = vector.extract_strided_slice %330 {offsets = [0, 256], sizes = [8, 128], strides = [1, 1]} : vector<8x512xf32> to vector<8x128xf32>
    %344 = math.tanh %343 : vector<8x128xf32>
    %345 = vector.extract_strided_slice %330 {offsets = [0, 384], sizes = [8, 128], strides = [1, 1]} : vector<8x512xf32> to vector<8x128xf32>
    %346 = arith.negf %345 : vector<8x128xf32>
    %347 = math.exp %346 : vector<8x128xf32>
    %cst_94 = arith.constant 1.000000e+00 : f32
    %348 = vector.broadcast %cst_94 : f32 to vector<8x128xf32>
    %349 = arith.addf %348, %347 : vector<8x128xf32>
    %350 = arith.divf %348, %349 : vector<8x128xf32>
    %351 = arith.mulf %342, %324 : vector<8x128xf32>
    %352 = arith.mulf %336, %344 : vector<8x128xf32>
    %353 = arith.addf %351, %352 : vector<8x128xf32>
    %354 = math.tanh %353 : vector<8x128xf32>
    %355 = arith.mulf %350, %354 : vector<8x128xf32>
    %c16_95 = arith.constant 16 : index
    %c0_96 = arith.constant 0 : index
    %356 = vector.load %arg12[%c16_95, %c0_96] : memref<64x128xf32, #tpu.memory_space<vmem>>, vector<8x128xf32>
    tpu.vector_store %arg12[%c16_95, %c0_96], %355 {strides = array<i32>} : memref<64x128xf32, #tpu.memory_space<vmem>>, vector<8x128xf32>,
    %357 = vector.extract_strided_slice %263 {offsets = [24, 0], sizes = [8, 512], strides = [1, 1]} : vector<64x512xf32> to vector<8x512xf32>
    %cst_97 = arith.constant dense<0.000000e+00> : vector<8x512xf32>
    %358 = tpu.matmul %355, %265, %cst_97 {dimension_numbers = #tpu.dot_dimension_numbers<[1], [0], [0], [1], [0, 0, 1, 1], [], []>} : vector<8x128xf32>, vector<128x512xf32>, vector<8x512xf32> -> vector<8x512xf32>
    %359 = arith.addf %357, %358 : vector<8x512xf32>
    %360 = vector.extract_strided_slice %359 {offsets = [0, 0], sizes = [8, 128], strides = [1, 1]} : vector<8x512xf32> to vector<8x128xf32>
    %361 = arith.negf %360 : vector<8x128xf32>
    %362 = math.exp %361 : vector<8x128xf32>
    %cst_98 = arith.constant 1.000000e+00 : f32
    %363 = vector.broadcast %cst_98 : f32 to vector<8x128xf32>
    %364 = arith.addf %363, %362 : vector<8x128xf32>
    %365 = arith.divf %363, %364 : vector<8x128xf32>
    %366 = vector.extract_strided_slice %359 {offsets = [0, 128], sizes = [8, 128], strides = [1, 1]} : vector<8x512xf32> to vector<8x128xf32>
    %367 = arith.negf %366 : vector<8x128xf32>
    %368 = math.exp %367 : vector<8x128xf32>
    %cst_99 = arith.constant 1.000000e+00 : f32
    %369 = vector.broadcast %cst_99 : f32 to vector<8x128xf32>
    %370 = arith.addf %369, %368 : vector<8x128xf32>
    %371 = arith.divf %369, %370 : vector<8x128xf32>
    %372 = vector.extract_strided_slice %359 {offsets = [0, 256], sizes = [8, 128], strides = [1, 1]} : vector<8x512xf32> to vector<8x128xf32>
    %373 = math.tanh %372 : vector<8x128xf32>
    %374 = vector.extract_strided_slice %359 {offsets = [0, 384], sizes = [8, 128], strides = [1, 1]} : vector<8x512xf32> to vector<8x128xf32>
    %375 = arith.negf %374 : vector<8x128xf32>
    %376 = math.exp %375 : vector<8x128xf32>
    %cst_100 = arith.constant 1.000000e+00 : f32
    %377 = vector.broadcast %cst_100 : f32 to vector<8x128xf32>
    %378 = arith.addf %377, %376 : vector<8x128xf32>
    %379 = arith.divf %377, %378 : vector<8x128xf32>
    %380 = arith.mulf %371, %353 : vector<8x128xf32>
    %381 = arith.mulf %365, %373 : vector<8x128xf32>
    %382 = arith.addf %380, %381 : vector<8x128xf32>
    %383 = math.tanh %382 : vector<8x128xf32>
    %384 = arith.mulf %379, %383 : vector<8x128xf32>
    %c24_101 = arith.constant 24 : index
    %c0_102 = arith.constant 0 : index
    %385 = vector.load %arg12[%c24_101, %c0_102] : memref<64x128xf32, #tpu.memory_space<vmem>>, vector<8x128xf32>
    tpu.vector_store %arg12[%c24_101, %c0_102], %384 {strides = array<i32>} : memref<64x128xf32, #tpu.memory_space<vmem>>, vector<8x128xf32>,
    %386 = vector.extract_strided_slice %263 {offsets = [32, 0], sizes = [8, 512], strides = [1, 1]} : vector<64x512xf32> to vector<8x512xf32>
    %cst_103 = arith.constant dense<0.000000e+00> : vector<8x512xf32>
    %387 = tpu.matmul %384, %265, %cst_103 {dimension_numbers = #tpu.dot_dimension_numbers<[1], [0], [0], [1], [0, 0, 1, 1], [], []>} : vector<8x128xf32>, vector<128x512xf32>, vector<8x512xf32> -> vector<8x512xf32>
    %388 = arith.addf %386, %387 : vector<8x512xf32>
    %389 = vector.extract_strided_slice %388 {offsets = [0, 0], sizes = [8, 128], strides = [1, 1]} : vector<8x512xf32> to vector<8x128xf32>
    %390 = arith.negf %389 : vector<8x128xf32>
    %391 = math.exp %390 : vector<8x128xf32>
    %cst_104 = arith.constant 1.000000e+00 : f32
    %392 = vector.broadcast %cst_104 : f32 to vector<8x128xf32>
    %393 = arith.addf %392, %391 : vector<8x128xf32>
    %394 = arith.divf %392, %393 : vector<8x128xf32>
    %395 = vector.extract_strided_slice %388 {offsets = [0, 128], sizes = [8, 128], strides = [1, 1]} : vector<8x512xf32> to vector<8x128xf32>
    %396 = arith.negf %395 : vector<8x128xf32>
    %397 = math.exp %396 : vector<8x128xf32>
    %cst_105 = arith.constant 1.000000e+00 : f32
    %398 = vector.broadcast %cst_105 : f32 to vector<8x128xf32>
    %399 = arith.addf %398, %397 : vector<8x128xf32>
    %400 = arith.divf %398, %399 : vector<8x128xf32>
    %401 = vector.extract_strided_slice %388 {offsets = [0, 256], sizes = [8, 128], strides = [1, 1]} : vector<8x512xf32> to vector<8x128xf32>
    %402 = math.tanh %401 : vector<8x128xf32>
    %403 = vector.extract_strided_slice %388 {offsets = [0, 384], sizes = [8, 128], strides = [1, 1]} : vector<8x512xf32> to vector<8x128xf32>
    %404 = arith.negf %403 : vector<8x128xf32>
    %405 = math.exp %404 : vector<8x128xf32>
    %cst_106 = arith.constant 1.000000e+00 : f32
    %406 = vector.broadcast %cst_106 : f32 to vector<8x128xf32>
    %407 = arith.addf %406, %405 : vector<8x128xf32>
    %408 = arith.divf %406, %407 : vector<8x128xf32>
    %409 = arith.mulf %400, %382 : vector<8x128xf32>
    %410 = arith.mulf %394, %402 : vector<8x128xf32>
    %411 = arith.addf %409, %410 : vector<8x128xf32>
    %412 = math.tanh %411 : vector<8x128xf32>
    %413 = arith.mulf %408, %412 : vector<8x128xf32>
    %c32_107 = arith.constant 32 : index
    %c0_108 = arith.constant 0 : index
    %414 = vector.load %arg12[%c32_107, %c0_108] : memref<64x128xf32, #tpu.memory_space<vmem>>, vector<8x128xf32>
    tpu.vector_store %arg12[%c32_107, %c0_108], %413 {strides = array<i32>} : memref<64x128xf32, #tpu.memory_space<vmem>>, vector<8x128xf32>,
    %415 = vector.extract_strided_slice %263 {offsets = [40, 0], sizes = [8, 512], strides = [1, 1]} : vector<64x512xf32> to vector<8x512xf32>
    %cst_109 = arith.constant dense<0.000000e+00> : vector<8x512xf32>
    %416 = tpu.matmul %413, %265, %cst_109 {dimension_numbers = #tpu.dot_dimension_numbers<[1], [0], [0], [1], [0, 0, 1, 1], [], []>} : vector<8x128xf32>, vector<128x512xf32>, vector<8x512xf32> -> vector<8x512xf32>
    %417 = arith.addf %415, %416 : vector<8x512xf32>
    %418 = vector.extract_strided_slice %417 {offsets = [0, 0], sizes = [8, 128], strides = [1, 1]} : vector<8x512xf32> to vector<8x128xf32>
    %419 = arith.negf %418 : vector<8x128xf32>
    %420 = math.exp %419 : vector<8x128xf32>
    %cst_110 = arith.constant 1.000000e+00 : f32
    %421 = vector.broadcast %cst_110 : f32 to vector<8x128xf32>
    %422 = arith.addf %421, %420 : vector<8x128xf32>
    %423 = arith.divf %421, %422 : vector<8x128xf32>
    %424 = vector.extract_strided_slice %417 {offsets = [0, 128], sizes = [8, 128], strides = [1, 1]} : vector<8x512xf32> to vector<8x128xf32>
    %425 = arith.negf %424 : vector<8x128xf32>
    %426 = math.exp %425 : vector<8x128xf32>
    %cst_111 = arith.constant 1.000000e+00 : f32
    %427 = vector.broadcast %cst_111 : f32 to vector<8x128xf32>
    %428 = arith.addf %427, %426 : vector<8x128xf32>
    %429 = arith.divf %427, %428 : vector<8x128xf32>
    %430 = vector.extract_strided_slice %417 {offsets = [0, 256], sizes = [8, 128], strides = [1, 1]} : vector<8x512xf32> to vector<8x128xf32>
    %431 = math.tanh %430 : vector<8x128xf32>
    %432 = vector.extract_strided_slice %417 {offsets = [0, 384], sizes = [8, 128], strides = [1, 1]} : vector<8x512xf32> to vector<8x128xf32>
    %433 = arith.negf %432 : vector<8x128xf32>
    %434 = math.exp %433 : vector<8x128xf32>
    %cst_112 = arith.constant 1.000000e+00 : f32
    %435 = vector.broadcast %cst_112 : f32 to vector<8x128xf32>
    %436 = arith.addf %435, %434 : vector<8x128xf32>
    %437 = arith.divf %435, %436 : vector<8x128xf32>
    %438 = arith.mulf %429, %411 : vector<8x128xf32>
    %439 = arith.mulf %423, %431 : vector<8x128xf32>
    %440 = arith.addf %438, %439 : vector<8x128xf32>
    %441 = math.tanh %440 : vector<8x128xf32>
    %442 = arith.mulf %437, %441 : vector<8x128xf32>
    %c40_113 = arith.constant 40 : index
    %c0_114 = arith.constant 0 : index
    %443 = vector.load %arg12[%c40_113, %c0_114] : memref<64x128xf32, #tpu.memory_space<vmem>>, vector<8x128xf32>
    tpu.vector_store %arg12[%c40_113, %c0_114], %442 {strides = array<i32>} : memref<64x128xf32, #tpu.memory_space<vmem>>, vector<8x128xf32>,
    %444 = vector.extract_strided_slice %263 {offsets = [48, 0], sizes = [8, 512], strides = [1, 1]} : vector<64x512xf32> to vector<8x512xf32>
    %cst_115 = arith.constant dense<0.000000e+00> : vector<8x512xf32>
    %445 = tpu.matmul %442, %265, %cst_115 {dimension_numbers = #tpu.dot_dimension_numbers<[1], [0], [0], [1], [0, 0, 1, 1], [], []>} : vector<8x128xf32>, vector<128x512xf32>, vector<8x512xf32> -> vector<8x512xf32>
    %446 = arith.addf %444, %445 : vector<8x512xf32>
    %447 = vector.extract_strided_slice %446 {offsets = [0, 0], sizes = [8, 128], strides = [1, 1]} : vector<8x512xf32> to vector<8x128xf32>
    %448 = arith.negf %447 : vector<8x128xf32>
    %449 = math.exp %448 : vector<8x128xf32>
    %cst_116 = arith.constant 1.000000e+00 : f32
    %450 = vector.broadcast %cst_116 : f32 to vector<8x128xf32>
    %451 = arith.addf %450, %449 : vector<8x128xf32>
    %452 = arith.divf %450, %451 : vector<8x128xf32>
    %453 = vector.extract_strided_slice %446 {offsets = [0, 128], sizes = [8, 128], strides = [1, 1]} : vector<8x512xf32> to vector<8x128xf32>
    %454 = arith.negf %453 : vector<8x128xf32>
    %455 = math.exp %454 : vector<8x128xf32>
    %cst_117 = arith.constant 1.000000e+00 : f32
    %456 = vector.broadcast %cst_117 : f32 to vector<8x128xf32>
    %457 = arith.addf %456, %455 : vector<8x128xf32>
    %458 = arith.divf %456, %457 : vector<8x128xf32>
    %459 = vector.extract_strided_slice %446 {offsets = [0, 256], sizes = [8, 128], strides = [1, 1]} : vector<8x512xf32> to vector<8x128xf32>
    %460 = math.tanh %459 : vector<8x128xf32>
    %461 = vector.extract_strided_slice %446 {offsets = [0, 384], sizes = [8, 128], strides = [1, 1]} : vector<8x512xf32> to vector<8x128xf32>
    %462 = arith.negf %461 : vector<8x128xf32>
    %463 = math.exp %462 : vector<8x128xf32>
    %cst_118 = arith.constant 1.000000e+00 : f32
    %464 = vector.broadcast %cst_118 : f32 to vector<8x128xf32>
    %465 = arith.addf %464, %463 : vector<8x128xf32>
    %466 = arith.divf %464, %465 : vector<8x128xf32>
    %467 = arith.mulf %458, %440 : vector<8x128xf32>
    %468 = arith.mulf %452, %460 : vector<8x128xf32>
    %469 = arith.addf %467, %468 : vector<8x128xf32>
    %470 = math.tanh %469 : vector<8x128xf32>
    %471 = arith.mulf %466, %470 : vector<8x128xf32>
    %c48_119 = arith.constant 48 : index
    %c0_120 = arith.constant 0 : index
    %472 = vector.load %arg12[%c48_119, %c0_120] : memref<64x128xf32, #tpu.memory_space<vmem>>, vector<8x128xf32>
    tpu.vector_store %arg12[%c48_119, %c0_120], %471 {strides = array<i32>} : memref<64x128xf32, #tpu.memory_space<vmem>>, vector<8x128xf32>,
    %473 = vector.extract_strided_slice %263 {offsets = [56, 0], sizes = [8, 512], strides = [1, 1]} : vector<64x512xf32> to vector<8x512xf32>
    %cst_121 = arith.constant dense<0.000000e+00> : vector<8x512xf32>
    %474 = tpu.matmul %471, %265, %cst_121 {dimension_numbers = #tpu.dot_dimension_numbers<[1], [0], [0], [1], [0, 0, 1, 1], [], []>} : vector<8x128xf32>, vector<128x512xf32>, vector<8x512xf32> -> vector<8x512xf32>
    %475 = arith.addf %473, %474 : vector<8x512xf32>
    %476 = vector.extract_strided_slice %475 {offsets = [0, 0], sizes = [8, 128], strides = [1, 1]} : vector<8x512xf32> to vector<8x128xf32>
    %477 = arith.negf %476 : vector<8x128xf32>
    %478 = math.exp %477 : vector<8x128xf32>
    %cst_122 = arith.constant 1.000000e+00 : f32
    %479 = vector.broadcast %cst_122 : f32 to vector<8x128xf32>
    %480 = arith.addf %479, %478 : vector<8x128xf32>
    %481 = arith.divf %479, %480 : vector<8x128xf32>
    %482 = vector.extract_strided_slice %475 {offsets = [0, 128], sizes = [8, 128], strides = [1, 1]} : vector<8x512xf32> to vector<8x128xf32>
    %483 = arith.negf %482 : vector<8x128xf32>
    %484 = math.exp %483 : vector<8x128xf32>
    %cst_123 = arith.constant 1.000000e+00 : f32
    %485 = vector.broadcast %cst_123 : f32 to vector<8x128xf32>
    %486 = arith.addf %485, %484 : vector<8x128xf32>
    %487 = arith.divf %485, %486 : vector<8x128xf32>
    %488 = vector.extract_strided_slice %475 {offsets = [0, 256], sizes = [8, 128], strides = [1, 1]} : vector<8x512xf32> to vector<8x128xf32>
    %489 = math.tanh %488 : vector<8x128xf32>
    %490 = vector.extract_strided_slice %475 {offsets = [0, 384], sizes = [8, 128], strides = [1, 1]} : vector<8x512xf32> to vector<8x128xf32>
    %491 = arith.negf %490 : vector<8x128xf32>
    %492 = math.exp %491 : vector<8x128xf32>
    %cst_124 = arith.constant 1.000000e+00 : f32
    %493 = vector.broadcast %cst_124 : f32 to vector<8x128xf32>
    %494 = arith.addf %493, %492 : vector<8x128xf32>
    %495 = arith.divf %493, %494 : vector<8x128xf32>
    %496 = arith.mulf %487, %469 : vector<8x128xf32>
    %497 = arith.mulf %481, %489 : vector<8x128xf32>
    %498 = arith.addf %496, %497 : vector<8x128xf32>
    %499 = math.tanh %498 : vector<8x128xf32>
    %500 = arith.mulf %495, %499 : vector<8x128xf32>
    %c56_125 = arith.constant 56 : index
    %c0_126 = arith.constant 0 : index
    %501 = vector.load %arg12[%c56_125, %c0_126] : memref<64x128xf32, #tpu.memory_space<vmem>>, vector<8x128xf32>
    tpu.vector_store %arg12[%c56_125, %c0_126], %500 {strides = array<i32>} : memref<64x128xf32, #tpu.memory_space<vmem>>, vector<8x128xf32>,
    %c1_127 = arith.constant 1 : index
    %c0_128 = arith.constant 0 : index
    %c0_129 = arith.constant 0 : index
    %502 = vector.load %arg10[%c1_127, %c0_128, %c0_129] : memref<2x8x128xf32, #tpu.memory_space<vmem>>, vector<1x8x128xf32>
    %503 = vector.shape_cast %502 : vector<1x8x128xf32> to vector<8x128xf32>
    %504 = vector.shape_cast %500 : vector<8x128xf32> to vector<1x8x128xf32>
    tpu.vector_store %arg10[%c1_127, %c0_128, %c0_129], %504 {strides = array<i32>} : memref<2x8x128xf32, #tpu.memory_space<vmem>>, vector<1x8x128xf32>,
    %c1_130 = arith.constant 1 : index
    %c0_131 = arith.constant 0 : index
    %c0_132 = arith.constant 0 : index
    %505 = vector.load %arg11[%c1_130, %c0_131, %c0_132] : memref<2x8x128xf32, #tpu.memory_space<vmem>>, vector<1x8x128xf32>
    %506 = vector.shape_cast %505 : vector<1x8x128xf32> to vector<8x128xf32>
    %507 = vector.shape_cast %498 : vector<8x128xf32> to vector<1x8x128xf32>
    tpu.vector_store %arg11[%c1_130, %c0_131, %c0_132], %507 {strides = array<i32>} : memref<2x8x128xf32, #tpu.memory_space<vmem>>, vector<1x8x128xf32>,
    %c0_133 = arith.constant 0 : index
    %c0_134 = arith.constant 0 : index
    %508 = vector.load %arg12[%c0_133, %c0_134] : memref<64x128xf32, #tpu.memory_space<vmem>>, vector<64x128xf32>
    %c0_135 = arith.constant 0 : index
    %c0_136 = arith.constant 0 : index
    %509 = vector.load %arg5[%c0_135, %c0_136] : memref<128x128xf32, #tpu.memory_space<vmem>>, vector<128x128xf32>
    %cst_137 = arith.constant dense<0.000000e+00> : vector<64x128xf32>
    %510 = tpu.matmul %508, %509, %cst_137 {dimension_numbers = #tpu.dot_dimension_numbers<[1], [0], [0], [1], [0, 0, 1, 1], [], []>} : vector<64x128xf32>, vector<128x128xf32>, vector<64x128xf32> -> vector<64x128xf32>
    %c0_138 = arith.constant 0 : index
    %c0_139 = arith.constant 0 : index
    %511 = vector.load %arg6[%c0_138, %c0_139] : memref<1x128xf32, #tpu.memory_space<vmem>>, vector<1x128xf32>
    %512 = vector.broadcast %511 : vector<1x128xf32> to vector<64x128xf32>
    %513 = arith.addf %510, %512 : vector<64x128xf32>
    %c0_140 = arith.constant 0 : index
    %c0_141 = arith.constant 0 : index
    %514 = vector.load %arg9[%c0_140, %c0_141] : memref<64x128xf32, #tpu.memory_space<vmem>>, vector<64x128xf32>
    tpu.vector_store %arg9[%c0_140, %c0_141], %513 {strides = array<i32>} : memref<64x128xf32, #tpu.memory_space<vmem>>, vector<64x128xf32>,
    return
  }
}

</mosaic_0001>

<llo_original>
// kernel: tpu_custom_call.1
$region0: #{tpu_custom_call.1}
  #allocation0 [shape = 'u32[]', space=smem, size = 0x4, offset = 0x4, fixed_abs, tag = 'smem constant byte address 0x4 - core index']
  #allocation1 [shape = 'u32[144,128]{1,0:T(1,128)}', space=vmem, size = 0x12000, scoped, tag = 'internal scratch']
  #allocation2 [shape = 'f32[64,128]{1,0:T(8,128)}', space=vmem, size = 0x8000, scoped, tag = 'scratch operand']
  %s0 = inlined_call_operand.vmem [shape: s32[64,1], index: 0, kind: input, shape index: {}]
  %s1 = inlined_call_operand.hbm [shape: f32[128,512], index: 1, kind: input, shape index: {}]
  %s2 = inlined_call_operand.hbm [shape: f32[1,128,512], index: 2, kind: input, shape index: {}]
  %s3 = inlined_call_operand.hbm [shape: f32[2,128,512], index: 3, kind: input, shape index: {}]
  %s4 = inlined_call_operand.vmem [shape: f32[2,1,512], index: 4, kind: input, shape index: {}]
  %s5 = inlined_call_operand.hbm [shape: f32[128,128], index: 5, kind: input, shape index: {}]
  %s6 = inlined_call_operand.vmem [shape: f32[1,128], index: 6, kind: input, shape index: {}]
  %s7 = inlined_call_operand.vmem [shape: f32[2,8,128], index: 7, kind: input, shape index: {}]
  %s8 = inlined_call_operand.vmem [shape: f32[2,8,128], index: 8, kind: input, shape index: {}]
  %s9 = inlined_call_operand.hbm [shape: f32[64,128], index: 9, kind: output, shape index: {0}]
  %s10 = inlined_call_operand.hbm [shape: f32[2,8,128], index: 10, kind: output, shape index: {1}]
  %s11 = inlined_call_operand.hbm [shape: f32[2,8,128], index: 11, kind: output, shape index: {2}]
  %12 = xla_tuple %s9, %s10, %s11
  %s13 = sld [smem:[#allocation0]]
  $region78: #{tpu_custom_call.1} parent=0
    _
  %s15 = ssub.s32 1, %s13
  %s16 = scalar_select 0, %s15, %s13
  $region1: #{tpu_custom_call.1} parent=0
    #allocation3 [shape = 'u8[262144]{0}', space=vmem, size = 0x40000, scoped, tag = 'input window, operand 1, single buffered']
    #allocation4 [shape = 's32[1]{0}', space=sflag, size = 0x4, scoped, tag = 'scoped memory for tpu_custom_call.1']
    #allocation5 [shape = 's32[1]{0}', space=sflag, size = 0x4, scoped, tag = 'scoped memory for tpu_custom_call.1']
    #allocation6 [shape = 'u8[262144]{0}', space=vmem, size = 0x40000, scoped, tag = 'input window, operand 2, single buffered']
    #allocation7 [shape = 's32[1]{0}', space=sflag, size = 0x4, scoped, tag = 'scoped memory for tpu_custom_call.1']
    #allocation8 [shape = 'u8[524288]{0}', space=vmem, size = 0x80000, scoped, tag = 'input window, operand 3, single buffered']
    #allocation9 [shape = 'u8[65536]{0}', space=vmem, size = 0x10000, scoped, tag = 'input window, operand 5, single buffered']
    #allocation10 [shape = 's32[1]{0}', space=sflag, size = 0x4, scoped, tag = 'scoped memory for tpu_custom_call.1']
    #allocation11 [shape = 'u8[32768]{0}', space=vmem, size = 0x8000, scoped, tag = 'output window, operand 0, single buffered']
    #allocation12 [shape = 'u8[8192]{0}', space=vmem, size = 0x2000, scoped, tag = 'output window, operand 1, single buffered']
    #allocation13 [shape = 's32[1]{0}', space=sflag, size = 0x4, scoped, tag = 'scoped memory for tpu_custom_call.1']
    #allocation14 [shape = 'u8[8192]{0}', space=vmem, size = 0x2000, scoped, tag = 'output window, operand 2, single buffered']
    %17 = vsyncpa [#allocation4], 0
    %18 = vsyncpa [#allocation7], 0
    %19 = vsyncpa [#allocation10], 0
    %20 = vsyncpa [#allocation5], 0
    %21 = vsyncpa [#allocation13], 0
    // Predicated region
    $region2: #{tpu_custom_call.1} parent=1 // pred_check
      _
    $region3: #{tpu_custom_call.1} parent=1 // pred_check_branch
      %23 = sbr.rel (0) target = $region5
    $region4: #{tpu_custom_call.1} parent=1 // pred_region
      _
    $region5: #{tpu_custom_call.1} parent=1 // pred_fallthru
      _
    // Predicated region
    $region6: #{tpu_custom_call.1} parent=1 // pred_check
      _
    $region7: #{tpu_custom_call.1} parent=1 // pred_check_branch
      %25 = sbr.rel (0) target = $region9
    $region8: #{tpu_custom_call.1} parent=1 // pred_region
      %s27 = ssub.s32 8192, 8192
      %28 = vsyncadd [#allocation4], %s27
      %s29 = sshll.u32 [#allocation3], 4
      %s30 = int_to_ptr.vmem [resolvable:$true] %s29
      %35 = dma.hbm_to_vmem [thread:$0]  %s1, 8192, %s30, [#allocation4], 512, 512, 32
    $region9: #{tpu_custom_call.1} parent=1 // pred_fallthru
      _
    // Predicated region
    $region10: #{tpu_custom_call.1} parent=1 // pred_check
      _
    $region11: #{tpu_custom_call.1} parent=1 // pred_check_branch
      %37 = sbr.rel (0) target = $region13
    $region12: #{tpu_custom_call.1} parent=1 // pred_region
      %s39 = ssub.s32 8192, 8192
      %40 = vsyncadd [#allocation7], %s39
      %s41 = sshll.u32 [#allocation6], 4
      %s42 = int_to_ptr.vmem [resolvable:$true] %s41
      %47 = dma.hbm_to_vmem [thread:$0]  %s2, 8192, %s42, [#allocation7], 512, 512, 32
    $region13: #{tpu_custom_call.1} parent=1 // pred_fallthru
      _
    // Predicated region
    $region14: #{tpu_custom_call.1} parent=1 // pred_check
      _
    $region15: #{tpu_custom_call.1} parent=1 // pred_check_branch
      %49 = sbr.rel (0) target = $region17
    $region16: #{tpu_custom_call.1} parent=1 // pred_region
      %s51 = ssub.s32 16384, 16384
      %52 = vsyncadd [#allocation7], %s51
      %s53 = sshll.u32 [#allocation8], 4
      %s54 = int_to_ptr.vmem [resolvable:$true] %s53
      %59 = dma.hbm_to_vmem [thread:$0]  %s3, 16384, %s54, [#allocation7], 512, 512, 32
    $region17: #{tpu_custom_call.1} parent=1 // pred_fallthru
      _
    // Predicated region
    $region18: #{tpu_custom_call.1} parent=1 // pred_check
      _
    $region19: #{tpu_custom_call.1} parent=1 // pred_check_branch
      %61 = sbr.rel (0) target = $region21
    $region20: #{tpu_custom_call.1} parent=1 // pred_region
      _
    $region21: #{tpu_custom_call.1} parent=1 // pred_fallthru
      _
    // Predicated region
    $region22: #{tpu_custom_call.1} parent=1 // pred_check
      _
    $region23: #{tpu_custom_call.1} parent=1 // pred_check_branch
      %63 = sbr.rel (0) target = $region25
    $region24: #{tpu_custom_call.1} parent=1 // pred_region
      %s65 = ssub.s32 2048, 2048
      %66 = vsyncadd [#allocation10], %s65
      %s67 = sshll.u32 [#allocation9], 4
      %s68 = int_to_ptr.vmem [resolvable:$true] %s67
      %73 = dma.hbm_to_vmem [thread:$0]  %s5, 2048, %s68, [#allocation10], 128, 128, 8
    $region25: #{tpu_custom_call.1} parent=1 // pred_fallthru
      _
    // Predicated region
    $region26: #{tpu_custom_call.1} parent=1 // pred_check
      _
    $region27: #{tpu_custom_call.1} parent=1 // pred_check_branch
      %75 = sbr.rel (0) target = $region29
    $region28: #{tpu_custom_call.1} parent=1 // pred_region
      _
    $region29: #{tpu_custom_call.1} parent=1 // pred_fallthru
      _
    // Predicated region
    $region30: #{tpu_custom_call.1} parent=1 // pred_check
      _
    $region31: #{tpu_custom_call.1} parent=1 // pred_check_branch
      %77 = sbr.rel (0) target = $region33
    $region32: #{tpu_custom_call.1} parent=1 // pred_region
      _
    $region33: #{tpu_custom_call.1} parent=1 // pred_fallthru
      _
    // Predicated region
    $region34: #{tpu_custom_call.1} parent=1 // pred_check
      _
    $region35: #{tpu_custom_call.1} parent=1 // pred_check_branch
      %79 = sbr.rel (0) target = $region37
    $region36: #{tpu_custom_call.1} parent=1 // pred_region
      _
    $region37: #{tpu_custom_call.1} parent=1 // pred_fallthru
      _
    // Predicated region
    $region38: #{tpu_custom_call.1} parent=1 // pred_check
      _
    $region39: #{tpu_custom_call.1} parent=1 // pred_check_branch
      %81 = sbr.rel (0) target = $region41
    $region40: #{tpu_custom_call.1} parent=1 // pred_region
      %82 = dma.done [#allocation4], 8192
    $region41: #{tpu_custom_call.1} parent=1 // pred_fallthru
      _
    // Predicated region
    $region42: #{tpu_custom_call.1} parent=1 // pred_check
      _
    $region43: #{tpu_custom_call.1} parent=1 // pred_check_branch
      %84 = sbr.rel (0) target = $region45
    $region44: #{tpu_custom_call.1} parent=1 // pred_region
      %85 = dma.done [#allocation7], 8192
    $region45: #{tpu_custom_call.1} parent=1 // pred_fallthru
      _
    // Predicated region
    $region46: #{tpu_custom_call.1} parent=1 // pred_check
      _
    $region47: #{tpu_custom_call.1} parent=1 // pred_check_branch
      %87 = sbr.rel (0) target = $region49
    $region48: #{tpu_custom_call.1} parent=1 // pred_region
      %88 = dma.done [#allocation7], 16384
    $region49: #{tpu_custom_call.1} parent=1 // pred_fallthru
      _
    // Predicated region
    $region50: #{tpu_custom_call.1} parent=1 // pred_check
      _
    $region51: #{tpu_custom_call.1} parent=1 // pred_check_branch
      %90 = sbr.rel (0) target = $region53
    $region52: #{tpu_custom_call.1} parent=1 // pred_region
      %91 = dma.done [#allocation10], 2048
    $region53: #{tpu_custom_call.1} parent=1 // pred_fallthru
      _
    %v92 = vld [vmem:[%s0] sm:$0xff]
    %v93 = vld [vmem:[%s0 + $0x8] sm:$0xff]
    %v94 = vld [vmem:[%s0 + $0x10] sm:$0xff]
    %v95 = vld [vmem:[%s0 + $0x18] sm:$0xff]
    %v96 = vld [vmem:[%s0 + $0x20] sm:$0xff]
    %v97 = vld [vmem:[%s0 + $0x28] sm:$0xff]
    %v98 = vld [vmem:[%s0 + $0x30] sm:$0xff]
    %v99 = vld [vmem:[%s0 + $0x38] sm:$0xff]
    %v100 = vlaneseq
    %v101 = vand.u32 %v100, 127
    %102 = vset.pattern.permute.xlu0 0
    %103 = vperm.xlu0 %102, %v92
    %v104 = vpop.permute.xlu0 %103
    %105 = vset.pattern.permute.xlu0 0
    %106 = vperm.xlu0 %105, %v93
    %v107 = vpop.permute.xlu0 %106
    %108 = vset.pattern.permute.xlu0 0
    %109 = vperm.xlu0 %108, %v94
    %v110 = vpop.permute.xlu0 %109
    %111 = vset.pattern.permute.xlu0 0
    %112 = vperm.xlu0 %111, %v95
    %v113 = vpop.permute.xlu0 %112
    %114 = vset.pattern.permute.xlu0 0
    %115 = vperm.xlu0 %114, %v96
    %v116 = vpop.permute.xlu0 %115
    %117 = vset.pattern.permute.xlu0 0
    %118 = vperm.xlu0 %117, %v97
    %v119 = vpop.permute.xlu0 %118
    %120 = vset.pattern.permute.xlu0 0
    %121 = vperm.xlu0 %120, %v98
    %v122 = vpop.permute.xlu0 %121
    %123 = vset.pattern.permute.xlu0 0
    %124 = vperm.xlu0 %123, %v99
    %v125 = vpop.permute.xlu0 %124
    %vm126 = vcmp.eq.s32.totalorder %v104, %v101
    %vm127 = vcmp.eq.s32.totalorder %v107, %v101
    %vm128 = vcmp.eq.s32.totalorder %v110, %v101
    %vm129 = vcmp.eq.s32.totalorder %v113, %v101
    %vm130 = vcmp.eq.s32.totalorder %v116, %v101
    %vm131 = vcmp.eq.s32.totalorder %v119, %v101
    %vm132 = vcmp.eq.s32.totalorder %v122, %v101
    %vm133 = vcmp.eq.s32.totalorder %v125, %v101
    %v134 = vsel %vm126, 1, 0
    %v135 = vsel %vm127, 1, 0
    %v136 = vsel %vm128, 1, 0
    %v137 = vsel %vm129, 1, 0
    %v138 = vsel %vm130, 1, 0
    %v139 = vsel %vm131, 1, 0
    %v140 = vsel %vm132, 1, 0
    %v141 = vsel %vm133, 1, 0
    %v142 = vcvt.s32.f32 %v134
    %v143 = vcvt.s32.f32 %v135
    %v144 = vcvt.s32.f32 %v136
    %v145 = vcvt.s32.f32 %v137
    %v146 = vcvt.s32.f32 %v138
    %v147 = vcvt.s32.f32 %v139
    %v148 = vcvt.s32.f32 %v140
    %v149 = vcvt.s32.f32 %v141
    %v150 = vld [vmem:[#allocation3] sm:$0xff]
    %v151 = vld [vmem:[#allocation3 + $0x8] sm:$0xff]
    %v152 = vld [vmem:[#allocation3 + $0x10] sm:$0xff]
    %v153 = vld [vmem:[#allocation3 + $0x18] sm:$0xff]
    %v154 = vld [vmem:[#allocation3 + $0x20] sm:$0xff]
    %v155 = vld [vmem:[#allocation3 + $0x28] sm:$0xff]
    %v156 = vld [vmem:[#allocation3 + $0x30] sm:$0xff]
    %v157 = vld [vmem:[#allocation3 + $0x38] sm:$0xff]
    %v158 = vld [vmem:[#allocation3 + $0x40] sm:$0xff]
    %v159 = vld [vmem:[#allocation3 + $0x48] sm:$0xff]
    %v160 = vld [vmem:[#allocation3 + $0x50] sm:$0xff]
    %v161 = vld [vmem:[#allocation3 + $0x58] sm:$0xff]
    %v162 = vld [vmem:[#allocation3 + $0x60] sm:$0xff]
    %v163 = vld [vmem:[#allocation3 + $0x68] sm:$0xff]
    %v164 = vld [vmem:[#allocation3 + $0x70] sm:$0xff]
    %v165 = vld [vmem:[#allocation3 + $0x78] sm:$0xff]
    %v166 = vld [vmem:[#allocation3 + $0x80] sm:$0xff]
    %v167 = vld [vmem:[#allocation3 + $0x88] sm:$0xff]
    %v168 = vld [vmem:[#allocation3 + $0x90] sm:$0xff]
    %v169 = vld [vmem:[#allocation3 + $0x98] sm:$0xff]
    %v170 = vld [vmem:[#allocation3 + $0xa0] sm:$0xff]
    %v171 = vld [vmem:[#allocation3 + $0xa8] sm:$0xff]
    %v172 = vld [vmem:[#allocation3 + $0xb0] sm:$0xff]
    %v173 = vld [vmem:[#allocation3 + $0xb8] sm:$0xff]
    %v174 = vld [vmem:[#allocation3 + $0xc0] sm:$0xff]
    %v175 = vld [vmem:[#allocation3 + $0xc8] sm:$0xff]
    %v176 = vld [vmem:[#allocation3 + $0xd0] sm:$0xff]
    %v177 = vld [vmem:[#allocation3 + $0xd8] sm:$0xff]
    %v178 = vld [vmem:[#allocation3 + $0xe0] sm:$0xff]
    %v179 = vld [vmem:[#allocation3 + $0xe8] sm:$0xff]
    %v180 = vld [vmem:[#allocation3 + $0xf0] sm:$0xff]
    %v181 = vld [vmem:[#allocation3 + $0xf8] sm:$0xff]
    %v182 = vld [vmem:[#allocation3 + $0x100] sm:$0xff]
    %v183 = vld [vmem:[#allocation3 + $0x108] sm:$0xff]
    %v184 = vld [vmem:[#allocation3 + $0x110] sm:$0xff]
    %v185 = vld [vmem:[#allocation3 + $0x118] sm:$0xff]
    %v186 = vld [vmem:[#allocation3 + $0x120] sm:$0xff]
    %v187 = vld [vmem:[#allocation3 + $0x128] sm:$0xff]
    %v188 = vld [vmem:[#allocation3 + $0x130] sm:$0xff]
    %v189 = vld [vmem:[#allocation3 + $0x138] sm:$0xff]
    %v190 = vld [vmem:[#allocation3 + $0x140] sm:$0xff]
    %v191 = vld [vmem:[#allocation3 + $0x148] sm:$0xff]
    %v192 = vld [vmem:[#allocation3 + $0x150] sm:$0xff]
    %v193 = vld [vmem:[#allocation3 + $0x158] sm:$0xff]
    %v194 = vld [vmem:[#allocation3 + $0x160] sm:$0xff]
    %v195 = vld [vmem:[#allocation3 + $0x168] sm:$0xff]
    %v196 = vld [vmem:[#allocation3 + $0x170] sm:$0xff]
    %v197 = vld [vmem:[#allocation3 + $0x178] sm:$0xff]
    %v198 = vld [vmem:[#allocation3 + $0x180] sm:$0xff]
    %v199 = vld [vmem:[#allocation3 + $0x188] sm:$0xff]
    %v200 = vld [vmem:[#allocation3 + $0x190] sm:$0xff]
    %v201 = vld [vmem:[#allocation3 + $0x198] sm:$0xff]
    %v202 = vld [vmem:[#allocation3 + $0x1a0] sm:$0xff]
    %v203 = vld [vmem:[#allocation3 + $0x1a8] sm:$0xff]
    %v204 = vld [vmem:[#allocation3 + $0x1b0] sm:$0xff]
    %v205 = vld [vmem:[#allocation3 + $0x1b8] sm:$0xff]
    %v206 = vld [vmem:[#allocation3 + $0x1c0] sm:$0xff]
    %v207 = vld [vmem:[#allocation3 + $0x1c8] sm:$0xff]
    %v208 = vld [vmem:[#allocation3 + $0x1d0] sm:$0xff]
    %v209 = vld [vmem:[#allocation3 + $0x1d8] sm:$0xff]
    %v210 = vld [vmem:[#allocation3 + $0x1e0] sm:$0xff]
    %v211 = vld [vmem:[#allocation3 + $0x1e8] sm:$0xff]
    %v212 = vld [vmem:[#allocation3 + $0x1f0] sm:$0xff]
    %v213 = vld [vmem:[#allocation3 + $0x1f8] sm:$0xff]
    %v214 = vld [vmem:[%s4] sm:$0xf]
    %v216 = vlaneseq
    %v217 = vshrl.u32 %v216, 7
    %v218 = vsub.s32 0, %v217
    %v219 = vrot.slane %v214, %v218
    %v220 = vlaneseq
    %v221 = vshrl.u32 %v220, 7
    %v222 = vsub.s32 1, %v221
    %v223 = vrot.slane %v214, %v222
    %v224 = vlaneseq
    %v225 = vshrl.u32 %v224, 7
    %v226 = vsub.s32 2, %v225
    %v227 = vrot.slane %v214, %v226
    %v228 = vlaneseq
    %v229 = vshrl.u32 %v228, 7
    %v230 = vsub.s32 3, %v229
    %v231 = vrot.slane %v214, %v230
    %236 = vmatprep.subr.mxu0 %v211
    %237 = vmatpush1.msra.mxu0 %v210
    %238 = vmatprep.subr.mxu0 %v207
    %239 = vmatpush1.msra.mxu0 %v206
    %240 = vmatprep.subr.mxu0 %v203
    %241 = vmatpush1.msra.mxu0 %v202
    %242 = vmatprep.subr.mxu0 %v199
    %243 = vmatpush1.msra.mxu0 %v198
    %244 = vmatprep.subr.mxu0 %v195
    %245 = vmatpush1.msra.mxu0 %v194
    %246 = vmatprep.subr.mxu0 %v191
    %247 = vmatpush1.msra.mxu0 %v190
    %248 = vmatprep.subr.mxu0 %v187
    %249 = vmatpush1.msra.mxu0 %v186
    %250 = vmatprep.subr.mxu0 %v183
    %251 = vmatpush1.msra.mxu0 %v182
    %252 = vmatprep.subr.mxu0 %v179
    %253 = vmatpush1.msra.mxu0 %v178
    %254 = vmatprep.subr.mxu0 %v175
    %255 = vmatpush1.msra.mxu0 %v174
    %256 = vmatprep.subr.mxu0 %v171
    %257 = vmatpush1.msra.mxu0 %v170
    %258 = vmatprep.subr.mxu0 %v167
    %259 = vmatpush1.msra.mxu0 %v166
    %260 = vmatprep.subr.mxu0 %v163
    %261 = vmatpush1.msra.mxu0 %v162
    %262 = vmatprep.subr.mxu0 %v159
    %263 = vmatpush1.msra.mxu0 %v158
    %264 = vmatprep.subr.mxu0 %v155
    %265 = vmatpush1.msra.mxu0 %v154
    %266 = vmatprep.subr.mxu0 %v151
    %267 = vmatpush1.msra.mxu0 %v150
    %268 = vmatprep.subr.mxu0 0.0
    %269 = vmatpush2.msra.mxu0 0.0
    %270 = vmatprep.subr.mxu0 0.0
    %271 = vmatpush2.msra.mxu0 0.0
    %272 = vmatprep.subr.mxu0 0.0
    %273 = vmatpush2.msra.mxu0 0.0
    %274 = vmatprep.subr.mxu0 0.0
    %275 = vmatpush2.msra.mxu0 0.0
    %276 = vmatprep.subr.mxu0 0.0
    %277 = vmatpush2.msra.mxu0 0.0
    %278 = vmatprep.subr.mxu0 0.0
    %279 = vmatpush2.msra.mxu0 0.0
    %280 = vmatprep.subr.mxu0 0.0
    %281 = vmatpush2.msra.mxu0 0.0
    %282 = vmatprep.subr.mxu0 0.0
    %283 = vmatpush2.msra.mxu0 0.0
    %284 = vmatprep.subr.mxu0 0.0
    %285 = vmatpush2.msra.mxu0 0.0
    %286 = vmatprep.subr.mxu0 0.0
    %287 = vmatpush2.msra.mxu0 0.0
    %288 = vmatprep.subr.mxu0 0.0
    %289 = vmatpush2.msra.mxu0 0.0
    %290 = vmatprep.subr.mxu0 0.0
    %291 = vmatpush2.msra.mxu0 0.0
    %292 = vmatprep.subr.mxu0 0.0
    %293 = vmatpush2.msra.mxu0 0.0
    %294 = vmatprep.subr.mxu0 0.0
    %295 = vmatpush2.msra.mxu0 0.0
    %296 = vmatprep.subr.mxu0 0.0
    %297 = vmatpush2.msra.mxu0 0.0
    %298 = vmatprep.subr.mxu0 0.0
    %299 = vmatpush2.msra.mxu0 0.0
    %300 = vmatprep.mubr.f32.mxu0 0.0
    %301 = vmatmul.mubr.f32.gmra.mxu0 %v142
    %v302 = vpop.f32.mrf.mxu0
    %v303 = vadd.f32 %v219, %v302
    %v304 = vpop.f32.mrf.mxu0
    %v305 = vadd.f32 %v223, %v304
    %306 = vmatprep.mubr.f32.mxu0 0.0
    %307 = vmatmul.mubr.f32.gmra.mxu0 %v143
    %v308 = vpop.f32.mrf.mxu0
    %v309 = vadd.f32 %v219, %v308
    %v310 = vpop.f32.mrf.mxu0
    %v311 = vadd.f32 %v223, %v310
    %312 = vmatprep.mubr.f32.mxu0 0.0
    %313 = vmatmul.mubr.f32.gmra.mxu0 %v144
    %v314 = vpop.f32.mrf.mxu0
    %v315 = vadd.f32 %v219, %v314
    %v316 = vpop.f32.mrf.mxu0
    %v317 = vadd.f32 %v223, %v316
    %318 = vmatprep.mubr.f32.mxu0 0.0
    %319 = vmatmul.mubr.f32.gmra.mxu0 %v145
    %v320 = vpop.f32.mrf.mxu0
    %v321 = vadd.f32 %v219, %v320
    %v322 = vpop.f32.mrf.mxu0
    %v323 = vadd.f32 %v223, %v322
    %324 = vmatprep.mubr.f32.mxu0 0.0
    %325 = vmatmul.mubr.f32.gmra.mxu0 %v146
    %v326 = vpop.f32.mrf.mxu0
    %v327 = vadd.f32 %v219, %v326
    %v328 = vpop.f32.mrf.mxu0
    %v329 = vadd.f32 %v223, %v328
    %330 = vmatprep.mubr.f32.mxu0 0.0
    %331 = vmatmul.mubr.f32.gmra.mxu0 %v147
    %v332 = vpop.f32.mrf.mxu0
    %v333 = vadd.f32 %v219, %v332
    %v334 = vpop.f32.mrf.mxu0
    %v335 = vadd.f32 %v223, %v334
    %336 = vmatprep.mubr.f32.mxu0 0.0
    %337 = vmatmul.mubr.f32.gmra.mxu0 %v148
    %v338 = vpop.f32.mrf.mxu0
    %v339 = vadd.f32 %v219, %v338
    %v340 = vpop.f32.mrf.mxu0
    %v341 = vadd.f32 %v223, %v340
    %342 = vmatprep.mubr.f32.mxu0 0.0
    %343 = vmatmul.mubr.f32.gmra.mxu0 %v149
    %v344 = vpop.f32.mrf.mxu0
    %v345 = vadd.f32 %v219, %v344
    %v346 = vpop.f32.mrf.mxu0
    %v347 = vadd.f32 %v223, %v346
    %348 = vdwg.mxu0
    %349 = vmatprep.subr.mxu0 %v213
    %350 = vmatpush1.msra.mxu0 %v212
    %351 = vmatprep.subr.mxu0 %v209
    %352 = vmatpush1.msra.mxu0 %v208
    %353 = vmatprep.subr.mxu0 %v205
    %354 = vmatpush1.msra.mxu0 %v204
    %355 = vmatprep.subr.mxu0 %v201
    %356 = vmatpush1.msra.mxu0 %v200
    %357 = vmatprep.subr.mxu0 %v197
    %358 = vmatpush1.msra.mxu0 %v196
    %359 = vmatprep.subr.mxu0 %v193
    %360 = vmatpush1.msra.mxu0 %v192
    %361 = vmatprep.subr.mxu0 %v189
    %362 = vmatpush1.msra.mxu0 %v188
    %363 = vmatprep.subr.mxu0 %v185
    %364 = vmatpush1.msra.mxu0 %v184
    %365 = vmatprep.subr.mxu0 %v181
    %366 = vmatpush1.msra.mxu0 %v180
    %367 = vmatprep.subr.mxu0 %v177
    %368 = vmatpush1.msra.mxu0 %v176
    %369 = vmatprep.subr.mxu0 %v173
    %370 = vmatpush1.msra.mxu0 %v172
    %371 = vmatprep.subr.mxu0 %v169
    %372 = vmatpush1.msra.mxu0 %v168
    %373 = vmatprep.subr.mxu0 %v165
    %374 = vmatpush1.msra.mxu0 %v164
    %375 = vmatprep.subr.mxu0 %v161
    %376 = vmatpush1.msra.mxu0 %v160
    %377 = vmatprep.subr.mxu0 %v157
    %378 = vmatpush1.msra.mxu0 %v156
    %379 = vmatprep.subr.mxu0 %v153
    %380 = vmatpush1.msra.mxu0 %v152
    %381 = vmatprep.subr.mxu0 0.0
    %382 = vmatpush2.msra.mxu0 0.0
    %383 = vmatprep.subr.mxu0 0.0
    %384 = vmatpush2.msra.mxu0 0.0
    %385 = vmatprep.subr.mxu0 0.0
    %386 = vmatpush2.msra.mxu0 0.0
    %387 = vmatprep.subr.mxu0 0.0
    %388 = vmatpush2.msra.mxu0 0.0
    %389 = vmatprep.subr.mxu0 0.0
    %390 = vmatpush2.msra.mxu0 0.0
    %391 = vmatprep.subr.mxu0 0.0
    %392 = vmatpush2.msra.mxu0 0.0
    %393 = vmatprep.subr.mxu0 0.0
    %394 = vmatpush2.msra.mxu0 0.0
    %395 = vmatprep.subr.mxu0 0.0
    %396 = vmatpush2.msra.mxu0 0.0
    %397 = vmatprep.subr.mxu0 0.0
    %398 = vmatpush2.msra.mxu0 0.0
    %399 = vmatprep.subr.mxu0 0.0
    %400 = vmatpush2.msra.mxu0 0.0
    %401 = vmatprep.subr.mxu0 0.0
    %402 = vmatpush2.msra.mxu0 0.0
    %403 = vmatprep.subr.mxu0 0.0
    %404 = vmatpush2.msra.mxu0 0.0
    %405 = vmatprep.subr.mxu0 0.0
    %406 = vmatpush2.msra.mxu0 0.0
    %407 = vmatprep.subr.mxu0 0.0
    %408 = vmatpush2.msra.mxu0 0.0
    %409 = vmatprep.subr.mxu0 0.0
    %410 = vmatpush2.msra.mxu0 0.0
    %411 = vmatprep.subr.mxu0 0.0
    %412 = vmatpush2.msra.mxu0 0.0
    %413 = vmatprep.mubr.f32.mxu0 0.0
    %414 = vmatmul.mubr.f32.gmra.mxu0 %v142
    %v415 = vpop.f32.mrf.mxu0
    %v416 = vadd.f32 %v227, %v415
    %v417 = vpop.f32.mrf.mxu0
    %v418 = vadd.f32 %v231, %v417
    %419 = vmatprep.mubr.f32.mxu0 0.0
    %420 = vmatmul.mubr.f32.gmra.mxu0 %v143
    %v421 = vpop.f32.mrf.mxu0
    %v422 = vadd.f32 %v227, %v421
    %v423 = vpop.f32.mrf.mxu0
    %v424 = vadd.f32 %v231, %v423
    %425 = vmatprep.mubr.f32.mxu0 0.0
    %426 = vmatmul.mubr.f32.gmra.mxu0 %v144
    %v427 = vpop.f32.mrf.mxu0
    %v428 = vadd.f32 %v227, %v427
    %v429 = vpop.f32.mrf.mxu0
    %v430 = vadd.f32 %v231, %v429
    %431 = vmatprep.mubr.f32.mxu0 0.0
    %432 = vmatmul.mubr.f32.gmra.mxu0 %v145
    %v433 = vpop.f32.mrf.mxu0
    %v434 = vadd.f32 %v227, %v433
    %v435 = vpop.f32.mrf.mxu0
    %v436 = vadd.f32 %v231, %v435
    %437 = vmatprep.mubr.f32.mxu0 0.0
    %438 = vmatmul.mubr.f32.gmra.mxu0 %v146
    %v439 = vpop.f32.mrf.mxu0
    %v440 = vadd.f32 %v227, %v439
    %v441 = vpop.f32.mrf.mxu0
    %v442 = vadd.f32 %v231, %v441
    %443 = vmatprep.mubr.f32.mxu0 0.0
    %444 = vmatmul.mubr.f32.gmra.mxu0 %v147
    %v445 = vpop.f32.mrf.mxu0
    %v446 = vadd.f32 %v227, %v445
    %v447 = vpop.f32.mrf.mxu0
    %v448 = vadd.f32 %v231, %v447
    %449 = vmatprep.mubr.f32.mxu0 0.0
    %450 = vmatmul.mubr.f32.gmra.mxu0 %v148
    %v451 = vpop.f32.mrf.mxu0
    %v452 = vadd.f32 %v227, %v451
    %v453 = vpop.f32.mrf.mxu0
    %v454 = vadd.f32 %v231, %v453
    %455 = vmatprep.mubr.f32.mxu0 0.0
    %456 = vmatmul.mubr.f32.gmra.mxu0 %v149
    %v457 = vpop.f32.mrf.mxu0
    %v458 = vadd.f32 %v227, %v457
    %v459 = vpop.f32.mrf.mxu0
    %v460 = vadd.f32 %v231, %v459
    %461 = vdwg.mxu0
    %v462 = vld [vmem:[#allocation8] sm:$0xff]
    %v463 = vld [vmem:[#allocation8 + $0x8] sm:$0xff]
    %v464 = vld [vmem:[#allocation8 + $0x10] sm:$0xff]
    %v465 = vld [vmem:[#allocation8 + $0x18] sm:$0xff]
    %v466 = vld [vmem:[#allocation8 + $0x20] sm:$0xff]
    %v467 = vld [vmem:[#allocation8 + $0x28] sm:$0xff]
    %v468 = vld [vmem:[#allocation8 + $0x30] sm:$0xff]
    %v469 = vld [vmem:[#allocation8 + $0x38] sm:$0xff]
    %v470 = vld [vmem:[#allocation8 + $0x40] sm:$0xff]
    %v471 = vld [vmem:[#allocation8 + $0x48] sm:$0xff]
    %v472 = vld [vmem:[#allocation8 + $0x50] sm:$0xff]
    %v473 = vld [vmem:[#allocation8 + $0x58] sm:$0xff]
    %v474 = vld [vmem:[#allocation8 + $0x60] sm:$0xff]
    %v475 = vld [vmem:[#allocation8 + $0x68] sm:$0xff]
    %v476 = vld [vmem:[#allocation8 + $0x70] sm:$0xff]
    %v477 = vld [vmem:[#allocation8 + $0x78] sm:$0xff]
    %v478 = vld [vmem:[#allocation8 + $0x80] sm:$0xff]
    %v479 = vld [vmem:[#allocation8 + $0x88] sm:$0xff]
    %v480 = vld [vmem:[#allocation8 + $0x90] sm:$0xff]
    %v481 = vld [vmem:[#allocation8 + $0x98] sm:$0xff]
    %v482 = vld [vmem:[#allocation8 + $0xa0] sm:$0xff]
    %v483 = vld [vmem:[#allocation8 + $0xa8] sm:$0xff]
    %v484 = vld [vmem:[#allocation8 + $0xb0] sm:$0xff]
    %v485 = vld [vmem:[#allocation8 + $0xb8] sm:$0xff]
    %v486 = vld [vmem:[#allocation8 + $0xc0] sm:$0xff]
    %v487 = vld [vmem:[#allocation8 + $0xc8] sm:$0xff]
    %v488 = vld [vmem:[#allocation8 + $0xd0] sm:$0xff]
    %v489 = vld [vmem:[#allocation8 + $0xd8] sm:$0xff]
    %v490 = vld [vmem:[#allocation8 + $0xe0] sm:$0xff]
    %v491 = vld [vmem:[#allocation8 + $0xe8] sm:$0xff]
    %v492 = vld [vmem:[#allocation8 + $0xf0] sm:$0xff]
    %v493 = vld [vmem:[#allocation8 + $0xf8] sm:$0xff]
    %v494 = vld [vmem:[#allocation8 + $0x100] sm:$0xff]
    %v495 = vld [vmem:[#allocation8 + $0x108] sm:$0xff]
    %v496 = vld [vmem:[#allocation8 + $0x110] sm:$0xff]
    %v497 = vld [vmem:[#allocation8 + $0x118] sm:$0xff]
    %v498 = vld [vmem:[#allocation8 + $0x120] sm:$0xff]
    %v499 = vld [vmem:[#allocation8 + $0x128] sm:$0xff]
    %v500 = vld [vmem:[#allocation8 + $0x130] sm:$0xff]
    %v501 = vld [vmem:[#allocation8 + $0x138] sm:$0xff]
    %v502 = vld [vmem:[#allocation8 + $0x140] sm:$0xff]
    %v503 = vld [vmem:[#allocation8 + $0x148] sm:$0xff]
    %v504 = vld [vmem:[#allocation8 + $0x150] sm:$0xff]
    %v505 = vld [vmem:[#allocation8 + $0x158] sm:$0xff]
    %v506 = vld [vmem:[#allocation8 + $0x160] sm:$0xff]
    %v507 = vld [vmem:[#allocation8 + $0x168] sm:$0xff]
    %v508 = vld [vmem:[#allocation8 + $0x170] sm:$0xff]
    %v509 = vld [vmem:[#allocation8 + $0x178] sm:$0xff]
    %v510 = vld [vmem:[#allocation8 + $0x180] sm:$0xff]
    %v511 = vld [vmem:[#allocation8 + $0x188] sm:$0xff]
    %v512 = vld [vmem:[#allocation8 + $0x190] sm:$0xff]
    %v513 = vld [vmem:[#allocation8 + $0x198] sm:$0xff]
    %v514 = vld [vmem:[#allocation8 + $0x1a0] sm:$0xff]
    %v515 = vld [vmem:[#allocation8 + $0x1a8] sm:$0xff]
    %v516 = vld [vmem:[#allocation8 + $0x1b0] sm:$0xff]
    %v517 = vld [vmem:[#allocation8 + $0x1b8] sm:$0xff]
    %v518 = vld [vmem:[#allocation8 + $0x1c0] sm:$0xff]
    %v519 = vld [vmem:[#allocation8 + $0x1c8] sm:$0xff]
    %v520 = vld [vmem:[#allocation8 + $0x1d0] sm:$0xff]
    %v521 = vld [vmem:[#allocation8 + $0x1d8] sm:$0xff]
    %v522 = vld [vmem:[#allocation8 + $0x1e0] sm:$0xff]
    %v523 = vld [vmem:[#allocation8 + $0x1e8] sm:$0xff]
    %v524 = vld [vmem:[#allocation8 + $0x1f0] sm:$0xff]
    %v525 = vld [vmem:[#allocation8 + $0x1f8] sm:$0xff]
    %v526 = vld [vmem:[%s7] sm:$0xff]
    %v527 = vld [vmem:[%s8] sm:$0xff]
    %528 = vmatprep.subr.mxu0 %v523
    %529 = vmatpush1.msra.mxu0 %v522
    %530 = vmatprep.subr.mxu0 %v519
    %531 = vmatpush1.msra.mxu0 %v518
    %532 = vmatprep.subr.mxu0 %v515
    %533 = vmatpush1.msra.mxu0 %v514
    %534 = vmatprep.subr.mxu0 %v511
    %535 = vmatpush1.msra.mxu0 %v510
    %536 = vmatprep.subr.mxu0 %v507
    %537 = vmatpush1.msra.mxu0 %v506
    %538 = vmatprep.subr.mxu0 %v503
    %539 = vmatpush1.msra.mxu0 %v502
    %540 = vmatprep.subr.mxu0 %v499
    %541 = vmatpush1.msra.mxu0 %v498
    %542 = vmatprep.subr.mxu0 %v495
    %543 = vmatpush1.msra.mxu0 %v494
    %544 = vmatprep.subr.mxu0 %v491
    %545 = vmatpush1.msra.mxu0 %v490
    %546 = vmatprep.subr.mxu0 %v487
    %547 = vmatpush1.msra.mxu0 %v486
    %548 = vmatprep.subr.mxu0 %v483
    %549 = vmatpush1.msra.mxu0 %v482
    %550 = vmatprep.subr.mxu0 %v479
    %551 = vmatpush1.msra.mxu0 %v478
    %552 = vmatprep.subr.mxu0 %v475
    %553 = vmatpush1.msra.mxu0 %v474
    %554 = vmatprep.subr.mxu0 %v471
    %555 = vmatpush1.msra.mxu0 %v470
    %556 = vmatprep.subr.mxu0 %v467
    %557 = vmatpush1.msra.mxu0 %v466
    %558 = vmatprep.subr.mxu0 %v463
    %559 = vmatpush1.msra.mxu0 %v462
    %560 = vmatprep.subr.mxu0 0.0
    %561 = vmatpush2.msra.mxu0 0.0
    %562 = vmatprep.subr.mxu0 0.0
    %563 = vmatpush2.msra.mxu0 0.0
    %564 = vmatprep.subr.mxu0 0.0
    %565 = vmatpush2.msra.mxu0 0.0
    %566 = vmatprep.subr.mxu0 0.0
    %567 = vmatpush2.msra.mxu0 0.0
    %568 = vmatprep.subr.mxu0 0.0
    %569 = vmatpush2.msra.mxu0 0.0
    %570 = vmatprep.subr.mxu0 0.0
    %571 = vmatpush2.msra.mxu0 0.0
    %572 = vmatprep.subr.mxu0 0.0
    %573 = vmatpush2.msra.mxu0 0.0
    %574 = vmatprep.subr.mxu0 0.0
    %575 = vmatpush2.msra.mxu0 0.0
    %576 = vmatprep.subr.mxu0 0.0
    %577 = vmatpush2.msra.mxu0 0.0
    %578 = vmatprep.subr.mxu0 0.0
    %579 = vmatpush2.msra.mxu0 0.0
    %580 = vmatprep.subr.mxu0 0.0
    %581 = vmatpush2.msra.mxu0 0.0
    %582 = vmatprep.subr.mxu0 0.0
    %583 = vmatpush2.msra.mxu0 0.0
    %584 = vmatprep.subr.mxu0 0.0
    %585 = vmatpush2.msra.mxu0 0.0
    %586 = vmatprep.subr.mxu0 0.0
    %587 = vmatpush2.msra.mxu0 0.0
    %588 = vmatprep.subr.mxu0 0.0
    %589 = vmatpush2.msra.mxu0 0.0
    %590 = vmatprep.subr.mxu0 0.0
    %591 = vmatpush2.msra.mxu0 0.0
    %592 = vmatprep.mubr.f32.mxu0 0.0
    %593 = vmatmul.mubr.f32.gmra.mxu0 %v526
    %v594 = vpop.f32.mrf.mxu0
    %v595 = vadd.f32 0.0, %v594
    %v596 = vpop.f32.mrf.mxu0
    %v597 = vadd.f32 0.0, %v596
    %598 = vdwg.mxu0
    %599 = vmatprep.subr.mxu0 %v525
    %600 = vmatpush1.msra.mxu0 %v524
    %601 = vmatprep.subr.mxu0 %v521
    %602 = vmatpush1.msra.mxu0 %v520
    %603 = vmatprep.subr.mxu0 %v517
    %604 = vmatpush1.msra.mxu0 %v516
    %605 = vmatprep.subr.mxu0 %v513
    %606 = vmatpush1.msra.mxu0 %v512
    %607 = vmatprep.subr.mxu0 %v509
    %608 = vmatpush1.msra.mxu0 %v508
    %609 = vmatprep.subr.mxu0 %v505
    %610 = vmatpush1.msra.mxu0 %v504
    %611 = vmatprep.subr.mxu0 %v501
    %612 = vmatpush1.msra.mxu0 %v500
    %613 = vmatprep.subr.mxu0 %v497
    %614 = vmatpush1.msra.mxu0 %v496
    %615 = vmatprep.subr.mxu0 %v493
    %616 = vmatpush1.msra.mxu0 %v492
    %617 = vmatprep.subr.mxu0 %v489
    %618 = vmatpush1.msra.mxu0 %v488
    %619 = vmatprep.subr.mxu0 %v485
    %620 = vmatpush1.msra.mxu0 %v484
    %621 = vmatprep.subr.mxu0 %v481
    %622 = vmatpush1.msra.mxu0 %v480
    %623 = vmatprep.subr.mxu0 %v477
    %624 = vmatpush1.msra.mxu0 %v476
    %625 = vmatprep.subr.mxu0 %v473
    %626 = vmatpush1.msra.mxu0 %v472
    %627 = vmatprep.subr.mxu0 %v469
    %628 = vmatpush1.msra.mxu0 %v468
    %629 = vmatprep.subr.mxu0 %v465
    %630 = vmatpush1.msra.mxu0 %v464
    %631 = vmatprep.subr.mxu0 0.0
    %632 = vmatpush2.msra.mxu0 0.0
    %633 = vmatprep.subr.mxu0 0.0
    %634 = vmatpush2.msra.mxu0 0.0
    %635 = vmatprep.subr.mxu0 0.0
    %636 = vmatpush2.msra.mxu0 0.0
    %637 = vmatprep.subr.mxu0 0.0
    %638 = vmatpush2.msra.mxu0 0.0
    %639 = vmatprep.subr.mxu0 0.0
    %640 = vmatpush2.msra.mxu0 0.0
    %641 = vmatprep.subr.mxu0 0.0
    %642 = vmatpush2.msra.mxu0 0.0
    %643 = vmatprep.subr.mxu0 0.0
    %644 = vmatpush2.msra.mxu0 0.0
    %645 = vmatprep.subr.mxu0 0.0
    %646 = vmatpush2.msra.mxu0 0.0
    %647 = vmatprep.subr.mxu0 0.0
    %648 = vmatpush2.msra.mxu0 0.0
    %649 = vmatprep.subr.mxu0 0.0
    %650 = vmatpush2.msra.mxu0 0.0
    %651 = vmatprep.subr.mxu0 0.0
    %652 = vmatpush2.msra.mxu0 0.0
    %653 = vmatprep.subr.mxu0 0.0
    %654 = vmatpush2.msra.mxu0 0.0
    %655 = vmatprep.subr.mxu0 0.0
    %656 = vmatpush2.msra.mxu0 0.0
    %657 = vmatprep.subr.mxu0 0.0
    %658 = vmatpush2.msra.mxu0 0.0
    %659 = vmatprep.subr.mxu0 0.0
    %660 = vmatpush2.msra.mxu0 0.0
    %661 = vmatprep.subr.mxu0 0.0
    %662 = vmatpush2.msra.mxu0 0.0
    %663 = vmatprep.mubr.f32.mxu0 0.0
    %664 = vmatmul.mubr.f32.gmra.mxu0 %v526
    %v665 = vpop.f32.mrf.mxu0
    %v666 = vadd.f32 0.0, %v665
    %v667 = vpop.f32.mrf.mxu0
    %v668 = vadd.f32 0.0, %v667
    %669 = vdwg.mxu0
    %v670 = vadd.f32 %v303, %v595
    %v671 = vadd.f32 %v305, %v597
    %v672 = vadd.f32 %v416, %v666
    %v673 = vadd.f32 %v418, %v668
    %v674 = vxor.u32 %v670, 2147483648
    %v675 = vmul.f32 %v674, 1.442695
    %v676 = vpow.pop %v675
    %v677 = vadd.f32 %v676, 1.0
    %v678 = vrcp.pop %v677
    %v679 = vmul.f32 1.0, %v678
    %v680 = vxor.u32 %v671, 2147483648
    %v681 = vmul.f32 %v680, 1.442695
    %v682 = vpow.pop %v681
    %v683 = vadd.f32 %v682, 1.0
    %v684 = vrcp.pop %v683
    %v685 = vmul.f32 1.0, %v684
    %v686 = vtanh.pop %v672
    %v687 = vxor.u32 %v673, 2147483648
    %v688 = vmul.f32 %v687, 1.442695
    %v689 = vpow.pop %v688
    %v690 = vadd.f32 %v689, 1.0
    %v691 = vrcp.pop %v690
    %v692 = vmul.f32 1.0, %v691
    %v693 = vmul.f32 %v685, %v527
    %v694 = vmul.f32 %v679, %v686
    %v695 = vadd.f32 %v693, %v694
    %v696 = vtanh.pop %v695
    %v697 = vmul.f32 %v692, %v696
    %698 = vst [vmem:[#allocation2] sm:$0xff] %v697
    %699 = vmatprep.subr.mxu0 %v523
    %700 = vmatpush1.msra.mxu0 %v522
    %701 = vmatprep.subr.mxu0 %v519
    %702 = vmatpush1.msra.mxu0 %v518
    %703 = vmatprep.subr.mxu0 %v515
    %704 = vmatpush1.msra.mxu0 %v514
    %705 = vmatprep.subr.mxu0 %v511
    %706 = vmatpush1.msra.mxu0 %v510
    %707 = vmatprep.subr.mxu0 %v507
    %708 = vmatpush1.msra.mxu0 %v506
    %709 = vmatprep.subr.mxu0 %v503
    %710 = vmatpush1.msra.mxu0 %v502
    %711 = vmatprep.subr.mxu0 %v499
    %712 = vmatpush1.msra.mxu0 %v498
    %713 = vmatprep.subr.mxu0 %v495
    %714 = vmatpush1.msra.mxu0 %v494
    %715 = vmatprep.subr.mxu0 %v491
    %716 = vmatpush1.msra.mxu0 %v490
    %717 = vmatprep.subr.mxu0 %v487
    %718 = vmatpush1.msra.mxu0 %v486
    %719 = vmatprep.subr.mxu0 %v483
    %720 = vmatpush1.msra.mxu0 %v482
    %721 = vmatprep.subr.mxu0 %v479
    %722 = vmatpush1.msra.mxu0 %v478
    %723 = vmatprep.subr.mxu0 %v475
    %724 = vmatpush1.msra.mxu0 %v474
    %725 = vmatprep.subr.mxu0 %v471
    %726 = vmatpush1.msra.mxu0 %v470
    %727 = vmatprep.subr.mxu0 %v467
    %728 = vmatpush1.msra.mxu0 %v466
    %729 = vmatprep.subr.mxu0 %v463
    %730 = vmatpush1.msra.mxu0 %v462
    %731 = vmatprep.subr.mxu0 0.0
    %732 = vmatpush2.msra.mxu0 0.0
    %733 = vmatprep.subr.mxu0 0.0
    %734 = vmatpush2.msra.mxu0 0.0
    %735 = vmatprep.subr.mxu0 0.0
    %736 = vmatpush2.msra.mxu0 0.0
    %737 = vmatprep.subr.mxu0 0.0
    %738 = vmatpush2.msra.mxu0 0.0
    %739 = vmatprep.subr.mxu0 0.0
    %740 = vmatpush2.msra.mxu0 0.0
    %741 = vmatprep.subr.mxu0 0.0
    %742 = vmatpush2.msra.mxu0 0.0
    %743 = vmatprep.subr.mxu0 0.0
    %744 = vmatpush2.msra.mxu0 0.0
    %745 = vmatprep.subr.mxu0 0.0
    %746 = vmatpush2.msra.mxu0 0.0
    %747 = vmatprep.subr.mxu0 0.0
    %748 = vmatpush2.msra.mxu0 0.0
    %749 = vmatprep.subr.mxu0 0.0
    %750 = vmatpush2.msra.mxu0 0.0
    %751 = vmatprep.subr.mxu0 0.0
    %752 = vmatpush2.msra.mxu0 0.0
    %753 = vmatprep.subr.mxu0 0.0
    %754 = vmatpush2.msra.mxu0 0.0
    %755 = vmatprep.subr.mxu0 0.0
    %756 = vmatpush2.msra.mxu0 0.0
    %757 = vmatprep.subr.mxu0 0.0
    %758 = vmatpush2.msra.mxu0 0.0
    %759 = vmatprep.subr.mxu0 0.0
    %760 = vmatpush2.msra.mxu0 0.0
    %761 = vmatprep.subr.mxu0 0.0
    %762 = vmatpush2.msra.mxu0 0.0
    %763 = vmatprep.mubr.f32.mxu0 0.0
    %764 = vmatmul.mubr.f32.gmra.mxu0 %v697
    %v765 = vpop.f32.mrf.mxu0
    %v766 = vadd.f32 0.0, %v765
    %v767 = vpop.f32.mrf.mxu0
    %v768 = vadd.f32 0.0, %v767
    %769 = vdwg.mxu0
    %770 = vmatprep.subr.mxu0 %v525
    %771 = vmatpush1.msra.mxu0 %v524
    %772 = vmatprep.subr.mxu0 %v521
    %773 = vmatpush1.msra.mxu0 %v520
    %774 = vmatprep.subr.mxu0 %v517
    %775 = vmatpush1.msra.mxu0 %v516
    %776 = vmatprep.subr.mxu0 %v513
    %777 = vmatpush1.msra.mxu0 %v512
    %778 = vmatprep.subr.mxu0 %v509
    %779 = vmatpush1.msra.mxu0 %v508
    %780 = vmatprep.subr.mxu0 %v505
    %781 = vmatpush1.msra.mxu0 %v504
    %782 = vmatprep.subr.mxu0 %v501
    %783 = vmatpush1.msra.mxu0 %v500
    %784 = vmatprep.subr.mxu0 %v497
    %785 = vmatpush1.msra.mxu0 %v496
    %786 = vmatprep.subr.mxu0 %v493
    %787 = vmatpush1.msra.mxu0 %v492
    %788 = vmatprep.subr.mxu0 %v489
    %789 = vmatpush1.msra.mxu0 %v488
    %790 = vmatprep.subr.mxu0 %v485
    %791 = vmatpush1.msra.mxu0 %v484
    %792 = vmatprep.subr.mxu0 %v481
    %793 = vmatpush1.msra.mxu0 %v480
    %794 = vmatprep.subr.mxu0 %v477
    %795 = vmatpush1.msra.mxu0 %v476
    %796 = vmatprep.subr.mxu0 %v473
    %797 = vmatpush1.msra.mxu0 %v472
    %798 = vmatprep.subr.mxu0 %v469
    %799 = vmatpush1.msra.mxu0 %v468
    %800 = vmatprep.subr.mxu0 %v465
    %801 = vmatpush1.msra.mxu0 %v464
    %802 = vmatprep.subr.mxu0 0.0
    %803 = vmatpush2.msra.mxu0 0.0
    %804 = vmatprep.subr.mxu0 0.0
    %805 = vmatpush2.msra.mxu0 0.0
    %806 = vmatprep.subr.mxu0 0.0
    %807 = vmatpush2.msra.mxu0 0.0
    %808 = vmatprep.subr.mxu0 0.0
    %809 = vmatpush2.msra.mxu0 0.0
    %810 = vmatprep.subr.mxu0 0.0
    %811 = vmatpush2.msra.mxu0 0.0
    %812 = vmatprep.subr.mxu0 0.0
    %813 = vmatpush2.msra.mxu0 0.0
    %814 = vmatprep.subr.mxu0 0.0
    %815 = vmatpush2.msra.mxu0 0.0
    %816 = vmatprep.subr.mxu0 0.0
    %817 = vmatpush2.msra.mxu0 0.0
    %818 = vmatprep.subr.mxu0 0.0
    %819 = vmatpush2.msra.mxu0 0.0
    %820 = vmatprep.subr.mxu0 0.0
    %821 = vmatpush2.msra.mxu0 0.0
    %822 = vmatprep.subr.mxu0 0.0
    %823 = vmatpush2.msra.mxu0 0.0
    %824 = vmatprep.subr.mxu0 0.0
    %825 = vmatpush2.msra.mxu0 0.0
    %826 = vmatprep.subr.mxu0 0.0
    %827 = vmatpush2.msra.mxu0 0.0
    %828 = vmatprep.subr.mxu0 0.0
    %829 = vmatpush2.msra.mxu0 0.0
    %830 = vmatprep.subr.mxu0 0.0
    %831 = vmatpush2.msra.mxu0 0.0
    %832 = vmatprep.subr.mxu0 0.0
    %833 = vmatpush2.msra.mxu0 0.0
    %834 = vmatprep.mubr.f32.mxu0 0.0
    %835 = vmatmul.mubr.f32.gmra.mxu0 %v697
    %v836 = vpop.f32.mrf.mxu0
    %v837 = vadd.f32 0.0, %v836
    %v838 = vpop.f32.mrf.mxu0
    %v839 = vadd.f32 0.0, %v838
    %840 = vdwg.mxu0
    %v841 = vadd.f32 %v309, %v766
    %v842 = vadd.f32 %v311, %v768
    %v843 = vadd.f32 %v422, %v837
    %v844 = vadd.f32 %v424, %v839
    %v845 = vxor.u32 %v841, 2147483648
    %v846 = vmul.f32 %v845, 1.442695
    %v847 = vpow.pop %v846
    %v848 = vadd.f32 %v847, 1.0
    %v849 = vrcp.pop %v848
    %v850 = vmul.f32 1.0, %v849
    %v851 = vxor.u32 %v842, 2147483648
    %v852 = vmul.f32 %v851, 1.442695
    %v853 = vpow.pop %v852
    %v854 = vadd.f32 %v853, 1.0
    %v855 = vrcp.pop %v854
    %v856 = vmul.f32 1.0, %v855
    %v857 = vtanh.pop %v843
    %v858 = vxor.u32 %v844, 2147483648
    %v859 = vmul.f32 %v858, 1.442695
    %v860 = vpow.pop %v859
    %v861 = vadd.f32 %v860, 1.0
    %v862 = vrcp.pop %v861
    %v863 = vmul.f32 1.0, %v862
    %v864 = vmul.f32 %v856, %v695
    %v865 = vmul.f32 %v850, %v857
    %v866 = vadd.f32 %v864, %v865
    %v867 = vtanh.pop %v866
    %v868 = vmul.f32 %v863, %v867
    %869 = vst [vmem:[#allocation2 + $0x8] sm:$0xff] %v868
    %870 = vmatprep.subr.mxu0 %v523
    %871 = vmatpush1.msra.mxu0 %v522
    %872 = vmatprep.subr.mxu0 %v519
    %873 = vmatpush1.msra.mxu0 %v518
    %874 = vmatprep.subr.mxu0 %v515
    %875 = vmatpush1.msra.mxu0 %v514
    %876 = vmatprep.subr.mxu0 %v511
    %877 = vmatpush1.msra.mxu0 %v510
    %878 = vmatprep.subr.mxu0 %v507
    %879 = vmatpush1.msra.mxu0 %v506
    %880 = vmatprep.subr.mxu0 %v503
    %881 = vmatpush1.msra.mxu0 %v502
    %882 = vmatprep.subr.mxu0 %v499
    %883 = vmatpush1.msra.mxu0 %v498
    %884 = vmatprep.subr.mxu0 %v495
    %885 = vmatpush1.msra.mxu0 %v494
    %886 = vmatprep.subr.mxu0 %v491
    %887 = vmatpush1.msra.mxu0 %v490
    %888 = vmatprep.subr.mxu0 %v487
    %889 = vmatpush1.msra.mxu0 %v486
    %890 = vmatprep.subr.mxu0 %v483
    %891 = vmatpush1.msra.mxu0 %v482
    %892 = vmatprep.subr.mxu0 %v479
    %893 = vmatpush1.msra.mxu0 %v478
    %894 = vmatprep.subr.mxu0 %v475
    %895 = vmatpush1.msra.mxu0 %v474
    %896 = vmatprep.subr.mxu0 %v471
    %897 = vmatpush1.msra.mxu0 %v470
    %898 = vmatprep.subr.mxu0 %v467
    %899 = vmatpush1.msra.mxu0 %v466
    %900 = vmatprep.subr.mxu0 %v463
    %901 = vmatpush1.msra.mxu0 %v462
    %902 = vmatprep.subr.mxu0 0.0
    %903 = vmatpush2.msra.mxu0 0.0
    %904 = vmatprep.subr.mxu0 0.0
    %905 = vmatpush2.msra.mxu0 0.0
    %906 = vmatprep.subr.mxu0 0.0
    %907 = vmatpush2.msra.mxu0 0.0
    %908 = vmatprep.subr.mxu0 0.0
    %909 = vmatpush2.msra.mxu0 0.0
    %910 = vmatprep.subr.mxu0 0.0
    %911 = vmatpush2.msra.mxu0 0.0
    %912 = vmatprep.subr.mxu0 0.0
    %913 = vmatpush2.msra.mxu0 0.0
    %914 = vmatprep.subr.mxu0 0.0
    %915 = vmatpush2.msra.mxu0 0.0
    %916 = vmatprep.subr.mxu0 0.0
    %917 = vmatpush2.msra.mxu0 0.0
    %918 = vmatprep.subr.mxu0 0.0
    %919 = vmatpush2.msra.mxu0 0.0
    %920 = vmatprep.subr.mxu0 0.0
    %921 = vmatpush2.msra.mxu0 0.0
    %922 = vmatprep.subr.mxu0 0.0
    %923 = vmatpush2.msra.mxu0 0.0
    %924 = vmatprep.subr.mxu0 0.0
    %925 = vmatpush2.msra.mxu0 0.0
    %926 = vmatprep.subr.mxu0 0.0
    %927 = vmatpush2.msra.mxu0 0.0
    %928 = vmatprep.subr.mxu0 0.0
    %929 = vmatpush2.msra.mxu0 0.0
    %930 = vmatprep.subr.mxu0 0.0
    %931 = vmatpush2.msra.mxu0 0.0
    %932 = vmatprep.subr.mxu0 0.0
    %933 = vmatpush2.msra.mxu0 0.0
    %934 = vmatprep.mubr.f32.mxu0 0.0
    %935 = vmatmul.mubr.f32.gmra.mxu0 %v868
    %v936 = vpop.f32.mrf.mxu0
    %v937 = vadd.f32 0.0, %v936
    %v938 = vpop.f32.mrf.mxu0
    %v939 = vadd.f32 0.0, %v938
    %940 = vdwg.mxu0
    %941 = vmatprep.subr.mxu0 %v525
    %942 = vmatpush1.msra.mxu0 %v524
    %943 = vmatprep.subr.mxu0 %v521
    %944 = vmatpush1.msra.mxu0 %v520
    %945 = vmatprep.subr.mxu0 %v517
    %946 = vmatpush1.msra.mxu0 %v516
    %947 = vmatprep.subr.mxu0 %v513
    %948 = vmatpush1.msra.mxu0 %v512
    %949 = vmatprep.subr.mxu0 %v509
    %950 = vmatpush1.msra.mxu0 %v508
    %951 = vmatprep.subr.mxu0 %v505
    %952 = vmatpush1.msra.mxu0 %v504
    %953 = vmatprep.subr.mxu0 %v501
    %954 = vmatpush1.msra.mxu0 %v500
    %955 = vmatprep.subr.mxu0 %v497
    %956 = vmatpush1.msra.mxu0 %v496
    %957 = vmatprep.subr.mxu0 %v493
    %958 = vmatpush1.msra.mxu0 %v492
    %959 = vmatprep.subr.mxu0 %v489
    %960 = vmatpush1.msra.mxu0 %v488
    %961 = vmatprep.subr.mxu0 %v485
    %962 = vmatpush1.msra.mxu0 %v484
    %963 = vmatprep.subr.mxu0 %v481
    %964 = vmatpush1.msra.mxu0 %v480
    %965 = vmatprep.subr.mxu0 %v477
    %966 = vmatpush1.msra.mxu0 %v476
    %967 = vmatprep.subr.mxu0 %v473
    %968 = vmatpush1.msra.mxu0 %v472
    %969 = vmatprep.subr.mxu0 %v469
    %970 = vmatpush1.msra.mxu0 %v468
    %971 = vmatprep.subr.mxu0 %v465
    %972 = vmatpush1.msra.mxu0 %v464
    %973 = vmatprep.subr.mxu0 0.0
    %974 = vmatpush2.msra.mxu0 0.0
    %975 = vmatprep.subr.mxu0 0.0
    %976 = vmatpush2.msra.mxu0 0.0
    %977 = vmatprep.subr.mxu0 0.0
    %978 = vmatpush2.msra.mxu0 0.0
    %979 = vmatprep.subr.mxu0 0.0
    %980 = vmatpush2.msra.mxu0 0.0
    %981 = vmatprep.subr.mxu0 0.0
    %982 = vmatpush2.msra.mxu0 0.0
    %983 = vmatprep.subr.mxu0 0.0
    %984 = vmatpush2.msra.mxu0 0.0
    %985 = vmatprep.subr.mxu0 0.0
    %986 = vmatpush2.msra.mxu0 0.0
    %987 = vmatprep.subr.mxu0 0.0
    %988 = vmatpush2.msra.mxu0 0.0
    %989 = vmatprep.subr.mxu0 0.0
    %990 = vmatpush2.msra.mxu0 0.0
    %991 = vmatprep.subr.mxu0 0.0
    %992 = vmatpush2.msra.mxu0 0.0
    %993 = vmatprep.subr.mxu0 0.0
    %994 = vmatpush2.msra.mxu0 0.0
    %995 = vmatprep.subr.mxu0 0.0
    %996 = vmatpush2.msra.mxu0 0.0
    %997 = vmatprep.subr.mxu0 0.0
    %998 = vmatpush2.msra.mxu0 0.0
    %999 = vmatprep.subr.mxu0 0.0
    %1000 = vmatpush2.msra.mxu0 0.0
    %1001 = vmatprep.subr.mxu0 0.0
    %1002 = vmatpush2.msra.mxu0 0.0
    %1003 = vmatprep.subr.mxu0 0.0
    %1004 = vmatpush2.msra.mxu0 0.0
    %1005 = vmatprep.mubr.f32.mxu0 0.0
    %1006 = vmatmul.mubr.f32.gmra.mxu0 %v868
    %v1007 = vpop.f32.mrf.mxu0
    %v1008 = vadd.f32 0.0, %v1007
    %v1009 = vpop.f32.mrf.mxu0
    %v1010 = vadd.f32 0.0, %v1009
    %1011 = vdwg.mxu0
    %v1012 = vadd.f32 %v315, %v937
    %v1013 = vadd.f32 %v317, %v939
    %v1014 = vadd.f32 %v428, %v1008
    %v1015 = vadd.f32 %v430, %v1010
    %v1016 = vxor.u32 %v1012, 2147483648
    %v1017 = vmul.f32 %v1016, 1.442695
    %v1018 = vpow.pop %v1017
    %v1019 = vadd.f32 %v1018, 1.0
    %v1020 = vrcp.pop %v1019
    %v1021 = vmul.f32 1.0, %v1020
    %v1022 = vxor.u32 %v1013, 2147483648
    %v1023 = vmul.f32 %v1022, 1.442695
    %v1024 = vpow.pop %v1023
    %v1025 = vadd.f32 %v1024, 1.0
    %v1026 = vrcp.pop %v1025
    %v1027 = vmul.f32 1.0, %v1026
    %v1028 = vtanh.pop %v1014
    %v1029 = vxor.u32 %v1015, 2147483648
    %v1030 = vmul.f32 %v1029, 1.442695
    %v1031 = vpow.pop %v1030
    %v1032 = vadd.f32 %v1031, 1.0
    %v1033 = vrcp.pop %v1032
    %v1034 = vmul.f32 1.0, %v1033
    %v1035 = vmul.f32 %v1027, %v866
    %v1036 = vmul.f32 %v1021, %v1028
    %v1037 = vadd.f32 %v1035, %v1036
    %v1038 = vtanh.pop %v1037
    %v1039 = vmul.f32 %v1034, %v1038
    %1040 = vst [vmem:[#allocation2 + $0x10] sm:$0xff] %v1039
    %1041 = vmatprep.subr.mxu0 %v523
    %1042 = vmatpush1.msra.mxu0 %v522
    %1043 = vmatprep.subr.mxu0 %v519
    %1044 = vmatpush1.msra.mxu0 %v518
    %1045 = vmatprep.subr.mxu0 %v515
    %1046 = vmatpush1.msra.mxu0 %v514
    %1047 = vmatprep.subr.mxu0 %v511
    %1048 = vmatpush1.msra.mxu0 %v510
    %1049 = vmatprep.subr.mxu0 %v507
    %1050 = vmatpush1.msra.mxu0 %v506
    %1051 = vmatprep.subr.mxu0 %v503
    %1052 = vmatpush1.msra.mxu0 %v502
    %1053 = vmatprep.subr.mxu0 %v499
    %1054 = vmatpush1.msra.mxu0 %v498
    %1055 = vmatprep.subr.mxu0 %v495
    %1056 = vmatpush1.msra.mxu0 %v494
    %1057 = vmatprep.subr.mxu0 %v491
    %1058 = vmatpush1.msra.mxu0 %v490
    %1059 = vmatprep.subr.mxu0 %v487
    %1060 = vmatpush1.msra.mxu0 %v486
    %1061 = vmatprep.subr.mxu0 %v483
    %1062 = vmatpush1.msra.mxu0 %v482
    %1063 = vmatprep.subr.mxu0 %v479
    %1064 = vmatpush1.msra.mxu0 %v478
    %1065 = vmatprep.subr.mxu0 %v475
    %1066 = vmatpush1.msra.mxu0 %v474
    %1067 = vmatprep.subr.mxu0 %v471
    %1068 = vmatpush1.msra.mxu0 %v470
    %1069 = vmatprep.subr.mxu0 %v467
    %1070 = vmatpush1.msra.mxu0 %v466
    %1071 = vmatprep.subr.mxu0 %v463
    %1072 = vmatpush1.msra.mxu0 %v462
    %1073 = vmatprep.subr.mxu0 0.0
    %1074 = vmatpush2.msra.mxu0 0.0
    %1075 = vmatprep.subr.mxu0 0.0
    %1076 = vmatpush2.msra.mxu0 0.0
    %1077 = vmatprep.subr.mxu0 0.0
    %1078 = vmatpush2.msra.mxu0 0.0
    %1079 = vmatprep.subr.mxu0 0.0
    %1080 = vmatpush2.msra.mxu0 0.0
    %1081 = vmatprep.subr.mxu0 0.0
    %1082 = vmatpush2.msra.mxu0 0.0
    %1083 = vmatprep.subr.mxu0 0.0
    %1084 = vmatpush2.msra.mxu0 0.0
    %1085 = vmatprep.subr.mxu0 0.0
    %1086 = vmatpush2.msra.mxu0 0.0
    %1087 = vmatprep.subr.mxu0 0.0
    %1088 = vmatpush2.msra.mxu0 0.0
    %1089 = vmatprep.subr.mxu0 0.0
    %1090 = vmatpush2.msra.mxu0 0.0
    %1091 = vmatprep.subr.mxu0 0.0
    %1092 = vmatpush2.msra.mxu0 0.0
    %1093 = vmatprep.subr.mxu0 0.0
    %1094 = vmatpush2.msra.mxu0 0.0
    %1095 = vmatprep.subr.mxu0 0.0
    %1096 = vmatpush2.msra.mxu0 0.0
    %1097 = vmatprep.subr.mxu0 0.0
    %1098 = vmatpush2.msra.mxu0 0.0
    %1099 = vmatprep.subr.mxu0 0.0
    %1100 = vmatpush2.msra.mxu0 0.0
    %1101 = vmatprep.subr.mxu0 0.0
    %1102 = vmatpush2.msra.mxu0 0.0
    %1103 = vmatprep.subr.mxu0 0.0
    %1104 = vmatpush2.msra.mxu0 0.0
    %1105 = vmatprep.mubr.f32.mxu0 0.0
    %1106 = vmatmul.mubr.f32.gmra.mxu0 %v1039
    %v1107 = vpop.f32.mrf.mxu0
    %v1108 = vadd.f32 0.0, %v1107
    %v1109 = vpop.f32.mrf.mxu0
    %v1110 = vadd.f32 0.0, %v1109
    %1111 = vdwg.mxu0
    %1112 = vmatprep.subr.mxu0 %v525
    %1113 = vmatpush1.msra.mxu0 %v524
    %1114 = vmatprep.subr.mxu0 %v521
    %1115 = vmatpush1.msra.mxu0 %v520
    %1116 = vmatprep.subr.mxu0 %v517
    %1117 = vmatpush1.msra.mxu0 %v516
    %1118 = vmatprep.subr.mxu0 %v513
    %1119 = vmatpush1.msra.mxu0 %v512
    %1120 = vmatprep.subr.mxu0 %v509
    %1121 = vmatpush1.msra.mxu0 %v508
    %1122 = vmatprep.subr.mxu0 %v505
    %1123 = vmatpush1.msra.mxu0 %v504
    %1124 = vmatprep.subr.mxu0 %v501
    %1125 = vmatpush1.msra.mxu0 %v500
    %1126 = vmatprep.subr.mxu0 %v497
    %1127 = vmatpush1.msra.mxu0 %v496
    %1128 = vmatprep.subr.mxu0 %v493
    %1129 = vmatpush1.msra.mxu0 %v492
    %1130 = vmatprep.subr.mxu0 %v489
    %1131 = vmatpush1.msra.mxu0 %v488
    %1132 = vmatprep.subr.mxu0 %v485
    %1133 = vmatpush1.msra.mxu0 %v484
    %1134 = vmatprep.subr.mxu0 %v481
    %1135 = vmatpush1.msra.mxu0 %v480
    %1136 = vmatprep.subr.mxu0 %v477
    %1137 = vmatpush1.msra.mxu0 %v476
    %1138 = vmatprep.subr.mxu0 %v473
    %1139 = vmatpush1.msra.mxu0 %v472
    %1140 = vmatprep.subr.mxu0 %v469
    %1141 = vmatpush1.msra.mxu0 %v468
    %1142 = vmatprep.subr.mxu0 %v465
    %1143 = vmatpush1.msra.mxu0 %v464
    %1144 = vmatprep.subr.mxu0 0.0
    %1145 = vmatpush2.msra.mxu0 0.0
    %1146 = vmatprep.subr.mxu0 0.0
    %1147 = vmatpush2.msra.mxu0 0.0
    %1148 = vmatprep.subr.mxu0 0.0
    %1149 = vmatpush2.msra.mxu0 0.0
    %1150 = vmatprep.subr.mxu0 0.0
    %1151 = vmatpush2.msra.mxu0 0.0
    %1152 = vmatprep.subr.mxu0 0.0
    %1153 = vmatpush2.msra.mxu0 0.0
    %1154 = vmatprep.subr.mxu0 0.0
    %1155 = vmatpush2.msra.mxu0 0.0
    %1156 = vmatprep.subr.mxu0 0.0
    %1157 = vmatpush2.msra.mxu0 0.0
    %1158 = vmatprep.subr.mxu0 0.0
    %1159 = vmatpush2.msra.mxu0 0.0
    %1160 = vmatprep.subr.mxu0 0.0
    %1161 = vmatpush2.msra.mxu0 0.0
    %1162 = vmatprep.subr.mxu0 0.0
    %1163 = vmatpush2.msra.mxu0 0.0
    %1164 = vmatprep.subr.mxu0 0.0
    %1165 = vmatpush2.msra.mxu0 0.0
    %1166 = vmatprep.subr.mxu0 0.0
    %1167 = vmatpush2.msra.mxu0 0.0
    %1168 = vmatprep.subr.mxu0 0.0
    %1169 = vmatpush2.msra.mxu0 0.0
    %1170 = vmatprep.subr.mxu0 0.0
    %1171 = vmatpush2.msra.mxu0 0.0
    %1172 = vmatprep.subr.mxu0 0.0
    %1173 = vmatpush2.msra.mxu0 0.0
    %1174 = vmatprep.subr.mxu0 0.0
    %1175 = vmatpush2.msra.mxu0 0.0
    %1176 = vmatprep.mubr.f32.mxu0 0.0
    %1177 = vmatmul.mubr.f32.gmra.mxu0 %v1039
    %v1178 = vpop.f32.mrf.mxu0
    %v1179 = vadd.f32 0.0, %v1178
    %v1180 = vpop.f32.mrf.mxu0
    %v1181 = vadd.f32 0.0, %v1180
    %1182 = vdwg.mxu0
    %v1183 = vadd.f32 %v321, %v1108
    %v1184 = vadd.f32 %v323, %v1110
    %v1185 = vadd.f32 %v434, %v1179
    %v1186 = vadd.f32 %v436, %v1181
    %v1187 = vxor.u32 %v1183, 2147483648
    %v1188 = vmul.f32 %v1187, 1.442695
    %v1189 = vpow.pop %v1188
    %v1190 = vadd.f32 %v1189, 1.0
    %v1191 = vrcp.pop %v1190
    %v1192 = vmul.f32 1.0, %v1191
    %v1193 = vxor.u32 %v1184, 2147483648
    %v1194 = vmul.f32 %v1193, 1.442695
    %v1195 = vpow.pop %v1194
    %v1196 = vadd.f32 %v1195, 1.0
    %v1197 = vrcp.pop %v1196
    %v1198 = vmul.f32 1.0, %v1197
    %v1199 = vtanh.pop %v1185
    %v1200 = vxor.u32 %v1186, 2147483648
    %v1201 = vmul.f32 %v1200, 1.442695
    %v1202 = vpow.pop %v1201
    %v1203 = vadd.f32 %v1202, 1.0
    %v1204 = vrcp.pop %v1203
    %v1205 = vmul.f32 1.0, %v1204
    %v1206 = vmul.f32 %v1198, %v1037
    %v1207 = vmul.f32 %v1192, %v1199
    %v1208 = vadd.f32 %v1206, %v1207
    %v1209 = vtanh.pop %v1208
    %v1210 = vmul.f32 %v1205, %v1209
    %1211 = vst [vmem:[#allocation2 + $0x18] sm:$0xff] %v1210
    %1212 = vmatprep.subr.mxu0 %v523
    %1213 = vmatpush1.msra.mxu0 %v522
    %1214 = vmatprep.subr.mxu0 %v519
    %1215 = vmatpush1.msra.mxu0 %v518
    %1216 = vmatprep.subr.mxu0 %v515
    %1217 = vmatpush1.msra.mxu0 %v514
    %1218 = vmatprep.subr.mxu0 %v511
    %1219 = vmatpush1.msra.mxu0 %v510
    %1220 = vmatprep.subr.mxu0 %v507
    %1221 = vmatpush1.msra.mxu0 %v506
    %1222 = vmatprep.subr.mxu0 %v503
    %1223 = vmatpush1.msra.mxu0 %v502
    %1224 = vmatprep.subr.mxu0 %v499
    %1225 = vmatpush1.msra.mxu0 %v498
    %1226 = vmatprep.subr.mxu0 %v495
    %1227 = vmatpush1.msra.mxu0 %v494
    %1228 = vmatprep.subr.mxu0 %v491
    %1229 = vmatpush1.msra.mxu0 %v490
    %1230 = vmatprep.subr.mxu0 %v487
    %1231 = vmatpush1.msra.mxu0 %v486
    %1232 = vmatprep.subr.mxu0 %v483
    %1233 = vmatpush1.msra.mxu0 %v482
    %1234 = vmatprep.subr.mxu0 %v479
    %1235 = vmatpush1.msra.mxu0 %v478
    %1236 = vmatprep.subr.mxu0 %v475
    %1237 = vmatpush1.msra.mxu0 %v474
    %1238 = vmatprep.subr.mxu0 %v471
    %1239 = vmatpush1.msra.mxu0 %v470
    %1240 = vmatprep.subr.mxu0 %v467
    %1241 = vmatpush1.msra.mxu0 %v466
    %1242 = vmatprep.subr.mxu0 %v463
    %1243 = vmatpush1.msra.mxu0 %v462
    %1244 = vmatprep.subr.mxu0 0.0
    %1245 = vmatpush2.msra.mxu0 0.0
    %1246 = vmatprep.subr.mxu0 0.0
    %1247 = vmatpush2.msra.mxu0 0.0
    %1248 = vmatprep.subr.mxu0 0.0
    %1249 = vmatpush2.msra.mxu0 0.0
    %1250 = vmatprep.subr.mxu0 0.0
    %1251 = vmatpush2.msra.mxu0 0.0
    %1252 = vmatprep.subr.mxu0 0.0
    %1253 = vmatpush2.msra.mxu0 0.0
    %1254 = vmatprep.subr.mxu0 0.0
    %1255 = vmatpush2.msra.mxu0 0.0
    %1256 = vmatprep.subr.mxu0 0.0
    %1257 = vmatpush2.msra.mxu0 0.0
    %1258 = vmatprep.subr.mxu0 0.0
    %1259 = vmatpush2.msra.mxu0 0.0
    %1260 = vmatprep.subr.mxu0 0.0
    %1261 = vmatpush2.msra.mxu0 0.0
    %1262 = vmatprep.subr.mxu0 0.0
    %1263 = vmatpush2.msra.mxu0 0.0
    %1264 = vmatprep.subr.mxu0 0.0
    %1265 = vmatpush2.msra.mxu0 0.0
    %1266 = vmatprep.subr.mxu0 0.0
    %1267 = vmatpush2.msra.mxu0 0.0
    %1268 = vmatprep.subr.mxu0 0.0
    %1269 = vmatpush2.msra.mxu0 0.0
    %1270 = vmatprep.subr.mxu0 0.0
    %1271 = vmatpush2.msra.mxu0 0.0
    %1272 = vmatprep.subr.mxu0 0.0
    %1273 = vmatpush2.msra.mxu0 0.0
    %1274 = vmatprep.subr.mxu0 0.0
    %1275 = vmatpush2.msra.mxu0 0.0
    %1276 = vmatprep.mubr.f32.mxu0 0.0
    %1277 = vmatmul.mubr.f32.gmra.mxu0 %v1210
    %v1278 = vpop.f32.mrf.mxu0
    %v1279 = vadd.f32 0.0, %v1278
    %v1280 = vpop.f32.mrf.mxu0
    %v1281 = vadd.f32 0.0, %v1280
    %1282 = vdwg.mxu0
    %1283 = vmatprep.subr.mxu0 %v525
    %1284 = vmatpush1.msra.mxu0 %v524
    %1285 = vmatprep.subr.mxu0 %v521
    %1286 = vmatpush1.msra.mxu0 %v520
    %1287 = vmatprep.subr.mxu0 %v517
    %1288 = vmatpush1.msra.mxu0 %v516
    %1289 = vmatprep.subr.mxu0 %v513
    %1290 = vmatpush1.msra.mxu0 %v512
    %1291 = vmatprep.subr.mxu0 %v509
    %1292 = vmatpush1.msra.mxu0 %v508
    %1293 = vmatprep.subr.mxu0 %v505
    %1294 = vmatpush1.msra.mxu0 %v504
    %1295 = vmatprep.subr.mxu0 %v501
    %1296 = vmatpush1.msra.mxu0 %v500
    %1297 = vmatprep.subr.mxu0 %v497
    %1298 = vmatpush1.msra.mxu0 %v496
    %1299 = vmatprep.subr.mxu0 %v493
    %1300 = vmatpush1.msra.mxu0 %v492
    %1301 = vmatprep.subr.mxu0 %v489
    %1302 = vmatpush1.msra.mxu0 %v488
    %1303 = vmatprep.subr.mxu0 %v485
    %1304 = vmatpush1.msra.mxu0 %v484
    %1305 = vmatprep.subr.mxu0 %v481
    %1306 = vmatpush1.msra.mxu0 %v480
    %1307 = vmatprep.subr.mxu0 %v477
    %1308 = vmatpush1.msra.mxu0 %v476
    %1309 = vmatprep.subr.mxu0 %v473
    %1310 = vmatpush1.msra.mxu0 %v472
    %1311 = vmatprep.subr.mxu0 %v469
    %1312 = vmatpush1.msra.mxu0 %v468
    %1313 = vmatprep.subr.mxu0 %v465
    %1314 = vmatpush1.msra.mxu0 %v464
    %1315 = vmatprep.subr.mxu0 0.0
    %1316 = vmatpush2.msra.mxu0 0.0
    %1317 = vmatprep.subr.mxu0 0.0
    %1318 = vmatpush2.msra.mxu0 0.0
    %1319 = vmatprep.subr.mxu0 0.0
    %1320 = vmatpush2.msra.mxu0 0.0
    %1321 = vmatprep.subr.mxu0 0.0
    %1322 = vmatpush2.msra.mxu0 0.0
    %1323 = vmatprep.subr.mxu0 0.0
    %1324 = vmatpush2.msra.mxu0 0.0
    %1325 = vmatprep.subr.mxu0 0.0
    %1326 = vmatpush2.msra.mxu0 0.0
    %1327 = vmatprep.subr.mxu0 0.0
    %1328 = vmatpush2.msra.mxu0 0.0
    %1329 = vmatprep.subr.mxu0 0.0
    %1330 = vmatpush2.msra.mxu0 0.0
    %1331 = vmatprep.subr.mxu0 0.0
    %1332 = vmatpush2.msra.mxu0 0.0
    %1333 = vmatprep.subr.mxu0 0.0
    %1334 = vmatpush2.msra.mxu0 0.0
    %1335 = vmatprep.subr.mxu0 0.0
    %1336 = vmatpush2.msra.mxu0 0.0
    %1337 = vmatprep.subr.mxu0 0.0
    %1338 = vmatpush2.msra.mxu0 0.0
    %1339 = vmatprep.subr.mxu0 0.0
    %1340 = vmatpush2.msra.mxu0 0.0
    %1341 = vmatprep.subr.mxu0 0.0
    %1342 = vmatpush2.msra.mxu0 0.0
    %1343 = vmatprep.subr.mxu0 0.0
    %1344 = vmatpush2.msra.mxu0 0.0
    %1345 = vmatprep.subr.mxu0 0.0
    %1346 = vmatpush2.msra.mxu0 0.0
    %1347 = vmatprep.mubr.f32.mxu0 0.0
    %1348 = vmatmul.mubr.f32.gmra.mxu0 %v1210
    %v1349 = vpop.f32.mrf.mxu0
    %v1350 = vadd.f32 0.0, %v1349
    %v1351 = vpop.f32.mrf.mxu0
    %v1352 = vadd.f32 0.0, %v1351
    %1353 = vdwg.mxu0
    %v1354 = vadd.f32 %v327, %v1279
    %v1355 = vadd.f32 %v329, %v1281
    %v1356 = vadd.f32 %v440, %v1350
    %v1357 = vadd.f32 %v442, %v1352
    %v1358 = vxor.u32 %v1354, 2147483648
    %v1359 = vmul.f32 %v1358, 1.442695
    %v1360 = vpow.pop %v1359
    %v1361 = vadd.f32 %v1360, 1.0
    %v1362 = vrcp.pop %v1361
    %v1363 = vmul.f32 1.0, %v1362
    %v1364 = vxor.u32 %v1355, 2147483648
    %v1365 = vmul.f32 %v1364, 1.442695
    %v1366 = vpow.pop %v1365
    %v1367 = vadd.f32 %v1366, 1.0
    %v1368 = vrcp.pop %v1367
    %v1369 = vmul.f32 1.0, %v1368
    %v1370 = vtanh.pop %v1356
    %v1371 = vxor.u32 %v1357, 2147483648
    %v1372 = vmul.f32 %v1371, 1.442695
    %v1373 = vpow.pop %v1372
    %v1374 = vadd.f32 %v1373, 1.0
    %v1375 = vrcp.pop %v1374
    %v1376 = vmul.f32 1.0, %v1375
    %v1377 = vmul.f32 %v1369, %v1208
    %v1378 = vmul.f32 %v1363, %v1370
    %v1379 = vadd.f32 %v1377, %v1378
    %v1380 = vtanh.pop %v1379
    %v1381 = vmul.f32 %v1376, %v1380
    %1382 = vst [vmem:[#allocation2 + $0x20] sm:$0xff] %v1381
    %1383 = vmatprep.subr.mxu0 %v523
    %1384 = vmatpush1.msra.mxu0 %v522
    %1385 = vmatprep.subr.mxu0 %v519
    %1386 = vmatpush1.msra.mxu0 %v518
    %1387 = vmatprep.subr.mxu0 %v515
    %1388 = vmatpush1.msra.mxu0 %v514
    %1389 = vmatprep.subr.mxu0 %v511
    %1390 = vmatpush1.msra.mxu0 %v510
    %1391 = vmatprep.subr.mxu0 %v507
    %1392 = vmatpush1.msra.mxu0 %v506
    %1393 = vmatprep.subr.mxu0 %v503
    %1394 = vmatpush1.msra.mxu0 %v502
    %1395 = vmatprep.subr.mxu0 %v499
    %1396 = vmatpush1.msra.mxu0 %v498
    %1397 = vmatprep.subr.mxu0 %v495
    %1398 = vmatpush1.msra.mxu0 %v494
    %1399 = vmatprep.subr.mxu0 %v491
    %1400 = vmatpush1.msra.mxu0 %v490
    %1401 = vmatprep.subr.mxu0 %v487
    %1402 = vmatpush1.msra.mxu0 %v486
    %1403 = vmatprep.subr.mxu0 %v483
    %1404 = vmatpush1.msra.mxu0 %v482
    %1405 = vmatprep.subr.mxu0 %v479
    %1406 = vmatpush1.msra.mxu0 %v478
    %1407 = vmatprep.subr.mxu0 %v475
    %1408 = vmatpush1.msra.mxu0 %v474
    %1409 = vmatprep.subr.mxu0 %v471
    %1410 = vmatpush1.msra.mxu0 %v470
    %1411 = vmatprep.subr.mxu0 %v467
    %1412 = vmatpush1.msra.mxu0 %v466
    %1413 = vmatprep.subr.mxu0 %v463
    %1414 = vmatpush1.msra.mxu0 %v462
    %1415 = vmatprep.subr.mxu0 0.0
    %1416 = vmatpush2.msra.mxu0 0.0
    %1417 = vmatprep.subr.mxu0 0.0
    %1418 = vmatpush2.msra.mxu0 0.0
    %1419 = vmatprep.subr.mxu0 0.0
    %1420 = vmatpush2.msra.mxu0 0.0
    %1421 = vmatprep.subr.mxu0 0.0
    %1422 = vmatpush2.msra.mxu0 0.0
    %1423 = vmatprep.subr.mxu0 0.0
    %1424 = vmatpush2.msra.mxu0 0.0
    %1425 = vmatprep.subr.mxu0 0.0
    %1426 = vmatpush2.msra.mxu0 0.0
    %1427 = vmatprep.subr.mxu0 0.0
    %1428 = vmatpush2.msra.mxu0 0.0
    %1429 = vmatprep.subr.mxu0 0.0
    %1430 = vmatpush2.msra.mxu0 0.0
    %1431 = vmatprep.subr.mxu0 0.0
    %1432 = vmatpush2.msra.mxu0 0.0
    %1433 = vmatprep.subr.mxu0 0.0
    %1434 = vmatpush2.msra.mxu0 0.0
    %1435 = vmatprep.subr.mxu0 0.0
    %1436 = vmatpush2.msra.mxu0 0.0
    %1437 = vmatprep.subr.mxu0 0.0
    %1438 = vmatpush2.msra.mxu0 0.0
    %1439 = vmatprep.subr.mxu0 0.0
    %1440 = vmatpush2.msra.mxu0 0.0
    %1441 = vmatprep.subr.mxu0 0.0
    %1442 = vmatpush2.msra.mxu0 0.0
    %1443 = vmatprep.subr.mxu0 0.0
    %1444 = vmatpush2.msra.mxu0 0.0
    %1445 = vmatprep.subr.mxu0 0.0
    %1446 = vmatpush2.msra.mxu0 0.0
    %1447 = vmatprep.mubr.f32.mxu0 0.0
    %1448 = vmatmul.mubr.f32.gmra.mxu0 %v1381
    %v1449 = vpop.f32.mrf.mxu0
    %v1450 = vadd.f32 0.0, %v1449
    %v1451 = vpop.f32.mrf.mxu0
    %v1452 = vadd.f32 0.0, %v1451
    %1453 = vdwg.mxu0
    %1454 = vmatprep.subr.mxu0 %v525
    %1455 = vmatpush1.msra.mxu0 %v524
    %1456 = vmatprep.subr.mxu0 %v521
    %1457 = vmatpush1.msra.mxu0 %v520
    %1458 = vmatprep.subr.mxu0 %v517
    %1459 = vmatpush1.msra.mxu0 %v516
    %1460 = vmatprep.subr.mxu0 %v513
    %1461 = vmatpush1.msra.mxu0 %v512
    %1462 = vmatprep.subr.mxu0 %v509
    %1463 = vmatpush1.msra.mxu0 %v508
    %1464 = vmatprep.subr.mxu0 %v505
    %1465 = vmatpush1.msra.mxu0 %v504
    %1466 = vmatprep.subr.mxu0 %v501
    %1467 = vmatpush1.msra.mxu0 %v500
    %1468 = vmatprep.subr.mxu0 %v497
    %1469 = vmatpush1.msra.mxu0 %v496
    %1470 = vmatprep.subr.mxu0 %v493
    %1471 = vmatpush1.msra.mxu0 %v492
    %1472 = vmatprep.subr.mxu0 %v489
    %1473 = vmatpush1.msra.mxu0 %v488
    %1474 = vmatprep.subr.mxu0 %v485
    %1475 = vmatpush1.msra.mxu0 %v484
    %1476 = vmatprep.subr.mxu0 %v481
    %1477 = vmatpush1.msra.mxu0 %v480
    %1478 = vmatprep.subr.mxu0 %v477
    %1479 = vmatpush1.msra.mxu0 %v476
    %1480 = vmatprep.subr.mxu0 %v473
    %1481 = vmatpush1.msra.mxu0 %v472
    %1482 = vmatprep.subr.mxu0 %v469
    %1483 = vmatpush1.msra.mxu0 %v468
    %1484 = vmatprep.subr.mxu0 %v465
    %1485 = vmatpush1.msra.mxu0 %v464
    %1486 = vmatprep.subr.mxu0 0.0
    %1487 = vmatpush2.msra.mxu0 0.0
    %1488 = vmatprep.subr.mxu0 0.0
    %1489 = vmatpush2.msra.mxu0 0.0
    %1490 = vmatprep.subr.mxu0 0.0
    %1491 = vmatpush2.msra.mxu0 0.0
    %1492 = vmatprep.subr.mxu0 0.0
    %1493 = vmatpush2.msra.mxu0 0.0
    %1494 = vmatprep.subr.mxu0 0.0
    %1495 = vmatpush2.msra.mxu0 0.0
    %1496 = vmatprep.subr.mxu0 0.0
    %1497 = vmatpush2.msra.mxu0 0.0
    %1498 = vmatprep.subr.mxu0 0.0
    %1499 = vmatpush2.msra.mxu0 0.0
    %1500 = vmatprep.subr.mxu0 0.0
    %1501 = vmatpush2.msra.mxu0 0.0
    %1502 = vmatprep.subr.mxu0 0.0
    %1503 = vmatpush2.msra.mxu0 0.0
    %1504 = vmatprep.subr.mxu0 0.0
    %1505 = vmatpush2.msra.mxu0 0.0
    %1506 = vmatprep.subr.mxu0 0.0
    %1507 = vmatpush2.msra.mxu0 0.0
    %1508 = vmatprep.subr.mxu0 0.0
    %1509 = vmatpush2.msra.mxu0 0.0
    %1510 = vmatprep.subr.mxu0 0.0
    %1511 = vmatpush2.msra.mxu0 0.0
    %1512 = vmatprep.subr.mxu0 0.0
    %1513 = vmatpush2.msra.mxu0 0.0
    %1514 = vmatprep.subr.mxu0 0.0
    %1515 = vmatpush2.msra.mxu0 0.0
    %1516 = vmatprep.subr.mxu0 0.0
    %1517 = vmatpush2.msra.mxu0 0.0
    %1518 = vmatprep.mubr.f32.mxu0 0.0
    %1519 = vmatmul.mubr.f32.gmra.mxu0 %v1381
    %v1520 = vpop.f32.mrf.mxu0
    %v1521 = vadd.f32 0.0, %v1520
    %v1522 = vpop.f32.mrf.mxu0
    %v1523 = vadd.f32 0.0, %v1522
    %1524 = vdwg.mxu0
    %v1525 = vadd.f32 %v333, %v1450
    %v1526 = vadd.f32 %v335, %v1452
    %v1527 = vadd.f32 %v446, %v1521
    %v1528 = vadd.f32 %v448, %v1523
    %v1529 = vxor.u32 %v1525, 2147483648
    %v1530 = vmul.f32 %v1529, 1.442695
    %v1531 = vpow.pop %v1530
    %v1532 = vadd.f32 %v1531, 1.0
    %v1533 = vrcp.pop %v1532
    %v1534 = vmul.f32 1.0, %v1533
    %v1535 = vxor.u32 %v1526, 2147483648
    %v1536 = vmul.f32 %v1535, 1.442695
    %v1537 = vpow.pop %v1536
    %v1538 = vadd.f32 %v1537, 1.0
    %v1539 = vrcp.pop %v1538
    %v1540 = vmul.f32 1.0, %v1539
    %v1541 = vtanh.pop %v1527
    %v1542 = vxor.u32 %v1528, 2147483648
    %v1543 = vmul.f32 %v1542, 1.442695
    %v1544 = vpow.pop %v1543
    %v1545 = vadd.f32 %v1544, 1.0
    %v1546 = vrcp.pop %v1545
    %v1547 = vmul.f32 1.0, %v1546
    %v1548 = vmul.f32 %v1540, %v1379
    %v1549 = vmul.f32 %v1534, %v1541
    %v1550 = vadd.f32 %v1548, %v1549
    %v1551 = vtanh.pop %v1550
    %v1552 = vmul.f32 %v1547, %v1551
    %1553 = vst [vmem:[#allocation2 + $0x28] sm:$0xff] %v1552
    %1554 = vmatprep.subr.mxu0 %v523
    %1555 = vmatpush1.msra.mxu0 %v522
    %1556 = vmatprep.subr.mxu0 %v519
    %1557 = vmatpush1.msra.mxu0 %v518
    %1558 = vmatprep.subr.mxu0 %v515
    %1559 = vmatpush1.msra.mxu0 %v514
    %1560 = vmatprep.subr.mxu0 %v511
    %1561 = vmatpush1.msra.mxu0 %v510
    %1562 = vmatprep.subr.mxu0 %v507
    %1563 = vmatpush1.msra.mxu0 %v506
    %1564 = vmatprep.subr.mxu0 %v503
    %1565 = vmatpush1.msra.mxu0 %v502
    %1566 = vmatprep.subr.mxu0 %v499
    %1567 = vmatpush1.msra.mxu0 %v498
    %1568 = vmatprep.subr.mxu0 %v495
    %1569 = vmatpush1.msra.mxu0 %v494
    %1570 = vmatprep.subr.mxu0 %v491
    %1571 = vmatpush1.msra.mxu0 %v490
    %1572 = vmatprep.subr.mxu0 %v487
    %1573 = vmatpush1.msra.mxu0 %v486
    %1574 = vmatprep.subr.mxu0 %v483
    %1575 = vmatpush1.msra.mxu0 %v482
    %1576 = vmatprep.subr.mxu0 %v479
    %1577 = vmatpush1.msra.mxu0 %v478
    %1578 = vmatprep.subr.mxu0 %v475
    %1579 = vmatpush1.msra.mxu0 %v474
    %1580 = vmatprep.subr.mxu0 %v471
    %1581 = vmatpush1.msra.mxu0 %v470
    %1582 = vmatprep.subr.mxu0 %v467
    %1583 = vmatpush1.msra.mxu0 %v466
    %1584 = vmatprep.subr.mxu0 %v463
    %1585 = vmatpush1.msra.mxu0 %v462
    %1586 = vmatprep.subr.mxu0 0.0
    %1587 = vmatpush2.msra.mxu0 0.0
    %1588 = vmatprep.subr.mxu0 0.0
    %1589 = vmatpush2.msra.mxu0 0.0
    %1590 = vmatprep.subr.mxu0 0.0
    %1591 = vmatpush2.msra.mxu0 0.0
    %1592 = vmatprep.subr.mxu0 0.0
    %1593 = vmatpush2.msra.mxu0 0.0
    %1594 = vmatprep.subr.mxu0 0.0
    %1595 = vmatpush2.msra.mxu0 0.0
    %1596 = vmatprep.subr.mxu0 0.0
    %1597 = vmatpush2.msra.mxu0 0.0
    %1598 = vmatprep.subr.mxu0 0.0
    %1599 = vmatpush2.msra.mxu0 0.0
    %1600 = vmatprep.subr.mxu0 0.0
    %1601 = vmatpush2.msra.mxu0 0.0
    %1602 = vmatprep.subr.mxu0 0.0
    %1603 = vmatpush2.msra.mxu0 0.0
    %1604 = vmatprep.subr.mxu0 0.0
    %1605 = vmatpush2.msra.mxu0 0.0
    %1606 = vmatprep.subr.mxu0 0.0
    %1607 = vmatpush2.msra.mxu0 0.0
    %1608 = vmatprep.subr.mxu0 0.0
    %1609 = vmatpush2.msra.mxu0 0.0
    %1610 = vmatprep.subr.mxu0 0.0
    %1611 = vmatpush2.msra.mxu0 0.0
    %1612 = vmatprep.subr.mxu0 0.0
    %1613 = vmatpush2.msra.mxu0 0.0
    %1614 = vmatprep.subr.mxu0 0.0
    %1615 = vmatpush2.msra.mxu0 0.0
    %1616 = vmatprep.subr.mxu0 0.0
    %1617 = vmatpush2.msra.mxu0 0.0
    %1618 = vmatprep.mubr.f32.mxu0 0.0
    %1619 = vmatmul.mubr.f32.gmra.mxu0 %v1552
    %v1620 = vpop.f32.mrf.mxu0
    %v1621 = vadd.f32 0.0, %v1620
    %v1622 = vpop.f32.mrf.mxu0
    %v1623 = vadd.f32 0.0, %v1622
    %1624 = vdwg.mxu0
    %1625 = vmatprep.subr.mxu0 %v525
    %1626 = vmatpush1.msra.mxu0 %v524
    %1627 = vmatprep.subr.mxu0 %v521
    %1628 = vmatpush1.msra.mxu0 %v520
    %1629 = vmatprep.subr.mxu0 %v517
    %1630 = vmatpush1.msra.mxu0 %v516
    %1631 = vmatprep.subr.mxu0 %v513
    %1632 = vmatpush1.msra.mxu0 %v512
    %1633 = vmatprep.subr.mxu0 %v509
    %1634 = vmatpush1.msra.mxu0 %v508
    %1635 = vmatprep.subr.mxu0 %v505
    %1636 = vmatpush1.msra.mxu0 %v504
    %1637 = vmatprep.subr.mxu0 %v501
    %1638 = vmatpush1.msra.mxu0 %v500
    %1639 = vmatprep.subr.mxu0 %v497
    %1640 = vmatpush1.msra.mxu0 %v496
    %1641 = vmatprep.subr.mxu0 %v493
    %1642 = vmatpush1.msra.mxu0 %v492
    %1643 = vmatprep.subr.mxu0 %v489
    %1644 = vmatpush1.msra.mxu0 %v488
    %1645 = vmatprep.subr.mxu0 %v485
    %1646 = vmatpush1.msra.mxu0 %v484
    %1647 = vmatprep.subr.mxu0 %v481
    %1648 = vmatpush1.msra.mxu0 %v480
    %1649 = vmatprep.subr.mxu0 %v477
    %1650 = vmatpush1.msra.mxu0 %v476
    %1651 = vmatprep.subr.mxu0 %v473
    %1652 = vmatpush1.msra.mxu0 %v472
    %1653 = vmatprep.subr.mxu0 %v469
    %1654 = vmatpush1.msra.mxu0 %v468
    %1655 = vmatprep.subr.mxu0 %v465
    %1656 = vmatpush1.msra.mxu0 %v464
    %1657 = vmatprep.subr.mxu0 0.0
    %1658 = vmatpush2.msra.mxu0 0.0
    %1659 = vmatprep.subr.mxu0 0.0
    %1660 = vmatpush2.msra.mxu0 0.0
    %1661 = vmatprep.subr.mxu0 0.0
    %1662 = vmatpush2.msra.mxu0 0.0
    %1663 = vmatprep.subr.mxu0 0.0
    %1664 = vmatpush2.msra.mxu0 0.0
    %1665 = vmatprep.subr.mxu0 0.0
    %1666 = vmatpush2.msra.mxu0 0.0
    %1667 = vmatprep.subr.mxu0 0.0
    %1668 = vmatpush2.msra.mxu0 0.0
    %1669 = vmatprep.subr.mxu0 0.0
    %1670 = vmatpush2.msra.mxu0 0.0
    %1671 = vmatprep.subr.mxu0 0.0
    %1672 = vmatpush2.msra.mxu0 0.0
    %1673 = vmatprep.subr.mxu0 0.0
    %1674 = vmatpush2.msra.mxu0 0.0
    %1675 = vmatprep.subr.mxu0 0.0
    %1676 = vmatpush2.msra.mxu0 0.0
    %1677 = vmatprep.subr.mxu0 0.0
    %1678 = vmatpush2.msra.mxu0 0.0
    %1679 = vmatprep.subr.mxu0 0.0
    %1680 = vmatpush2.msra.mxu0 0.0
    %1681 = vmatprep.subr.mxu0 0.0
    %1682 = vmatpush2.msra.mxu0 0.0
    %1683 = vmatprep.subr.mxu0 0.0
    %1684 = vmatpush2.msra.mxu0 0.0
    %1685 = vmatprep.subr.mxu0 0.0
    %1686 = vmatpush2.msra.mxu0 0.0
    %1687 = vmatprep.subr.mxu0 0.0
    %1688 = vmatpush2.msra.mxu0 0.0
    %1689 = vmatprep.mubr.f32.mxu0 0.0
    %1690 = vmatmul.mubr.f32.gmra.mxu0 %v1552
    %v1691 = vpop.f32.mrf.mxu0
    %v1692 = vadd.f32 0.0, %v1691
    %v1693 = vpop.f32.mrf.mxu0
    %v1694 = vadd.f32 0.0, %v1693
    %1695 = vdwg.mxu0
    %v1696 = vadd.f32 %v339, %v1621
    %v1697 = vadd.f32 %v341, %v1623
    %v1698 = vadd.f32 %v452, %v1692
    %v1699 = vadd.f32 %v454, %v1694
    %v1700 = vxor.u32 %v1696, 2147483648
    %v1701 = vmul.f32 %v1700, 1.442695
    %v1702 = vpow.pop %v1701
    %v1703 = vadd.f32 %v1702, 1.0
    %v1704 = vrcp.pop %v1703
    %v1705 = vmul.f32 1.0, %v1704
    %v1706 = vxor.u32 %v1697, 2147483648
    %v1707 = vmul.f32 %v1706, 1.442695
    %v1708 = vpow.pop %v1707
    %v1709 = vadd.f32 %v1708, 1.0
    %v1710 = vrcp.pop %v1709
    %v1711 = vmul.f32 1.0, %v1710
    %v1712 = vtanh.pop %v1698
    %v1713 = vxor.u32 %v1699, 2147483648
    %v1714 = vmul.f32 %v1713, 1.442695
    %v1715 = vpow.pop %v1714
    %v1716 = vadd.f32 %v1715, 1.0
    %v1717 = vrcp.pop %v1716
    %v1718 = vmul.f32 1.0, %v1717
    %v1719 = vmul.f32 %v1711, %v1550
    %v1720 = vmul.f32 %v1705, %v1712
    %v1721 = vadd.f32 %v1719, %v1720
    %v1722 = vtanh.pop %v1721
    %v1723 = vmul.f32 %v1718, %v1722
    %1724 = vst [vmem:[#allocation2 + $0x30] sm:$0xff] %v1723
    %1725 = vmatprep.subr.mxu0 %v523
    %1726 = vmatpush1.msra.mxu0 %v522
    %1727 = vmatprep.subr.mxu0 %v519
    %1728 = vmatpush1.msra.mxu0 %v518
    %1729 = vmatprep.subr.mxu0 %v515
    %1730 = vmatpush1.msra.mxu0 %v514
    %1731 = vmatprep.subr.mxu0 %v511
    %1732 = vmatpush1.msra.mxu0 %v510
    %1733 = vmatprep.subr.mxu0 %v507
    %1734 = vmatpush1.msra.mxu0 %v506
    %1735 = vmatprep.subr.mxu0 %v503
    %1736 = vmatpush1.msra.mxu0 %v502
    %1737 = vmatprep.subr.mxu0 %v499
    %1738 = vmatpush1.msra.mxu0 %v498
    %1739 = vmatprep.subr.mxu0 %v495
    %1740 = vmatpush1.msra.mxu0 %v494
    %1741 = vmatprep.subr.mxu0 %v491
    %1742 = vmatpush1.msra.mxu0 %v490
    %1743 = vmatprep.subr.mxu0 %v487
    %1744 = vmatpush1.msra.mxu0 %v486
    %1745 = vmatprep.subr.mxu0 %v483
    %1746 = vmatpush1.msra.mxu0 %v482
    %1747 = vmatprep.subr.mxu0 %v479
    %1748 = vmatpush1.msra.mxu0 %v478
    %1749 = vmatprep.subr.mxu0 %v475
    %1750 = vmatpush1.msra.mxu0 %v474
    %1751 = vmatprep.subr.mxu0 %v471
    %1752 = vmatpush1.msra.mxu0 %v470
    %1753 = vmatprep.subr.mxu0 %v467
    %1754 = vmatpush1.msra.mxu0 %v466
    %1755 = vmatprep.subr.mxu0 %v463
    %1756 = vmatpush1.msra.mxu0 %v462
    %1757 = vmatprep.subr.mxu0 0.0
    %1758 = vmatpush2.msra.mxu0 0.0
    %1759 = vmatprep.subr.mxu0 0.0
    %1760 = vmatpush2.msra.mxu0 0.0
    %1761 = vmatprep.subr.mxu0 0.0
    %1762 = vmatpush2.msra.mxu0 0.0
    %1763 = vmatprep.subr.mxu0 0.0
    %1764 = vmatpush2.msra.mxu0 0.0
    %1765 = vmatprep.subr.mxu0 0.0
    %1766 = vmatpush2.msra.mxu0 0.0
    %1767 = vmatprep.subr.mxu0 0.0
    %1768 = vmatpush2.msra.mxu0 0.0
    %1769 = vmatprep.subr.mxu0 0.0
    %1770 = vmatpush2.msra.mxu0 0.0
    %1771 = vmatprep.subr.mxu0 0.0
    %1772 = vmatpush2.msra.mxu0 0.0
    %1773 = vmatprep.subr.mxu0 0.0
    %1774 = vmatpush2.msra.mxu0 0.0
    %1775 = vmatprep.subr.mxu0 0.0
    %1776 = vmatpush2.msra.mxu0 0.0
    %1777 = vmatprep.subr.mxu0 0.0
    %1778 = vmatpush2.msra.mxu0 0.0
    %1779 = vmatprep.subr.mxu0 0.0
    %1780 = vmatpush2.msra.mxu0 0.0
    %1781 = vmatprep.subr.mxu0 0.0
    %1782 = vmatpush2.msra.mxu0 0.0
    %1783 = vmatprep.subr.mxu0 0.0
    %1784 = vmatpush2.msra.mxu0 0.0
    %1785 = vmatprep.subr.mxu0 0.0
    %1786 = vmatpush2.msra.mxu0 0.0
    %1787 = vmatprep.subr.mxu0 0.0
    %1788 = vmatpush2.msra.mxu0 0.0
    %1789 = vmatprep.mubr.f32.mxu0 0.0
    %1790 = vmatmul.mubr.f32.gmra.mxu0 %v1723
    %v1791 = vpop.f32.mrf.mxu0
    %v1792 = vadd.f32 0.0, %v1791
    %v1793 = vpop.f32.mrf.mxu0
    %v1794 = vadd.f32 0.0, %v1793
    %1795 = vdwg.mxu0
    %1796 = vmatprep.subr.mxu0 %v525
    %1797 = vmatpush1.msra.mxu0 %v524
    %1798 = vmatprep.subr.mxu0 %v521
    %1799 = vmatpush1.msra.mxu0 %v520
    %1800 = vmatprep.subr.mxu0 %v517
    %1801 = vmatpush1.msra.mxu0 %v516
    %1802 = vmatprep.subr.mxu0 %v513
    %1803 = vmatpush1.msra.mxu0 %v512
    %1804 = vmatprep.subr.mxu0 %v509
    %1805 = vmatpush1.msra.mxu0 %v508
    %1806 = vmatprep.subr.mxu0 %v505
    %1807 = vmatpush1.msra.mxu0 %v504
    %1808 = vmatprep.subr.mxu0 %v501
    %1809 = vmatpush1.msra.mxu0 %v500
    %1810 = vmatprep.subr.mxu0 %v497
    %1811 = vmatpush1.msra.mxu0 %v496
    %1812 = vmatprep.subr.mxu0 %v493
    %1813 = vmatpush1.msra.mxu0 %v492
    %1814 = vmatprep.subr.mxu0 %v489
    %1815 = vmatpush1.msra.mxu0 %v488
    %1816 = vmatprep.subr.mxu0 %v485
    %1817 = vmatpush1.msra.mxu0 %v484
    %1818 = vmatprep.subr.mxu0 %v481
    %1819 = vmatpush1.msra.mxu0 %v480
    %1820 = vmatprep.subr.mxu0 %v477
    %1821 = vmatpush1.msra.mxu0 %v476
    %1822 = vmatprep.subr.mxu0 %v473
    %1823 = vmatpush1.msra.mxu0 %v472
    %1824 = vmatprep.subr.mxu0 %v469
    %1825 = vmatpush1.msra.mxu0 %v468
    %1826 = vmatprep.subr.mxu0 %v465
    %1827 = vmatpush1.msra.mxu0 %v464
    %1828 = vmatprep.subr.mxu0 0.0
    %1829 = vmatpush2.msra.mxu0 0.0
    %1830 = vmatprep.subr.mxu0 0.0
    %1831 = vmatpush2.msra.mxu0 0.0
    %1832 = vmatprep.subr.mxu0 0.0
    %1833 = vmatpush2.msra.mxu0 0.0
    %1834 = vmatprep.subr.mxu0 0.0
    %1835 = vmatpush2.msra.mxu0 0.0
    %1836 = vmatprep.subr.mxu0 0.0
    %1837 = vmatpush2.msra.mxu0 0.0
    %1838 = vmatprep.subr.mxu0 0.0
    %1839 = vmatpush2.msra.mxu0 0.0
    %1840 = vmatprep.subr.mxu0 0.0
    %1841 = vmatpush2.msra.mxu0 0.0
    %1842 = vmatprep.subr.mxu0 0.0
    %1843 = vmatpush2.msra.mxu0 0.0
    %1844 = vmatprep.subr.mxu0 0.0
    %1845 = vmatpush2.msra.mxu0 0.0
    %1846 = vmatprep.subr.mxu0 0.0
    %1847 = vmatpush2.msra.mxu0 0.0
    %1848 = vmatprep.subr.mxu0 0.0
    %1849 = vmatpush2.msra.mxu0 0.0
    %1850 = vmatprep.subr.mxu0 0.0
    %1851 = vmatpush2.msra.mxu0 0.0
    %1852 = vmatprep.subr.mxu0 0.0
    %1853 = vmatpush2.msra.mxu0 0.0
    %1854 = vmatprep.subr.mxu0 0.0
    %1855 = vmatpush2.msra.mxu0 0.0
    %1856 = vmatprep.subr.mxu0 0.0
    %1857 = vmatpush2.msra.mxu0 0.0
    %1858 = vmatprep.subr.mxu0 0.0
    %1859 = vmatpush2.msra.mxu0 0.0
    %1860 = vmatprep.mubr.f32.mxu0 0.0
    %1861 = vmatmul.mubr.f32.gmra.mxu0 %v1723
    %v1862 = vpop.f32.mrf.mxu0
    %v1863 = vadd.f32 0.0, %v1862
    %v1864 = vpop.f32.mrf.mxu0
    %v1865 = vadd.f32 0.0, %v1864
    %1866 = vdwg.mxu0
    %v1867 = vadd.f32 %v345, %v1792
    %v1868 = vadd.f32 %v347, %v1794
    %v1869 = vadd.f32 %v458, %v1863
    %v1870 = vadd.f32 %v460, %v1865
    %v1871 = vxor.u32 %v1867, 2147483648
    %v1872 = vmul.f32 %v1871, 1.442695
    %v1873 = vpow.pop %v1872
    %v1874 = vadd.f32 %v1873, 1.0
    %v1875 = vrcp.pop %v1874
    %v1876 = vmul.f32 1.0, %v1875
    %v1877 = vxor.u32 %v1868, 2147483648
    %v1878 = vmul.f32 %v1877, 1.442695
    %v1879 = vpow.pop %v1878
    %v1880 = vadd.f32 %v1879, 1.0
    %v1881 = vrcp.pop %v1880
    %v1882 = vmul.f32 1.0, %v1881
    %v1883 = vtanh.pop %v1869
    %v1884 = vxor.u32 %v1870, 2147483648
    %v1885 = vmul.f32 %v1884, 1.442695
    %v1886 = vpow.pop %v1885
    %v1887 = vadd.f32 %v1886, 1.0
    %v1888 = vrcp.pop %v1887
    %v1889 = vmul.f32 1.0, %v1888
    %v1890 = vmul.f32 %v1882, %v1721
    %v1891 = vmul.f32 %v1876, %v1883
    %v1892 = vadd.f32 %v1890, %v1891
    %v1893 = vtanh.pop %v1892
    %v1894 = vmul.f32 %v1889, %v1893
    %1895 = vst [vmem:[#allocation2 + $0x38] sm:$0xff] %v1894
    %1896 = vst [vmem:[#allocation12] sm:$0xff] %v1894
    %1897 = vst [vmem:[#allocation14] sm:$0xff] %v1892
    %v1898 = vld [vmem:[#allocation2] sm:$0xff]
    %v1899 = vld [vmem:[#allocation2 + $0x8] sm:$0xff]
    %v1900 = vld [vmem:[#allocation2 + $0x10] sm:$0xff]
    %v1901 = vld [vmem:[#allocation2 + $0x18] sm:$0xff]
    %v1902 = vld [vmem:[#allocation2 + $0x20] sm:$0xff]
    %v1903 = vld [vmem:[#allocation2 + $0x28] sm:$0xff]
    %v1904 = vld [vmem:[#allocation2 + $0x30] sm:$0xff]
    %v1905 = vld [vmem:[#allocation2 + $0x38] sm:$0xff]
    %v1906 = vld [vmem:[#allocation6] sm:$0xff]
    %v1907 = vld [vmem:[#allocation6 + $0x8] sm:$0xff]
    %v1908 = vld [vmem:[#allocation6 + $0x10] sm:$0xff]
    %v1909 = vld [vmem:[#allocation6 + $0x18] sm:$0xff]
    %v1910 = vld [vmem:[#allocation6 + $0x20] sm:$0xff]
    %v1911 = vld [vmem:[#allocation6 + $0x28] sm:$0xff]
    %v1912 = vld [vmem:[#allocation6 + $0x30] sm:$0xff]
    %v1913 = vld [vmem:[#allocation6 + $0x38] sm:$0xff]
    %v1914 = vld [vmem:[#allocation6 + $0x40] sm:$0xff]
    %v1915 = vld [vmem:[#allocation6 + $0x48] sm:$0xff]
    %v1916 = vld [vmem:[#allocation6 + $0x50] sm:$0xff]
    %v1917 = vld [vmem:[#allocation6 + $0x58] sm:$0xff]
    %v1918 = vld [vmem:[#allocation6 + $0x60] sm:$0xff]
    %v1919 = vld [vmem:[#allocation6 + $0x68] sm:$0xff]
    %v1920 = vld [vmem:[#allocation6 + $0x70] sm:$0xff]
    %v1921 = vld [vmem:[#allocation6 + $0x78] sm:$0xff]
    %v1922 = vld [vmem:[#allocation6 + $0x80] sm:$0xff]
    %v1923 = vld [vmem:[#allocation6 + $0x88] sm:$0xff]
    %v1924 = vld [vmem:[#allocation6 + $0x90] sm:$0xff]
    %v1925 = vld [vmem:[#allocation6 + $0x98] sm:$0xff]
    %v1926 = vld [vmem:[#allocation6 + $0xa0] sm:$0xff]
    %v1927 = vld [vmem:[#allocation6 + $0xa8] sm:$0xff]
    %v1928 = vld [vmem:[#allocation6 + $0xb0] sm:$0xff]
    %v1929 = vld [vmem:[#allocation6 + $0xb8] sm:$0xff]
    %v1930 = vld [vmem:[#allocation6 + $0xc0] sm:$0xff]
    %v1931 = vld [vmem:[#allocation6 + $0xc8] sm:$0xff]
    %v1932 = vld [vmem:[#allocation6 + $0xd0] sm:$0xff]
    %v1933 = vld [vmem:[#allocation6 + $0xd8] sm:$0xff]
    %v1934 = vld [vmem:[#allocation6 + $0xe0] sm:$0xff]
    %v1935 = vld [vmem:[#allocation6 + $0xe8] sm:$0xff]
    %v1936 = vld [vmem:[#allocation6 + $0xf0] sm:$0xff]
    %v1937 = vld [vmem:[#allocation6 + $0xf8] sm:$0xff]
    %v1938 = vld [vmem:[#allocation6 + $0x100] sm:$0xff]
    %v1939 = vld [vmem:[#allocation6 + $0x108] sm:$0xff]
    %v1940 = vld [vmem:[#allocation6 + $0x110] sm:$0xff]
    %v1941 = vld [vmem:[#allocation6 + $0x118] sm:$0xff]
    %v1942 = vld [vmem:[#allocation6 + $0x120] sm:$0xff]
    %v1943 = vld [vmem:[#allocation6 + $0x128] sm:$0xff]
    %v1944 = vld [vmem:[#allocation6 + $0x130] sm:$0xff]
    %v1945 = vld [vmem:[#allocation6 + $0x138] sm:$0xff]
    %v1946 = vld [vmem:[#allocation6 + $0x140] sm:$0xff]
    %v1947 = vld [vmem:[#allocation6 + $0x148] sm:$0xff]
    %v1948 = vld [vmem:[#allocation6 + $0x150] sm:$0xff]
    %v1949 = vld [vmem:[#allocation6 + $0x158] sm:$0xff]
    %v1950 = vld [vmem:[#allocation6 + $0x160] sm:$0xff]
    %v1951 = vld [vmem:[#allocation6 + $0x168] sm:$0xff]
    %v1952 = vld [vmem:[#allocation6 + $0x170] sm:$0xff]
    %v1953 = vld [vmem:[#allocation6 + $0x178] sm:$0xff]
    %v1954 = vld [vmem:[#allocation6 + $0x180] sm:$0xff]
    %v1955 = vld [vmem:[#allocation6 + $0x188] sm:$0xff]
    %v1956 = vld [vmem:[#allocation6 + $0x190] sm:$0xff]
    %v1957 = vld [vmem:[#allocation6 + $0x198] sm:$0xff]
    %v1958 = vld [vmem:[#allocation6 + $0x1a0] sm:$0xff]
    %v1959 = vld [vmem:[#allocation6 + $0x1a8] sm:$0xff]
    %v1960 = vld [vmem:[#allocation6 + $0x1b0] sm:$0xff]
    %v1961 = vld [vmem:[#allocation6 + $0x1b8] sm:$0xff]
    %v1962 = vld [vmem:[#allocation6 + $0x1c0] sm:$0xff]
    %v1963 = vld [vmem:[#allocation6 + $0x1c8] sm:$0xff]
    %v1964 = vld [vmem:[#allocation6 + $0x1d0] sm:$0xff]
    %v1965 = vld [vmem:[#allocation6 + $0x1d8] sm:$0xff]
    %v1966 = vld [vmem:[#allocation6 + $0x1e0] sm:$0xff]
    %v1967 = vld [vmem:[#allocation6 + $0x1e8] sm:$0xff]
    %v1968 = vld [vmem:[#allocation6 + $0x1f0] sm:$0xff]
    %v1969 = vld [vmem:[#allocation6 + $0x1f8] sm:$0xff]
    %s1970 = scalar_lea.vmem %s4, 4
    %v1971 = vld [vmem:[%s1970] sm:$0xf]
    %v1973 = vlaneseq
    %v1974 = vshrl.u32 %v1973, 7
    %v1975 = vsub.s32 0, %v1974
    %v1976 = vrot.slane %v1971, %v1975
    %v1977 = vlaneseq
    %v1978 = vshrl.u32 %v1977, 7
    %v1979 = vsub.s32 1, %v1978
    %v1980 = vrot.slane %v1971, %v1979
    %v1981 = vlaneseq
    %v1982 = vshrl.u32 %v1981, 7
    %v1983 = vsub.s32 2, %v1982
    %v1984 = vrot.slane %v1971, %v1983
    %v1985 = vlaneseq
    %v1986 = vshrl.u32 %v1985, 7
    %v1987 = vsub.s32 3, %v1986
    %v1988 = vrot.slane %v1971, %v1987
    %1993 = vmatprep.subr.mxu0 %v1967
    %1994 = vmatpush1.msra.mxu0 %v1966
    %1995 = vmatprep.subr.mxu0 %v1963
    %1996 = vmatpush1.msra.mxu0 %v1962
    %1997 = vmatprep.subr.mxu0 %v1959
    %1998 = vmatpush1.msra.mxu0 %v1958
    %1999 = vmatprep.subr.mxu0 %v1955
    %2000 = vmatpush1.msra.mxu0 %v1954
    %2001 = vmatprep.subr.mxu0 %v1951
    %2002 = vmatpush1.msra.mxu0 %v1950
    %2003 = vmatprep.subr.mxu0 %v1947
    %2004 = vmatpush1.msra.mxu0 %v1946
    %2005 = vmatprep.subr.mxu0 %v1943
    %2006 = vmatpush1.msra.mxu0 %v1942
    %2007 = vmatprep.subr.mxu0 %v1939
    %2008 = vmatpush1.msra.mxu0 %v1938
    %2009 = vmatprep.subr.mxu0 %v1935
    %2010 = vmatpush1.msra.mxu0 %v1934
    %2011 = vmatprep.subr.mxu0 %v1931
    %2012 = vmatpush1.msra.mxu0 %v1930
    %2013 = vmatprep.subr.mxu0 %v1927
    %2014 = vmatpush1.msra.mxu0 %v1926
    %2015 = vmatprep.subr.mxu0 %v1923
    %2016 = vmatpush1.msra.mxu0 %v1922
    %2017 = vmatprep.subr.mxu0 %v1919
    %2018 = vmatpush1.msra.mxu0 %v1918
    %2019 = vmatprep.subr.mxu0 %v1915
    %2020 = vmatpush1.msra.mxu0 %v1914
    %2021 = vmatprep.subr.mxu0 %v1911
    %2022 = vmatpush1.msra.mxu0 %v1910
    %2023 = vmatprep.subr.mxu0 %v1907
    %2024 = vmatpush1.msra.mxu0 %v1906
    %2025 = vmatprep.subr.mxu0 0.0
    %2026 = vmatpush2.msra.mxu0 0.0
    %2027 = vmatprep.subr.mxu0 0.0
    %2028 = vmatpush2.msra.mxu0 0.0
    %2029 = vmatprep.subr.mxu0 0.0
    %2030 = vmatpush2.msra.mxu0 0.0
    %2031 = vmatprep.subr.mxu0 0.0
    %2032 = vmatpush2.msra.mxu0 0.0
    %2033 = vmatprep.subr.mxu0 0.0
    %2034 = vmatpush2.msra.mxu0 0.0
    %2035 = vmatprep.subr.mxu0 0.0
    %2036 = vmatpush2.msra.mxu0 0.0
    %2037 = vmatprep.subr.mxu0 0.0
    %2038 = vmatpush2.msra.mxu0 0.0
    %2039 = vmatprep.subr.mxu0 0.0
    %2040 = vmatpush2.msra.mxu0 0.0
    %2041 = vmatprep.subr.mxu0 0.0
    %2042 = vmatpush2.msra.mxu0 0.0
    %2043 = vmatprep.subr.mxu0 0.0
    %2044 = vmatpush2.msra.mxu0 0.0
    %2045 = vmatprep.subr.mxu0 0.0
    %2046 = vmatpush2.msra.mxu0 0.0
    %2047 = vmatprep.subr.mxu0 0.0
    %2048 = vmatpush2.msra.mxu0 0.0
    %2049 = vmatprep.subr.mxu0 0.0
    %2050 = vmatpush2.msra.mxu0 0.0
    %2051 = vmatprep.subr.mxu0 0.0
    %2052 = vmatpush2.msra.mxu0 0.0
    %2053 = vmatprep.subr.mxu0 0.0
    %2054 = vmatpush2.msra.mxu0 0.0
    %2055 = vmatprep.subr.mxu0 0.0
    %2056 = vmatpush2.msra.mxu0 0.0
    %2057 = vmatprep.mubr.f32.mxu0 0.0
    %2058 = vmatmul.mubr.f32.gmra.mxu0 %v1898
    %v2059 = vpop.f32.mrf.mxu0
    %v2060 = vadd.f32 %v1976, %v2059
    %v2061 = vpop.f32.mrf.mxu0
    %v2062 = vadd.f32 %v1980, %v2061
    %2063 = vmatprep.mubr.f32.mxu0 0.0
    %2064 = vmatmul.mubr.f32.gmra.mxu0 %v1899
    %v2065 = vpop.f32.mrf.mxu0
    %v2066 = vadd.f32 %v1976, %v2065
    %v2067 = vpop.f32.mrf.mxu0
    %v2068 = vadd.f32 %v1980, %v2067
    %2069 = vmatprep.mubr.f32.mxu0 0.0
    %2070 = vmatmul.mubr.f32.gmra.mxu0 %v1900
    %v2071 = vpop.f32.mrf.mxu0
    %v2072 = vadd.f32 %v1976, %v2071
    %v2073 = vpop.f32.mrf.mxu0
    %v2074 = vadd.f32 %v1980, %v2073
    %2075 = vmatprep.mubr.f32.mxu0 0.0
    %2076 = vmatmul.mubr.f32.gmra.mxu0 %v1901
    %v2077 = vpop.f32.mrf.mxu0
    %v2078 = vadd.f32 %v1976, %v2077
    %v2079 = vpop.f32.mrf.mxu0
    %v2080 = vadd.f32 %v1980, %v2079
    %2081 = vmatprep.mubr.f32.mxu0 0.0
    %2082 = vmatmul.mubr.f32.gmra.mxu0 %v1902
    %v2083 = vpop.f32.mrf.mxu0
    %v2084 = vadd.f32 %v1976, %v2083
    %v2085 = vpop.f32.mrf.mxu0
    %v2086 = vadd.f32 %v1980, %v2085
    %2087 = vmatprep.mubr.f32.mxu0 0.0
    %2088 = vmatmul.mubr.f32.gmra.mxu0 %v1903
    %v2089 = vpop.f32.mrf.mxu0
    %v2090 = vadd.f32 %v1976, %v2089
    %v2091 = vpop.f32.mrf.mxu0
    %v2092 = vadd.f32 %v1980, %v2091
    %2093 = vmatprep.mubr.f32.mxu0 0.0
    %2094 = vmatmul.mubr.f32.gmra.mxu0 %v1904
    %v2095 = vpop.f32.mrf.mxu0
    %v2096 = vadd.f32 %v1976, %v2095
    %v2097 = vpop.f32.mrf.mxu0
    %v2098 = vadd.f32 %v1980, %v2097
    %2099 = vmatprep.mubr.f32.mxu0 0.0
    %2100 = vmatmul.mubr.f32.gmra.mxu0 %v1905
    %v2101 = vpop.f32.mrf.mxu0
    %v2102 = vadd.f32 %v1976, %v2101
    %v2103 = vpop.f32.mrf.mxu0
    %v2104 = vadd.f32 %v1980, %v2103
    %2105 = vdwg.mxu0
    %2106 = vmatprep.subr.mxu0 %v1969
    %2107 = vmatpush1.msra.mxu0 %v1968
    %2108 = vmatprep.subr.mxu0 %v1965
    %2109 = vmatpush1.msra.mxu0 %v1964
    %2110 = vmatprep.subr.mxu0 %v1961
    %2111 = vmatpush1.msra.mxu0 %v1960
    %2112 = vmatprep.subr.mxu0 %v1957
    %2113 = vmatpush1.msra.mxu0 %v1956
    %2114 = vmatprep.subr.mxu0 %v1953
    %2115 = vmatpush1.msra.mxu0 %v1952
    %2116 = vmatprep.subr.mxu0 %v1949
    %2117 = vmatpush1.msra.mxu0 %v1948
    %2118 = vmatprep.subr.mxu0 %v1945
    %2119 = vmatpush1.msra.mxu0 %v1944
    %2120 = vmatprep.subr.mxu0 %v1941
    %2121 = vmatpush1.msra.mxu0 %v1940
    %2122 = vmatprep.subr.mxu0 %v1937
    %2123 = vmatpush1.msra.mxu0 %v1936
    %2124 = vmatprep.subr.mxu0 %v1933
    %2125 = vmatpush1.msra.mxu0 %v1932
    %2126 = vmatprep.subr.mxu0 %v1929
    %2127 = vmatpush1.msra.mxu0 %v1928
    %2128 = vmatprep.subr.mxu0 %v1925
    %2129 = vmatpush1.msra.mxu0 %v1924
    %2130 = vmatprep.subr.mxu0 %v1921
    %2131 = vmatpush1.msra.mxu0 %v1920
    %2132 = vmatprep.subr.mxu0 %v1917
    %2133 = vmatpush1.msra.mxu0 %v1916
    %2134 = vmatprep.subr.mxu0 %v1913
    %2135 = vmatpush1.msra.mxu0 %v1912
    %2136 = vmatprep.subr.mxu0 %v1909
    %2137 = vmatpush1.msra.mxu0 %v1908
    %2138 = vmatprep.subr.mxu0 0.0
    %2139 = vmatpush2.msra.mxu0 0.0
    %2140 = vmatprep.subr.mxu0 0.0
    %2141 = vmatpush2.msra.mxu0 0.0
    %2142 = vmatprep.subr.mxu0 0.0
    %2143 = vmatpush2.msra.mxu0 0.0
    %2144 = vmatprep.subr.mxu0 0.0
    %2145 = vmatpush2.msra.mxu0 0.0
    %2146 = vmatprep.subr.mxu0 0.0
    %2147 = vmatpush2.msra.mxu0 0.0
    %2148 = vmatprep.subr.mxu0 0.0
    %2149 = vmatpush2.msra.mxu0 0.0
    %2150 = vmatprep.subr.mxu0 0.0
    %2151 = vmatpush2.msra.mxu0 0.0
    %2152 = vmatprep.subr.mxu0 0.0
    %2153 = vmatpush2.msra.mxu0 0.0
    %2154 = vmatprep.subr.mxu0 0.0
    %2155 = vmatpush2.msra.mxu0 0.0
    %2156 = vmatprep.subr.mxu0 0.0
    %2157 = vmatpush2.msra.mxu0 0.0
    %2158 = vmatprep.subr.mxu0 0.0
    %2159 = vmatpush2.msra.mxu0 0.0
    %2160 = vmatprep.subr.mxu0 0.0
    %2161 = vmatpush2.msra.mxu0 0.0
    %2162 = vmatprep.subr.mxu0 0.0
    %2163 = vmatpush2.msra.mxu0 0.0
    %2164 = vmatprep.subr.mxu0 0.0
    %2165 = vmatpush2.msra.mxu0 0.0
    %2166 = vmatprep.subr.mxu0 0.0
    %2167 = vmatpush2.msra.mxu0 0.0
    %2168 = vmatprep.subr.mxu0 0.0
    %2169 = vmatpush2.msra.mxu0 0.0
    %2170 = vmatprep.mubr.f32.mxu0 0.0
    %2171 = vmatmul.mubr.f32.gmra.mxu0 %v1898
    %v2172 = vpop.f32.mrf.mxu0
    %v2173 = vadd.f32 %v1984, %v2172
    %v2174 = vpop.f32.mrf.mxu0
    %v2175 = vadd.f32 %v1988, %v2174
    %2176 = vmatprep.mubr.f32.mxu0 0.0
    %2177 = vmatmul.mubr.f32.gmra.mxu0 %v1899
    %v2178 = vpop.f32.mrf.mxu0
    %v2179 = vadd.f32 %v1984, %v2178
    %v2180 = vpop.f32.mrf.mxu0
    %v2181 = vadd.f32 %v1988, %v2180
    %2182 = vmatprep.mubr.f32.mxu0 0.0
    %2183 = vmatmul.mubr.f32.gmra.mxu0 %v1900
    %v2184 = vpop.f32.mrf.mxu0
    %v2185 = vadd.f32 %v1984, %v2184
    %v2186 = vpop.f32.mrf.mxu0
    %v2187 = vadd.f32 %v1988, %v2186
    %2188 = vmatprep.mubr.f32.mxu0 0.0
    %2189 = vmatmul.mubr.f32.gmra.mxu0 %v1901
    %v2190 = vpop.f32.mrf.mxu0
    %v2191 = vadd.f32 %v1984, %v2190
    %v2192 = vpop.f32.mrf.mxu0
    %v2193 = vadd.f32 %v1988, %v2192
    %2194 = vmatprep.mubr.f32.mxu0 0.0
    %2195 = vmatmul.mubr.f32.gmra.mxu0 %v1902
    %v2196 = vpop.f32.mrf.mxu0
    %v2197 = vadd.f32 %v1984, %v2196
    %v2198 = vpop.f32.mrf.mxu0
    %v2199 = vadd.f32 %v1988, %v2198
    %2200 = vmatprep.mubr.f32.mxu0 0.0
    %2201 = vmatmul.mubr.f32.gmra.mxu0 %v1903
    %v2202 = vpop.f32.mrf.mxu0
    %v2203 = vadd.f32 %v1984, %v2202
    %v2204 = vpop.f32.mrf.mxu0
    %v2205 = vadd.f32 %v1988, %v2204
    %2206 = vmatprep.mubr.f32.mxu0 0.0
    %2207 = vmatmul.mubr.f32.gmra.mxu0 %v1904
    %v2208 = vpop.f32.mrf.mxu0
    %v2209 = vadd.f32 %v1984, %v2208
    %v2210 = vpop.f32.mrf.mxu0
    %v2211 = vadd.f32 %v1988, %v2210
    %2212 = vmatprep.mubr.f32.mxu0 0.0
    %2213 = vmatmul.mubr.f32.gmra.mxu0 %v1905
    %v2214 = vpop.f32.mrf.mxu0
    %v2215 = vadd.f32 %v1984, %v2214
    %v2216 = vpop.f32.mrf.mxu0
    %v2217 = vadd.f32 %v1988, %v2216
    %2218 = vdwg.mxu0
    %s2219 = scalar_lea.vmem [#allocation8], 512
    %v2220 = vld [vmem:[%s2219] sm:$0xff]
    %v2221 = vld [vmem:[%s2219 + $0x8] sm:$0xff]
    %v2222 = vld [vmem:[%s2219 + $0x10] sm:$0xff]
    %v2223 = vld [vmem:[%s2219 + $0x18] sm:$0xff]
    %v2224 = vld [vmem:[%s2219 + $0x20] sm:$0xff]
    %v2225 = vld [vmem:[%s2219 + $0x28] sm:$0xff]
    %v2226 = vld [vmem:[%s2219 + $0x30] sm:$0xff]
    %v2227 = vld [vmem:[%s2219 + $0x38] sm:$0xff]
    %v2228 = vld [vmem:[%s2219 + $0x40] sm:$0xff]
    %v2229 = vld [vmem:[%s2219 + $0x48] sm:$0xff]
    %v2230 = vld [vmem:[%s2219 + $0x50] sm:$0xff]
    %v2231 = vld [vmem:[%s2219 + $0x58] sm:$0xff]
    %v2232 = vld [vmem:[%s2219 + $0x60] sm:$0xff]
    %v2233 = vld [vmem:[%s2219 + $0x68] sm:$0xff]
    %v2234 = vld [vmem:[%s2219 + $0x70] sm:$0xff]
    %v2235 = vld [vmem:[%s2219 + $0x78] sm:$0xff]
    %v2236 = vld [vmem:[%s2219 + $0x80] sm:$0xff]
    %v2237 = vld [vmem:[%s2219 + $0x88] sm:$0xff]
    %v2238 = vld [vmem:[%s2219 + $0x90] sm:$0xff]
    %v2239 = vld [vmem:[%s2219 + $0x98] sm:$0xff]
    %v2240 = vld [vmem:[%s2219 + $0xa0] sm:$0xff]
    %v2241 = vld [vmem:[%s2219 + $0xa8] sm:$0xff]
    %v2242 = vld [vmem:[%s2219 + $0xb0] sm:$0xff]
    %v2243 = vld [vmem:[%s2219 + $0xb8] sm:$0xff]
    %v2244 = vld [vmem:[%s2219 + $0xc0] sm:$0xff]
    %v2245 = vld [vmem:[%s2219 + $0xc8] sm:$0xff]
    %v2246 = vld [vmem:[%s2219 + $0xd0] sm:$0xff]
    %v2247 = vld [vmem:[%s2219 + $0xd8] sm:$0xff]
    %v2248 = vld [vmem:[%s2219 + $0xe0] sm:$0xff]
    %v2249 = vld [vmem:[%s2219 + $0xe8] sm:$0xff]
    %v2250 = vld [vmem:[%s2219 + $0xf0] sm:$0xff]
    %v2251 = vld [vmem:[%s2219 + $0xf8] sm:$0xff]
    %v2252 = vld [vmem:[%s2219 + $0x100] sm:$0xff]
    %v2253 = vld [vmem:[%s2219 + $0x108] sm:$0xff]
    %v2254 = vld [vmem:[%s2219 + $0x110] sm:$0xff]
    %v2255 = vld [vmem:[%s2219 + $0x118] sm:$0xff]
    %v2256 = vld [vmem:[%s2219 + $0x120] sm:$0xff]
    %v2257 = vld [vmem:[%s2219 + $0x128] sm:$0xff]
    %v2258 = vld [vmem:[%s2219 + $0x130] sm:$0xff]
    %v2259 = vld [vmem:[%s2219 + $0x138] sm:$0xff]
    %v2260 = vld [vmem:[%s2219 + $0x140] sm:$0xff]
    %v2261 = vld [vmem:[%s2219 + $0x148] sm:$0xff]
    %v2262 = vld [vmem:[%s2219 + $0x150] sm:$0xff]
    %v2263 = vld [vmem:[%s2219 + $0x158] sm:$0xff]
    %v2264 = vld [vmem:[%s2219 + $0x160] sm:$0xff]
    %v2265 = vld [vmem:[%s2219 + $0x168] sm:$0xff]
    %v2266 = vld [vmem:[%s2219 + $0x170] sm:$0xff]
    %v2267 = vld [vmem:[%s2219 + $0x178] sm:$0xff]
    %v2268 = vld [vmem:[%s2219 + $0x180] sm:$0xff]
    %v2269 = vld [vmem:[%s2219 + $0x188] sm:$0xff]
    %v2270 = vld [vmem:[%s2219 + $0x190] sm:$0xff]
    %v2271 = vld [vmem:[%s2219 + $0x198] sm:$0xff]
    %v2272 = vld [vmem:[%s2219 + $0x1a0] sm:$0xff]
    %v2273 = vld [vmem:[%s2219 + $0x1a8] sm:$0xff]
    %v2274 = vld [vmem:[%s2219 + $0x1b0] sm:$0xff]
    %v2275 = vld [vmem:[%s2219 + $0x1b8] sm:$0xff]
    %v2276 = vld [vmem:[%s2219 + $0x1c0] sm:$0xff]
    %v2277 = vld [vmem:[%s2219 + $0x1c8] sm:$0xff]
    %v2278 = vld [vmem:[%s2219 + $0x1d0] sm:$0xff]
    %v2279 = vld [vmem:[%s2219 + $0x1d8] sm:$0xff]
    %v2280 = vld [vmem:[%s2219 + $0x1e0] sm:$0xff]
    %v2281 = vld [vmem:[%s2219 + $0x1e8] sm:$0xff]
    %v2282 = vld [vmem:[%s2219 + $0x1f0] sm:$0xff]
    %v2283 = vld [vmem:[%s2219 + $0x1f8] sm:$0xff]
    %s2284 = scalar_lea.vmem %s7, 8
    %v2285 = vld [vmem:[%s2284] sm:$0xff]
    %s2286 = scalar_lea.vmem %s8, 8
    %v2287 = vld [vmem:[%s2286] sm:$0xff]
    %2288 = vmatprep.subr.mxu0 %v2281
    %2289 = vmatpush1.msra.mxu0 %v2280
    %2290 = vmatprep.subr.mxu0 %v2277
    %2291 = vmatpush1.msra.mxu0 %v2276
    %2292 = vmatprep.subr.mxu0 %v2273
    %2293 = vmatpush1.msra.mxu0 %v2272
    %2294 = vmatprep.subr.mxu0 %v2269
    %2295 = vmatpush1.msra.mxu0 %v2268
    %2296 = vmatprep.subr.mxu0 %v2265
    %2297 = vmatpush1.msra.mxu0 %v2264
    %2298 = vmatprep.subr.mxu0 %v2261
    %2299 = vmatpush1.msra.mxu0 %v2260
    %2300 = vmatprep.subr.mxu0 %v2257
    %2301 = vmatpush1.msra.mxu0 %v2256
    %2302 = vmatprep.subr.mxu0 %v2253
    %2303 = vmatpush1.msra.mxu0 %v2252
    %2304 = vmatprep.subr.mxu0 %v2249
    %2305 = vmatpush1.msra.mxu0 %v2248
    %2306 = vmatprep.subr.mxu0 %v2245
    %2307 = vmatpush1.msra.mxu0 %v2244
    %2308 = vmatprep.subr.mxu0 %v2241
    %2309 = vmatpush1.msra.mxu0 %v2240
    %2310 = vmatprep.subr.mxu0 %v2237
    %2311 = vmatpush1.msra.mxu0 %v2236
    %2312 = vmatprep.subr.mxu0 %v2233
    %2313 = vmatpush1.msra.mxu0 %v2232
    %2314 = vmatprep.subr.mxu0 %v2229
    %2315 = vmatpush1.msra.mxu0 %v2228
    %2316 = vmatprep.subr.mxu0 %v2225
    %2317 = vmatpush1.msra.mxu0 %v2224
    %2318 = vmatprep.subr.mxu0 %v2221
    %2319 = vmatpush1.msra.mxu0 %v2220
    %2320 = vmatprep.subr.mxu0 0.0
    %2321 = vmatpush2.msra.mxu0 0.0
    %2322 = vmatprep.subr.mxu0 0.0
    %2323 = vmatpush2.msra.mxu0 0.0
    %2324 = vmatprep.subr.mxu0 0.0
    %2325 = vmatpush2.msra.mxu0 0.0
    %2326 = vmatprep.subr.mxu0 0.0
    %2327 = vmatpush2.msra.mxu0 0.0
    %2328 = vmatprep.subr.mxu0 0.0
    %2329 = vmatpush2.msra.mxu0 0.0
    %2330 = vmatprep.subr.mxu0 0.0
    %2331 = vmatpush2.msra.mxu0 0.0
    %2332 = vmatprep.subr.mxu0 0.0
    %2333 = vmatpush2.msra.mxu0 0.0
    %2334 = vmatprep.subr.mxu0 0.0
    %2335 = vmatpush2.msra.mxu0 0.0
    %2336 = vmatprep.subr.mxu0 0.0
    %2337 = vmatpush2.msra.mxu0 0.0
    %2338 = vmatprep.subr.mxu0 0.0
    %2339 = vmatpush2.msra.mxu0 0.0
    %2340 = vmatprep.subr.mxu0 0.0
    %2341 = vmatpush2.msra.mxu0 0.0
    %2342 = vmatprep.subr.mxu0 0.0
    %2343 = vmatpush2.msra.mxu0 0.0
    %2344 = vmatprep.subr.mxu0 0.0
    %2345 = vmatpush2.msra.mxu0 0.0
    %2346 = vmatprep.subr.mxu0 0.0
    %2347 = vmatpush2.msra.mxu0 0.0
    %2348 = vmatprep.subr.mxu0 0.0
    %2349 = vmatpush2.msra.mxu0 0.0
    %2350 = vmatprep.subr.mxu0 0.0
    %2351 = vmatpush2.msra.mxu0 0.0
    %2352 = vmatprep.mubr.f32.mxu0 0.0
    %2353 = vmatmul.mubr.f32.gmra.mxu0 %v2285
    %v2354 = vpop.f32.mrf.mxu0
    %v2355 = vadd.f32 0.0, %v2354
    %v2356 = vpop.f32.mrf.mxu0
    %v2357 = vadd.f32 0.0, %v2356
    %2358 = vdwg.mxu0
    %2359 = vmatprep.subr.mxu0 %v2283
    %2360 = vmatpush1.msra.mxu0 %v2282
    %2361 = vmatprep.subr.mxu0 %v2279
    %2362 = vmatpush1.msra.mxu0 %v2278
    %2363 = vmatprep.subr.mxu0 %v2275
    %2364 = vmatpush1.msra.mxu0 %v2274
    %2365 = vmatprep.subr.mxu0 %v2271
    %2366 = vmatpush1.msra.mxu0 %v2270
    %2367 = vmatprep.subr.mxu0 %v2267
    %2368 = vmatpush1.msra.mxu0 %v2266
    %2369 = vmatprep.subr.mxu0 %v2263
    %2370 = vmatpush1.msra.mxu0 %v2262
    %2371 = vmatprep.subr.mxu0 %v2259
    %2372 = vmatpush1.msra.mxu0 %v2258
    %2373 = vmatprep.subr.mxu0 %v2255
    %2374 = vmatpush1.msra.mxu0 %v2254
    %2375 = vmatprep.subr.mxu0 %v2251
    %2376 = vmatpush1.msra.mxu0 %v2250
    %2377 = vmatprep.subr.mxu0 %v2247
    %2378 = vmatpush1.msra.mxu0 %v2246
    %2379 = vmatprep.subr.mxu0 %v2243
    %2380 = vmatpush1.msra.mxu0 %v2242
    %2381 = vmatprep.subr.mxu0 %v2239
    %2382 = vmatpush1.msra.mxu0 %v2238
    %2383 = vmatprep.subr.mxu0 %v2235
    %2384 = vmatpush1.msra.mxu0 %v2234
    %2385 = vmatprep.subr.mxu0 %v2231
    %2386 = vmatpush1.msra.mxu0 %v2230
    %2387 = vmatprep.subr.mxu0 %v2227
    %2388 = vmatpush1.msra.mxu0 %v2226
    %2389 = vmatprep.subr.mxu0 %v2223
    %2390 = vmatpush1.msra.mxu0 %v2222
    %2391 = vmatprep.subr.mxu0 0.0
    %2392 = vmatpush2.msra.mxu0 0.0
    %2393 = vmatprep.subr.mxu0 0.0
    %2394 = vmatpush2.msra.mxu0 0.0
    %2395 = vmatprep.subr.mxu0 0.0
    %2396 = vmatpush2.msra.mxu0 0.0
    %2397 = vmatprep.subr.mxu0 0.0
    %2398 = vmatpush2.msra.mxu0 0.0
    %2399 = vmatprep.subr.mxu0 0.0
    %2400 = vmatpush2.msra.mxu0 0.0
    %2401 = vmatprep.subr.mxu0 0.0
    %2402 = vmatpush2.msra.mxu0 0.0
    %2403 = vmatprep.subr.mxu0 0.0
    %2404 = vmatpush2.msra.mxu0 0.0
    %2405 = vmatprep.subr.mxu0 0.0
    %2406 = vmatpush2.msra.mxu0 0.0
    %2407 = vmatprep.subr.mxu0 0.0
    %2408 = vmatpush2.msra.mxu0 0.0
    %2409 = vmatprep.subr.mxu0 0.0
    %2410 = vmatpush2.msra.mxu0 0.0
    %2411 = vmatprep.subr.mxu0 0.0
    %2412 = vmatpush2.msra.mxu0 0.0
    %2413 = vmatprep.subr.mxu0 0.0
    %2414 = vmatpush2.msra.mxu0 0.0
    %2415 = vmatprep.subr.mxu0 0.0
    %2416 = vmatpush2.msra.mxu0 0.0
    %2417 = vmatprep.subr.mxu0 0.0
    %2418 = vmatpush2.msra.mxu0 0.0
    %2419 = vmatprep.subr.mxu0 0.0
    %2420 = vmatpush2.msra.mxu0 0.0
    %2421 = vmatprep.subr.mxu0 0.0
    %2422 = vmatpush2.msra.mxu0 0.0
    %2423 = vmatprep.mubr.f32.mxu0 0.0
    %2424 = vmatmul.mubr.f32.gmra.mxu0 %v2285
    %v2425 = vpop.f32.mrf.mxu0
    %v2426 = vadd.f32 0.0, %v2425
    %v2427 = vpop.f32.mrf.mxu0
    %v2428 = vadd.f32 0.0, %v2427
    %2429 = vdwg.mxu0
    %v2430 = vadd.f32 %v2060, %v2355
    %v2431 = vadd.f32 %v2062, %v2357
    %v2432 = vadd.f32 %v2173, %v2426
    %v2433 = vadd.f32 %v2175, %v2428
    %v2434 = vxor.u32 %v2430, 2147483648
    %v2435 = vmul.f32 %v2434, 1.442695
    %v2436 = vpow.pop %v2435
    %v2437 = vadd.f32 %v2436, 1.0
    %v2438 = vrcp.pop %v2437
    %v2439 = vmul.f32 1.0, %v2438
    %v2440 = vxor.u32 %v2431, 2147483648
    %v2441 = vmul.f32 %v2440, 1.442695
    %v2442 = vpow.pop %v2441
    %v2443 = vadd.f32 %v2442, 1.0
    %v2444 = vrcp.pop %v2443
    %v2445 = vmul.f32 1.0, %v2444
    %v2446 = vtanh.pop %v2432
    %v2447 = vxor.u32 %v2433, 2147483648
    %v2448 = vmul.f32 %v2447, 1.442695
    %v2449 = vpow.pop %v2448
    %v2450 = vadd.f32 %v2449, 1.0
    %v2451 = vrcp.pop %v2450
    %v2452 = vmul.f32 1.0, %v2451
    %v2453 = vmul.f32 %v2445, %v2287
    %v2454 = vmul.f32 %v2439, %v2446
    %v2455 = vadd.f32 %v2453, %v2454
    %v2456 = vtanh.pop %v2455
    %v2457 = vmul.f32 %v2452, %v2456
    %2458 = vst [vmem:[#allocation2] sm:$0xff] %v2457
    %2459 = vmatprep.subr.mxu0 %v2281
    %2460 = vmatpush1.msra.mxu0 %v2280
    %2461 = vmatprep.subr.mxu0 %v2277
    %2462 = vmatpush1.msra.mxu0 %v2276
    %2463 = vmatprep.subr.mxu0 %v2273
    %2464 = vmatpush1.msra.mxu0 %v2272
    %2465 = vmatprep.subr.mxu0 %v2269
    %2466 = vmatpush1.msra.mxu0 %v2268
    %2467 = vmatprep.subr.mxu0 %v2265
    %2468 = vmatpush1.msra.mxu0 %v2264
    %2469 = vmatprep.subr.mxu0 %v2261
    %2470 = vmatpush1.msra.mxu0 %v2260
    %2471 = vmatprep.subr.mxu0 %v2257
    %2472 = vmatpush1.msra.mxu0 %v2256
    %2473 = vmatprep.subr.mxu0 %v2253
    %2474 = vmatpush1.msra.mxu0 %v2252
    %2475 = vmatprep.subr.mxu0 %v2249
    %2476 = vmatpush1.msra.mxu0 %v2248
    %2477 = vmatprep.subr.mxu0 %v2245
    %2478 = vmatpush1.msra.mxu0 %v2244
    %2479 = vmatprep.subr.mxu0 %v2241
    %2480 = vmatpush1.msra.mxu0 %v2240
    %2481 = vmatprep.subr.mxu0 %v2237
    %2482 = vmatpush1.msra.mxu0 %v2236
    %2483 = vmatprep.subr.mxu0 %v2233
    %2484 = vmatpush1.msra.mxu0 %v2232
    %2485 = vmatprep.subr.mxu0 %v2229
    %2486 = vmatpush1.msra.mxu0 %v2228
    %2487 = vmatprep.subr.mxu0 %v2225
    %2488 = vmatpush1.msra.mxu0 %v2224
    %2489 = vmatprep.subr.mxu0 %v2221
    %2490 = vmatpush1.msra.mxu0 %v2220
    %2491 = vmatprep.subr.mxu0 0.0
    %2492 = vmatpush2.msra.mxu0 0.0
    %2493 = vmatprep.subr.mxu0 0.0
    %2494 = vmatpush2.msra.mxu0 0.0
    %2495 = vmatprep.subr.mxu0 0.0
    %2496 = vmatpush2.msra.mxu0 0.0
    %2497 = vmatprep.subr.mxu0 0.0
    %2498 = vmatpush2.msra.mxu0 0.0
    %2499 = vmatprep.subr.mxu0 0.0
    %2500 = vmatpush2.msra.mxu0 0.0
    %2501 = vmatprep.subr.mxu0 0.0
    %2502 = vmatpush2.msra.mxu0 0.0
    %2503 = vmatprep.subr.mxu0 0.0
    %2504 = vmatpush2.msra.mxu0 0.0
    %2505 = vmatprep.subr.mxu0 0.0
    %2506 = vmatpush2.msra.mxu0 0.0
    %2507 = vmatprep.subr.mxu0 0.0
    %2508 = vmatpush2.msra.mxu0 0.0
    %2509 = vmatprep.subr.mxu0 0.0
    %2510 = vmatpush2.msra.mxu0 0.0
    %2511 = vmatprep.subr.mxu0 0.0
    %2512 = vmatpush2.msra.mxu0 0.0
    %2513 = vmatprep.subr.mxu0 0.0
    %2514 = vmatpush2.msra.mxu0 0.0
    %2515 = vmatprep.subr.mxu0 0.0
    %2516 = vmatpush2.msra.mxu0 0.0
    %2517 = vmatprep.subr.mxu0 0.0
    %2518 = vmatpush2.msra.mxu0 0.0
    %2519 = vmatprep.subr.mxu0 0.0
    %2520 = vmatpush2.msra.mxu0 0.0
    %2521 = vmatprep.subr.mxu0 0.0
    %2522 = vmatpush2.msra.mxu0 0.0
    %2523 = vmatprep.mubr.f32.mxu0 0.0
    %2524 = vmatmul.mubr.f32.gmra.mxu0 %v2457
    %v2525 = vpop.f32.mrf.mxu0
    %v2526 = vadd.f32 0.0, %v2525
    %v2527 = vpop.f32.mrf.mxu0
    %v2528 = vadd.f32 0.0, %v2527
    %2529 = vdwg.mxu0
    %2530 = vmatprep.subr.mxu0 %v2283
    %2531 = vmatpush1.msra.mxu0 %v2282
    %2532 = vmatprep.subr.mxu0 %v2279
    %2533 = vmatpush1.msra.mxu0 %v2278
    %2534 = vmatprep.subr.mxu0 %v2275
    %2535 = vmatpush1.msra.mxu0 %v2274
    %2536 = vmatprep.subr.mxu0 %v2271
    %2537 = vmatpush1.msra.mxu0 %v2270
    %2538 = vmatprep.subr.mxu0 %v2267
    %2539 = vmatpush1.msra.mxu0 %v2266
    %2540 = vmatprep.subr.mxu0 %v2263
    %2541 = vmatpush1.msra.mxu0 %v2262
    %2542 = vmatprep.subr.mxu0 %v2259
    %2543 = vmatpush1.msra.mxu0 %v2258
    %2544 = vmatprep.subr.mxu0 %v2255
    %2545 = vmatpush1.msra.mxu0 %v2254
    %2546 = vmatprep.subr.mxu0 %v2251
    %2547 = vmatpush1.msra.mxu0 %v2250
    %2548 = vmatprep.subr.mxu0 %v2247
    %2549 = vmatpush1.msra.mxu0 %v2246
    %2550 = vmatprep.subr.mxu0 %v2243
    %2551 = vmatpush1.msra.mxu0 %v2242
    %2552 = vmatprep.subr.mxu0 %v2239
    %2553 = vmatpush1.msra.mxu0 %v2238
    %2554 = vmatprep.subr.mxu0 %v2235
    %2555 = vmatpush1.msra.mxu0 %v2234
    %2556 = vmatprep.subr.mxu0 %v2231
    %2557 = vmatpush1.msra.mxu0 %v2230
    %2558 = vmatprep.subr.mxu0 %v2227
    %2559 = vmatpush1.msra.mxu0 %v2226
    %2560 = vmatprep.subr.mxu0 %v2223
    %2561 = vmatpush1.msra.mxu0 %v2222
    %2562 = vmatprep.subr.mxu0 0.0
    %2563 = vmatpush2.msra.mxu0 0.0
    %2564 = vmatprep.subr.mxu0 0.0
    %2565 = vmatpush2.msra.mxu0 0.0
    %2566 = vmatprep.subr.mxu0 0.0
    %2567 = vmatpush2.msra.mxu0 0.0
    %2568 = vmatprep.subr.mxu0 0.0
    %2569 = vmatpush2.msra.mxu0 0.0
    %2570 = vmatprep.subr.mxu0 0.0
    %2571 = vmatpush2.msra.mxu0 0.0
    %2572 = vmatprep.subr.mxu0 0.0
    %2573 = vmatpush2.msra.mxu0 0.0
    %2574 = vmatprep.subr.mxu0 0.0
    %2575 = vmatpush2.msra.mxu0 0.0
    %2576 = vmatprep.subr.mxu0 0.0
    %2577 = vmatpush2.msra.mxu0 0.0
    %2578 = vmatprep.subr.mxu0 0.0
    %2579 = vmatpush2.msra.mxu0 0.0
    %2580 = vmatprep.subr.mxu0 0.0
    %2581 = vmatpush2.msra.mxu0 0.0
    %2582 = vmatprep.subr.mxu0 0.0
    %2583 = vmatpush2.msra.mxu0 0.0
    %2584 = vmatprep.subr.mxu0 0.0
    %2585 = vmatpush2.msra.mxu0 0.0
    %2586 = vmatprep.subr.mxu0 0.0
    %2587 = vmatpush2.msra.mxu0 0.0
    %2588 = vmatprep.subr.mxu0 0.0
    %2589 = vmatpush2.msra.mxu0 0.0
    %2590 = vmatprep.subr.mxu0 0.0
    %2591 = vmatpush2.msra.mxu0 0.0
    %2592 = vmatprep.subr.mxu0 0.0
    %2593 = vmatpush2.msra.mxu0 0.0
    %2594 = vmatprep.mubr.f32.mxu0 0.0
    %2595 = vmatmul.mubr.f32.gmra.mxu0 %v2457
    %v2596 = vpop.f32.mrf.mxu0
    %v2597 = vadd.f32 0.0, %v2596
    %v2598 = vpop.f32.mrf.mxu0
    %v2599 = vadd.f32 0.0, %v2598
    %2600 = vdwg.mxu0
    %v2601 = vadd.f32 %v2066, %v2526
    %v2602 = vadd.f32 %v2068, %v2528
    %v2603 = vadd.f32 %v2179, %v2597
    %v2604 = vadd.f32 %v2181, %v2599
    %v2605 = vxor.u32 %v2601, 2147483648
    %v2606 = vmul.f32 %v2605, 1.442695
    %v2607 = vpow.pop %v2606
    %v2608 = vadd.f32 %v2607, 1.0
    %v2609 = vrcp.pop %v2608
    %v2610 = vmul.f32 1.0, %v2609
    %v2611 = vxor.u32 %v2602, 2147483648
    %v2612 = vmul.f32 %v2611, 1.442695
    %v2613 = vpow.pop %v2612
    %v2614 = vadd.f32 %v2613, 1.0
    %v2615 = vrcp.pop %v2614
    %v2616 = vmul.f32 1.0, %v2615
    %v2617 = vtanh.pop %v2603
    %v2618 = vxor.u32 %v2604, 2147483648
    %v2619 = vmul.f32 %v2618, 1.442695
    %v2620 = vpow.pop %v2619
    %v2621 = vadd.f32 %v2620, 1.0
    %v2622 = vrcp.pop %v2621
    %v2623 = vmul.f32 1.0, %v2622
    %v2624 = vmul.f32 %v2616, %v2455
    %v2625 = vmul.f32 %v2610, %v2617
    %v2626 = vadd.f32 %v2624, %v2625
    %v2627 = vtanh.pop %v2626
    %v2628 = vmul.f32 %v2623, %v2627
    %2629 = vst [vmem:[#allocation2 + $0x8] sm:$0xff] %v2628
    %2630 = vmatprep.subr.mxu0 %v2281
    %2631 = vmatpush1.msra.mxu0 %v2280
    %2632 = vmatprep.subr.mxu0 %v2277
    %2633 = vmatpush1.msra.mxu0 %v2276
    %2634 = vmatprep.subr.mxu0 %v2273
    %2635 = vmatpush1.msra.mxu0 %v2272
    %2636 = vmatprep.subr.mxu0 %v2269
    %2637 = vmatpush1.msra.mxu0 %v2268
    %2638 = vmatprep.subr.mxu0 %v2265
    %2639 = vmatpush1.msra.mxu0 %v2264
    %2640 = vmatprep.subr.mxu0 %v2261
    %2641 = vmatpush1.msra.mxu0 %v2260
    %2642 = vmatprep.subr.mxu0 %v2257
    %2643 = vmatpush1.msra.mxu0 %v2256
    %2644 = vmatprep.subr.mxu0 %v2253
    %2645 = vmatpush1.msra.mxu0 %v2252
    %2646 = vmatprep.subr.mxu0 %v2249
    %2647 = vmatpush1.msra.mxu0 %v2248
    %2648 = vmatprep.subr.mxu0 %v2245
    %2649 = vmatpush1.msra.mxu0 %v2244
    %2650 = vmatprep.subr.mxu0 %v2241
    %2651 = vmatpush1.msra.mxu0 %v2240
    %2652 = vmatprep.subr.mxu0 %v2237
    %2653 = vmatpush1.msra.mxu0 %v2236
    %2654 = vmatprep.subr.mxu0 %v2233
    %2655 = vmatpush1.msra.mxu0 %v2232
    %2656 = vmatprep.subr.mxu0 %v2229
    %2657 = vmatpush1.msra.mxu0 %v2228
    %2658 = vmatprep.subr.mxu0 %v2225
    %2659 = vmatpush1.msra.mxu0 %v2224
    %2660 = vmatprep.subr.mxu0 %v2221
    %2661 = vmatpush1.msra.mxu0 %v2220
    %2662 = vmatprep.subr.mxu0 0.0
    %2663 = vmatpush2.msra.mxu0 0.0
    %2664 = vmatprep.subr.mxu0 0.0
    %2665 = vmatpush2.msra.mxu0 0.0
    %2666 = vmatprep.subr.mxu0 0.0
    %2667 = vmatpush2.msra.mxu0 0.0
    %2668 = vmatprep.subr.mxu0 0.0
    %2669 = vmatpush2.msra.mxu0 0.0
    %2670 = vmatprep.subr.mxu0 0.0
    %2671 = vmatpush2.msra.mxu0 0.0
    %2672 = vmatprep.subr.mxu0 0.0
    %2673 = vmatpush2.msra.mxu0 0.0
    %2674 = vmatprep.subr.mxu0 0.0
    %2675 = vmatpush2.msra.mxu0 0.0
    %2676 = vmatprep.subr.mxu0 0.0
    %2677 = vmatpush2.msra.mxu0 0.0
    %2678 = vmatprep.subr.mxu0 0.0
    %2679 = vmatpush2.msra.mxu0 0.0
    %2680 = vmatprep.subr.mxu0 0.0
    %2681 = vmatpush2.msra.mxu0 0.0
    %2682 = vmatprep.subr.mxu0 0.0
    %2683 = vmatpush2.msra.mxu0 0.0
    %2684 = vmatprep.subr.mxu0 0.0
    %2685 = vmatpush2.msra.mxu0 0.0
    %2686 = vmatprep.subr.mxu0 0.0
    %2687 = vmatpush2.msra.mxu0 0.0
    %2688 = vmatprep.subr.mxu0 0.0
    %2689 = vmatpush2.msra.mxu0 0.0
    %2690 = vmatprep.subr.mxu0 0.0
    %2691 = vmatpush2.msra.mxu0 0.0
    %2692 = vmatprep.subr.mxu0 0.0
    %2693 = vmatpush2.msra.mxu0 0.0
    %2694 = vmatprep.mubr.f32.mxu0 0.0
    %2695 = vmatmul.mubr.f32.gmra.mxu0 %v2628
    %v2696 = vpop.f32.mrf.mxu0
    %v2697 = vadd.f32 0.0, %v2696
    %v2698 = vpop.f32.mrf.mxu0
    %v2699 = vadd.f32 0.0, %v2698
    %2700 = vdwg.mxu0
    %2701 = vmatprep.subr.mxu0 %v2283
    %2702 = vmatpush1.msra.mxu0 %v2282
    %2703 = vmatprep.subr.mxu0 %v2279
    %2704 = vmatpush1.msra.mxu0 %v2278
    %2705 = vmatprep.subr.mxu0 %v2275
    %2706 = vmatpush1.msra.mxu0 %v2274
    %2707 = vmatprep.subr.mxu0 %v2271
    %2708 = vmatpush1.msra.mxu0 %v2270
    %2709 = vmatprep.subr.mxu0 %v2267
    %2710 = vmatpush1.msra.mxu0 %v2266
    %2711 = vmatprep.subr.mxu0 %v2263
    %2712 = vmatpush1.msra.mxu0 %v2262
    %2713 = vmatprep.subr.mxu0 %v2259
    %2714 = vmatpush1.msra.mxu0 %v2258
    %2715 = vmatprep.subr.mxu0 %v2255
    %2716 = vmatpush1.msra.mxu0 %v2254
    %2717 = vmatprep.subr.mxu0 %v2251
    %2718 = vmatpush1.msra.mxu0 %v2250
    %2719 = vmatprep.subr.mxu0 %v2247
    %2720 = vmatpush1.msra.mxu0 %v2246
    %2721 = vmatprep.subr.mxu0 %v2243
    %2722 = vmatpush1.msra.mxu0 %v2242
    %2723 = vmatprep.subr.mxu0 %v2239
    %2724 = vmatpush1.msra.mxu0 %v2238
    %2725 = vmatprep.subr.mxu0 %v2235
    %2726 = vmatpush1.msra.mxu0 %v2234
    %2727 = vmatprep.subr.mxu0 %v2231
    %2728 = vmatpush1.msra.mxu0 %v2230
    %2729 = vmatprep.subr.mxu0 %v2227
    %2730 = vmatpush1.msra.mxu0 %v2226
    %2731 = vmatprep.subr.mxu0 %v2223
    %2732 = vmatpush1.msra.mxu0 %v2222
    %2733 = vmatprep.subr.mxu0 0.0
    %2734 = vmatpush2.msra.mxu0 0.0
    %2735 = vmatprep.subr.mxu0 0.0
    %2736 = vmatpush2.msra.mxu0 0.0
    %2737 = vmatprep.subr.mxu0 0.0
    %2738 = vmatpush2.msra.mxu0 0.0
    %2739 = vmatprep.subr.mxu0 0.0
    %2740 = vmatpush2.msra.mxu0 0.0
    %2741 = vmatprep.subr.mxu0 0.0
    %2742 = vmatpush2.msra.mxu0 0.0
    %2743 = vmatprep.subr.mxu0 0.0
    %2744 = vmatpush2.msra.mxu0 0.0
    %2745 = vmatprep.subr.mxu0 0.0
    %2746 = vmatpush2.msra.mxu0 0.0
    %2747 = vmatprep.subr.mxu0 0.0
    %2748 = vmatpush2.msra.mxu0 0.0
    %2749 = vmatprep.subr.mxu0 0.0
    %2750 = vmatpush2.msra.mxu0 0.0
    %2751 = vmatprep.subr.mxu0 0.0
    %2752 = vmatpush2.msra.mxu0 0.0
    %2753 = vmatprep.subr.mxu0 0.0
    %2754 = vmatpush2.msra.mxu0 0.0
    %2755 = vmatprep.subr.mxu0 0.0
    %2756 = vmatpush2.msra.mxu0 0.0
    %2757 = vmatprep.subr.mxu0 0.0
    %2758 = vmatpush2.msra.mxu0 0.0
    %2759 = vmatprep.subr.mxu0 0.0
    %2760 = vmatpush2.msra.mxu0 0.0
    %2761 = vmatprep.subr.mxu0 0.0
    %2762 = vmatpush2.msra.mxu0 0.0
    %2763 = vmatprep.subr.mxu0 0.0
    %2764 = vmatpush2.msra.mxu0 0.0
    %2765 = vmatprep.mubr.f32.mxu0 0.0
    %2766 = vmatmul.mubr.f32.gmra.mxu0 %v2628
    %v2767 = vpop.f32.mrf.mxu0
    %v2768 = vadd.f32 0.0, %v2767
    %v2769 = vpop.f32.mrf.mxu0
    %v2770 = vadd.f32 0.0, %v2769
    %2771 = vdwg.mxu0
    %v2772 = vadd.f32 %v2072, %v2697
    %v2773 = vadd.f32 %v2074, %v2699
    %v2774 = vadd.f32 %v2185, %v2768
    %v2775 = vadd.f32 %v2187, %v2770
    %v2776 = vxor.u32 %v2772, 2147483648
    %v2777 = vmul.f32 %v2776, 1.442695
    %v2778 = vpow.pop %v2777
    %v2779 = vadd.f32 %v2778, 1.0
    %v2780 = vrcp.pop %v2779
    %v2781 = vmul.f32 1.0, %v2780
    %v2782 = vxor.u32 %v2773, 2147483648
    %v2783 = vmul.f32 %v2782, 1.442695
    %v2784 = vpow.pop %v2783
    %v2785 = vadd.f32 %v2784, 1.0
    %v2786 = vrcp.pop %v2785
    %v2787 = vmul.f32 1.0, %v2786
    %v2788 = vtanh.pop %v2774
    %v2789 = vxor.u32 %v2775, 2147483648
    %v2790 = vmul.f32 %v2789, 1.442695
    %v2791 = vpow.pop %v2790
    %v2792 = vadd.f32 %v2791, 1.0
    %v2793 = vrcp.pop %v2792
    %v2794 = vmul.f32 1.0, %v2793
    %v2795 = vmul.f32 %v2787, %v2626
    %v2796 = vmul.f32 %v2781, %v2788
    %v2797 = vadd.f32 %v2795, %v2796
    %v2798 = vtanh.pop %v2797
    %v2799 = vmul.f32 %v2794, %v2798
    %2800 = vst [vmem:[#allocation2 + $0x10] sm:$0xff] %v2799
    %2801 = vmatprep.subr.mxu0 %v2281
    %2802 = vmatpush1.msra.mxu0 %v2280
    %2803 = vmatprep.subr.mxu0 %v2277
    %2804 = vmatpush1.msra.mxu0 %v2276
    %2805 = vmatprep.subr.mxu0 %v2273
    %2806 = vmatpush1.msra.mxu0 %v2272
    %2807 = vmatprep.subr.mxu0 %v2269
    %2808 = vmatpush1.msra.mxu0 %v2268
    %2809 = vmatprep.subr.mxu0 %v2265
    %2810 = vmatpush1.msra.mxu0 %v2264
    %2811 = vmatprep.subr.mxu0 %v2261
    %2812 = vmatpush1.msra.mxu0 %v2260
    %2813 = vmatprep.subr.mxu0 %v2257
    %2814 = vmatpush1.msra.mxu0 %v2256
    %2815 = vmatprep.subr.mxu0 %v2253
    %2816 = vmatpush1.msra.mxu0 %v2252
    %2817 = vmatprep.subr.mxu0 %v2249
    %2818 = vmatpush1.msra.mxu0 %v2248
    %2819 = vmatprep.subr.mxu0 %v2245
    %2820 = vmatpush1.msra.mxu0 %v2244
    %2821 = vmatprep.subr.mxu0 %v2241
    %2822 = vmatpush1.msra.mxu0 %v2240
    %2823 = vmatprep.subr.mxu0 %v2237
    %2824 = vmatpush1.msra.mxu0 %v2236
    %2825 = vmatprep.subr.mxu0 %v2233
    %2826 = vmatpush1.msra.mxu0 %v2232
    %2827 = vmatprep.subr.mxu0 %v2229
    %2828 = vmatpush1.msra.mxu0 %v2228
    %2829 = vmatprep.subr.mxu0 %v2225
    %2830 = vmatpush1.msra.mxu0 %v2224
    %2831 = vmatprep.subr.mxu0 %v2221
    %2832 = vmatpush1.msra.mxu0 %v2220
    %2833 = vmatprep.subr.mxu0 0.0
    %2834 = vmatpush2.msra.mxu0 0.0
    %2835 = vmatprep.subr.mxu0 0.0
    %2836 = vmatpush2.msra.mxu0 0.0
    %2837 = vmatprep.subr.mxu0 0.0
    %2838 = vmatpush2.msra.mxu0 0.0
    %2839 = vmatprep.subr.mxu0 0.0
    %2840 = vmatpush2.msra.mxu0 0.0
    %2841 = vmatprep.subr.mxu0 0.0
    %2842 = vmatpush2.msra.mxu0 0.0
    %2843 = vmatprep.subr.mxu0 0.0
    %2844 = vmatpush2.msra.mxu0 0.0
    %2845 = vmatprep.subr.mxu0 0.0
    %2846 = vmatpush2.msra.mxu0 0.0
    %2847 = vmatprep.subr.mxu0 0.0
    %2848 = vmatpush2.msra.mxu0 0.0
    %2849 = vmatprep.subr.mxu0 0.0
    %2850 = vmatpush2.msra.mxu0 0.0
    %2851 = vmatprep.subr.mxu0 0.0
    %2852 = vmatpush2.msra.mxu0 0.0
    %2853 = vmatprep.subr.mxu0 0.0
    %2854 = vmatpush2.msra.mxu0 0.0
    %2855 = vmatprep.subr.mxu0 0.0
    %2856 = vmatpush2.msra.mxu0 0.0
    %2857 = vmatprep.subr.mxu0 0.0
    %2858 = vmatpush2.msra.mxu0 0.0
    %2859 = vmatprep.subr.mxu0 0.0
    %2860 = vmatpush2.msra.mxu0 0.0
    %2861 = vmatprep.subr.mxu0 0.0
    %2862 = vmatpush2.msra.mxu0 0.0
    %2863 = vmatprep.subr.mxu0 0.0
    %2864 = vmatpush2.msra.mxu0 0.0
    %2865 = vmatprep.mubr.f32.mxu0 0.0
    %2866 = vmatmul.mubr.f32.gmra.mxu0 %v2799
    %v2867 = vpop.f32.mrf.mxu0
    %v2868 = vadd.f32 0.0, %v2867
    %v2869 = vpop.f32.mrf.mxu0
    %v2870 = vadd.f32 0.0, %v2869
    %2871 = vdwg.mxu0
    %2872 = vmatprep.subr.mxu0 %v2283
    %2873 = vmatpush1.msra.mxu0 %v2282
    %2874 = vmatprep.subr.mxu0 %v2279
    %2875 = vmatpush1.msra.mxu0 %v2278
    %2876 = vmatprep.subr.mxu0 %v2275
    %2877 = vmatpush1.msra.mxu0 %v2274
    %2878 = vmatprep.subr.mxu0 %v2271
    %2879 = vmatpush1.msra.mxu0 %v2270
    %2880 = vmatprep.subr.mxu0 %v2267
    %2881 = vmatpush1.msra.mxu0 %v2266
    %2882 = vmatprep.subr.mxu0 %v2263
    %2883 = vmatpush1.msra.mxu0 %v2262
    %2884 = vmatprep.subr.mxu0 %v2259
    %2885 = vmatpush1.msra.mxu0 %v2258
    %2886 = vmatprep.subr.mxu0 %v2255
    %2887 = vmatpush1.msra.mxu0 %v2254
    %2888 = vmatprep.subr.mxu0 %v2251
    %2889 = vmatpush1.msra.mxu0 %v2250
    %2890 = vmatprep.subr.mxu0 %v2247
    %2891 = vmatpush1.msra.mxu0 %v2246
    %2892 = vmatprep.subr.mxu0 %v2243
    %2893 = vmatpush1.msra.mxu0 %v2242
    %2894 = vmatprep.subr.mxu0 %v2239
    %2895 = vmatpush1.msra.mxu0 %v2238
    %2896 = vmatprep.subr.mxu0 %v2235
    %2897 = vmatpush1.msra.mxu0 %v2234
    %2898 = vmatprep.subr.mxu0 %v2231
    %2899 = vmatpush1.msra.mxu0 %v2230
    %2900 = vmatprep.subr.mxu0 %v2227
    %2901 = vmatpush1.msra.mxu0 %v2226
    %2902 = vmatprep.subr.mxu0 %v2223
    %2903 = vmatpush1.msra.mxu0 %v2222
    %2904 = vmatprep.subr.mxu0 0.0
    %2905 = vmatpush2.msra.mxu0 0.0
    %2906 = vmatprep.subr.mxu0 0.0
    %2907 = vmatpush2.msra.mxu0 0.0
    %2908 = vmatprep.subr.mxu0 0.0
    %2909 = vmatpush2.msra.mxu0 0.0
    %2910 = vmatprep.subr.mxu0 0.0
    %2911 = vmatpush2.msra.mxu0 0.0
    %2912 = vmatprep.subr.mxu0 0.0
    %2913 = vmatpush2.msra.mxu0 0.0
    %2914 = vmatprep.subr.mxu0 0.0
    %2915 = vmatpush2.msra.mxu0 0.0
    %2916 = vmatprep.subr.mxu0 0.0
    %2917 = vmatpush2.msra.mxu0 0.0
    %2918 = vmatprep.subr.mxu0 0.0
    %2919 = vmatpush2.msra.mxu0 0.0
    %2920 = vmatprep.subr.mxu0 0.0
    %2921 = vmatpush2.msra.mxu0 0.0
    %2922 = vmatprep.subr.mxu0 0.0
    %2923 = vmatpush2.msra.mxu0 0.0
    %2924 = vmatprep.subr.mxu0 0.0
    %2925 = vmatpush2.msra.mxu0 0.0
    %2926 = vmatprep.subr.mxu0 0.0
    %2927 = vmatpush2.msra.mxu0 0.0
    %2928 = vmatprep.subr.mxu0 0.0
    %2929 = vmatpush2.msra.mxu0 0.0
    %2930 = vmatprep.subr.mxu0 0.0
    %2931 = vmatpush2.msra.mxu0 0.0
    %2932 = vmatprep.subr.mxu0 0.0
    %2933 = vmatpush2.msra.mxu0 0.0
    %2934 = vmatprep.subr.mxu0 0.0
    %2935 = vmatpush2.msra.mxu0 0.0
    %2936 = vmatprep.mubr.f32.mxu0 0.0
    %2937 = vmatmul.mubr.f32.gmra.mxu0 %v2799
    %v2938 = vpop.f32.mrf.mxu0
    %v2939 = vadd.f32 0.0, %v2938
    %v2940 = vpop.f32.mrf.mxu0
    %v2941 = vadd.f32 0.0, %v2940
    %2942 = vdwg.mxu0
    %v2943 = vadd.f32 %v2078, %v2868
    %v2944 = vadd.f32 %v2080, %v2870
    %v2945 = vadd.f32 %v2191, %v2939
    %v2946 = vadd.f32 %v2193, %v2941
    %v2947 = vxor.u32 %v2943, 2147483648
    %v2948 = vmul.f32 %v2947, 1.442695
    %v2949 = vpow.pop %v2948
    %v2950 = vadd.f32 %v2949, 1.0
    %v2951 = vrcp.pop %v2950
    %v2952 = vmul.f32 1.0, %v2951
    %v2953 = vxor.u32 %v2944, 2147483648
    %v2954 = vmul.f32 %v2953, 1.442695
    %v2955 = vpow.pop %v2954
    %v2956 = vadd.f32 %v2955, 1.0
    %v2957 = vrcp.pop %v2956
    %v2958 = vmul.f32 1.0, %v2957
    %v2959 = vtanh.pop %v2945
    %v2960 = vxor.u32 %v2946, 2147483648
    %v2961 = vmul.f32 %v2960, 1.442695
    %v2962 = vpow.pop %v2961
    %v2963 = vadd.f32 %v2962, 1.0
    %v2964 = vrcp.pop %v2963
    %v2965 = vmul.f32 1.0, %v2964
    %v2966 = vmul.f32 %v2958, %v2797
    %v2967 = vmul.f32 %v2952, %v2959
    %v2968 = vadd.f32 %v2966, %v2967
    %v2969 = vtanh.pop %v2968
    %v2970 = vmul.f32 %v2965, %v2969
    %2971 = vst [vmem:[#allocation2 + $0x18] sm:$0xff] %v2970
    %2972 = vmatprep.subr.mxu0 %v2281
    %2973 = vmatpush1.msra.mxu0 %v2280
    %2974 = vmatprep.subr.mxu0 %v2277
    %2975 = vmatpush1.msra.mxu0 %v2276
    %2976 = vmatprep.subr.mxu0 %v2273
    %2977 = vmatpush1.msra.mxu0 %v2272
    %2978 = vmatprep.subr.mxu0 %v2269
    %2979 = vmatpush1.msra.mxu0 %v2268
    %2980 = vmatprep.subr.mxu0 %v2265
    %2981 = vmatpush1.msra.mxu0 %v2264
    %2982 = vmatprep.subr.mxu0 %v2261
    %2983 = vmatpush1.msra.mxu0 %v2260
    %2984 = vmatprep.subr.mxu0 %v2257
    %2985 = vmatpush1.msra.mxu0 %v2256
    %2986 = vmatprep.subr.mxu0 %v2253
    %2987 = vmatpush1.msra.mxu0 %v2252
    %2988 = vmatprep.subr.mxu0 %v2249
    %2989 = vmatpush1.msra.mxu0 %v2248
    %2990 = vmatprep.subr.mxu0 %v2245
    %2991 = vmatpush1.msra.mxu0 %v2244
    %2992 = vmatprep.subr.mxu0 %v2241
    %2993 = vmatpush1.msra.mxu0 %v2240
    %2994 = vmatprep.subr.mxu0 %v2237
    %2995 = vmatpush1.msra.mxu0 %v2236
    %2996 = vmatprep.subr.mxu0 %v2233
    %2997 = vmatpush1.msra.mxu0 %v2232
    %2998 = vmatprep.subr.mxu0 %v2229
    %2999 = vmatpush1.msra.mxu0 %v2228
    %3000 = vmatprep.subr.mxu0 %v2225
    %3001 = vmatpush1.msra.mxu0 %v2224
    %3002 = vmatprep.subr.mxu0 %v2221
    %3003 = vmatpush1.msra.mxu0 %v2220
    %3004 = vmatprep.subr.mxu0 0.0
    %3005 = vmatpush2.msra.mxu0 0.0
    %3006 = vmatprep.subr.mxu0 0.0
    %3007 = vmatpush2.msra.mxu0 0.0
    %3008 = vmatprep.subr.mxu0 0.0
    %3009 = vmatpush2.msra.mxu0 0.0
    %3010 = vmatprep.subr.mxu0 0.0
    %3011 = vmatpush2.msra.mxu0 0.0
    %3012 = vmatprep.subr.mxu0 0.0
    %3013 = vmatpush2.msra.mxu0 0.0
    %3014 = vmatprep.subr.mxu0 0.0
    %3015 = vmatpush2.msra.mxu0 0.0
    %3016 = vmatprep.subr.mxu0 0.0
    %3017 = vmatpush2.msra.mxu0 0.0
    %3018 = vmatprep.subr.mxu0 0.0
    %3019 = vmatpush2.msra.mxu0 0.0
    %3020 = vmatprep.subr.mxu0 0.0
    %3021 = vmatpush2.msra.mxu0 0.0
    %3022 = vmatprep.subr.mxu0 0.0
    %3023 = vmatpush2.msra.mxu0 0.0
    %3024 = vmatprep.subr.mxu0 0.0
    %3025 = vmatpush2.msra.mxu0 0.0
    %3026 = vmatprep.subr.mxu0 0.0
    %3027 = vmatpush2.msra.mxu0 0.0
    %3028 = vmatprep.subr.mxu0 0.0
    %3029 = vmatpush2.msra.mxu0 0.0
    %3030 = vmatprep.subr.mxu0 0.0
    %3031 = vmatpush2.msra.mxu0 0.0
    %3032 = vmatprep.subr.mxu0 0.0
    %3033 = vmatpush2.msra.mxu0 0.0
    %3034 = vmatprep.subr.mxu0 0.0
    %3035 = vmatpush2.msra.mxu0 0.0
    %3036 = vmatprep.mubr.f32.mxu0 0.0
    %3037 = vmatmul.mubr.f32.gmra.mxu0 %v2970
    %v3038 = vpop.f32.mrf.mxu0
    %v3039 = vadd.f32 0.0, %v3038
    %v3040 = vpop.f32.mrf.mxu0
    %v3041 = vadd.f32 0.0, %v3040
    %3042 = vdwg.mxu0
    %3043 = vmatprep.subr.mxu0 %v2283
    %3044 = vmatpush1.msra.mxu0 %v2282
    %3045 = vmatprep.subr.mxu0 %v2279
    %3046 = vmatpush1.msra.mxu0 %v2278
    %3047 = vmatprep.subr.mxu0 %v2275
    %3048 = vmatpush1.msra.mxu0 %v2274
    %3049 = vmatprep.subr.mxu0 %v2271
    %3050 = vmatpush1.msra.mxu0 %v2270
    %3051 = vmatprep.subr.mxu0 %v2267
    %3052 = vmatpush1.msra.mxu0 %v2266
    %3053 = vmatprep.subr.mxu0 %v2263
    %3054 = vmatpush1.msra.mxu0 %v2262
    %3055 = vmatprep.subr.mxu0 %v2259
    %3056 = vmatpush1.msra.mxu0 %v2258
    %3057 = vmatprep.subr.mxu0 %v2255
    %3058 = vmatpush1.msra.mxu0 %v2254
    %3059 = vmatprep.subr.mxu0 %v2251
    %3060 = vmatpush1.msra.mxu0 %v2250
    %3061 = vmatprep.subr.mxu0 %v2247
    %3062 = vmatpush1.msra.mxu0 %v2246
    %3063 = vmatprep.subr.mxu0 %v2243
    %3064 = vmatpush1.msra.mxu0 %v2242
    %3065 = vmatprep.subr.mxu0 %v2239
    %3066 = vmatpush1.msra.mxu0 %v2238
    %3067 = vmatprep.subr.mxu0 %v2235
    %3068 = vmatpush1.msra.mxu0 %v2234
    %3069 = vmatprep.subr.mxu0 %v2231
    %3070 = vmatpush1.msra.mxu0 %v2230
    %3071 = vmatprep.subr.mxu0 %v2227
    %3072 = vmatpush1.msra.mxu0 %v2226
    %3073 = vmatprep.subr.mxu0 %v2223
    %3074 = vmatpush1.msra.mxu0 %v2222
    %3075 = vmatprep.subr.mxu0 0.0
    %3076 = vmatpush2.msra.mxu0 0.0
    %3077 = vmatprep.subr.mxu0 0.0
    %3078 = vmatpush2.msra.mxu0 0.0
    %3079 = vmatprep.subr.mxu0 0.0
    %3080 = vmatpush2.msra.mxu0 0.0
    %3081 = vmatprep.subr.mxu0 0.0
    %3082 = vmatpush2.msra.mxu0 0.0
    %3083 = vmatprep.subr.mxu0 0.0
    %3084 = vmatpush2.msra.mxu0 0.0
    %3085 = vmatprep.subr.mxu0 0.0
    %3086 = vmatpush2.msra.mxu0 0.0
    %3087 = vmatprep.subr.mxu0 0.0
    %3088 = vmatpush2.msra.mxu0 0.0
    %3089 = vmatprep.subr.mxu0 0.0
    %3090 = vmatpush2.msra.mxu0 0.0
    %3091 = vmatprep.subr.mxu0 0.0
    %3092 = vmatpush2.msra.mxu0 0.0
    %3093 = vmatprep.subr.mxu0 0.0
    %3094 = vmatpush2.msra.mxu0 0.0
    %3095 = vmatprep.subr.mxu0 0.0
    %3096 = vmatpush2.msra.mxu0 0.0
    %3097 = vmatprep.subr.mxu0 0.0
    %3098 = vmatpush2.msra.mxu0 0.0
    %3099 = vmatprep.subr.mxu0 0.0
    %3100 = vmatpush2.msra.mxu0 0.0
    %3101 = vmatprep.subr.mxu0 0.0
    %3102 = vmatpush2.msra.mxu0 0.0
    %3103 = vmatprep.subr.mxu0 0.0
    %3104 = vmatpush2.msra.mxu0 0.0
    %3105 = vmatprep.subr.mxu0 0.0
    %3106 = vmatpush2.msra.mxu0 0.0
    %3107 = vmatprep.mubr.f32.mxu0 0.0
    %3108 = vmatmul.mubr.f32.gmra.mxu0 %v2970
    %v3109 = vpop.f32.mrf.mxu0
    %v3110 = vadd.f32 0.0, %v3109
    %v3111 = vpop.f32.mrf.mxu0
    %v3112 = vadd.f32 0.0, %v3111
    %3113 = vdwg.mxu0
    %v3114 = vadd.f32 %v2084, %v3039
    %v3115 = vadd.f32 %v2086, %v3041
    %v3116 = vadd.f32 %v2197, %v3110
    %v3117 = vadd.f32 %v2199, %v3112
    %v3118 = vxor.u32 %v3114, 2147483648
    %v3119 = vmul.f32 %v3118, 1.442695
    %v3120 = vpow.pop %v3119
    %v3121 = vadd.f32 %v3120, 1.0
    %v3122 = vrcp.pop %v3121
    %v3123 = vmul.f32 1.0, %v3122
    %v3124 = vxor.u32 %v3115, 2147483648
    %v3125 = vmul.f32 %v3124, 1.442695
    %v3126 = vpow.pop %v3125
    %v3127 = vadd.f32 %v3126, 1.0
    %v3128 = vrcp.pop %v3127
    %v3129 = vmul.f32 1.0, %v3128
    %v3130 = vtanh.pop %v3116
    %v3131 = vxor.u32 %v3117, 2147483648
    %v3132 = vmul.f32 %v3131, 1.442695
    %v3133 = vpow.pop %v3132
    %v3134 = vadd.f32 %v3133, 1.0
    %v3135 = vrcp.pop %v3134
    %v3136 = vmul.f32 1.0, %v3135
    %v3137 = vmul.f32 %v3129, %v2968
    %v3138 = vmul.f32 %v3123, %v3130
    %v3139 = vadd.f32 %v3137, %v3138
    %v3140 = vtanh.pop %v3139
    %v3141 = vmul.f32 %v3136, %v3140
    %3142 = vst [vmem:[#allocation2 + $0x20] sm:$0xff] %v3141
    %3143 = vmatprep.subr.mxu0 %v2281
    %3144 = vmatpush1.msra.mxu0 %v2280
    %3145 = vmatprep.subr.mxu0 %v2277
    %3146 = vmatpush1.msra.mxu0 %v2276
    %3147 = vmatprep.subr.mxu0 %v2273
    %3148 = vmatpush1.msra.mxu0 %v2272
    %3149 = vmatprep.subr.mxu0 %v2269
    %3150 = vmatpush1.msra.mxu0 %v2268
    %3151 = vmatprep.subr.mxu0 %v2265
    %3152 = vmatpush1.msra.mxu0 %v2264
    %3153 = vmatprep.subr.mxu0 %v2261
    %3154 = vmatpush1.msra.mxu0 %v2260
    %3155 = vmatprep.subr.mxu0 %v2257
    %3156 = vmatpush1.msra.mxu0 %v2256
    %3157 = vmatprep.subr.mxu0 %v2253
    %3158 = vmatpush1.msra.mxu0 %v2252
    %3159 = vmatprep.subr.mxu0 %v2249
    %3160 = vmatpush1.msra.mxu0 %v2248
    %3161 = vmatprep.subr.mxu0 %v2245
    %3162 = vmatpush1.msra.mxu0 %v2244
    %3163 = vmatprep.subr.mxu0 %v2241
    %3164 = vmatpush1.msra.mxu0 %v2240
    %3165 = vmatprep.subr.mxu0 %v2237
    %3166 = vmatpush1.msra.mxu0 %v2236
    %3167 = vmatprep.subr.mxu0 %v2233
    %3168 = vmatpush1.msra.mxu0 %v2232
    %3169 = vmatprep.subr.mxu0 %v2229
    %3170 = vmatpush1.msra.mxu0 %v2228
    %3171 = vmatprep.subr.mxu0 %v2225
    %3172 = vmatpush1.msra.mxu0 %v2224
    %3173 = vmatprep.subr.mxu0 %v2221
    %3174 = vmatpush1.msra.mxu0 %v2220
    %3175 = vmatprep.subr.mxu0 0.0
    %3176 = vmatpush2.msra.mxu0 0.0
    %3177 = vmatprep.subr.mxu0 0.0
    %3178 = vmatpush2.msra.mxu0 0.0
    %3179 = vmatprep.subr.mxu0 0.0
    %3180 = vmatpush2.msra.mxu0 0.0
    %3181 = vmatprep.subr.mxu0 0.0
    %3182 = vmatpush2.msra.mxu0 0.0
    %3183 = vmatprep.subr.mxu0 0.0
    %3184 = vmatpush2.msra.mxu0 0.0
    %3185 = vmatprep.subr.mxu0 0.0
    %3186 = vmatpush2.msra.mxu0 0.0
    %3187 = vmatprep.subr.mxu0 0.0
    %3188 = vmatpush2.msra.mxu0 0.0
    %3189 = vmatprep.subr.mxu0 0.0
    %3190 = vmatpush2.msra.mxu0 0.0
    %3191 = vmatprep.subr.mxu0 0.0
    %3192 = vmatpush2.msra.mxu0 0.0
    %3193 = vmatprep.subr.mxu0 0.0
    %3194 = vmatpush2.msra.mxu0 0.0
    %3195 = vmatprep.subr.mxu0 0.0
    %3196 = vmatpush2.msra.mxu0 0.0
    %3197 = vmatprep.subr.mxu0 0.0
    %3198 = vmatpush2.msra.mxu0 0.0
    %3199 = vmatprep.subr.mxu0 0.0
    %3200 = vmatpush2.msra.mxu0 0.0
    %3201 = vmatprep.subr.mxu0 0.0
    %3202 = vmatpush2.msra.mxu0 0.0
    %3203 = vmatprep.subr.mxu0 0.0
    %3204 = vmatpush2.msra.mxu0 0.0
    %3205 = vmatprep.subr.mxu0 0.0
    %3206 = vmatpush2.msra.mxu0 0.0
    %3207 = vmatprep.mubr.f32.mxu0 0.0
    %3208 = vmatmul.mubr.f32.gmra.mxu0 %v3141
    %v3209 = vpop.f32.mrf.mxu0
    %v3210 = vadd.f32 0.0, %v3209
    %v3211 = vpop.f32.mrf.mxu0
    %v3212 = vadd.f32 0.0, %v3211
    %3213 = vdwg.mxu0
    %3214 = vmatprep.subr.mxu0 %v2283
    %3215 = vmatpush1.msra.mxu0 %v2282
    %3216 = vmatprep.subr.mxu0 %v2279
    %3217 = vmatpush1.msra.mxu0 %v2278
    %3218 = vmatprep.subr.mxu0 %v2275
    %3219 = vmatpush1.msra.mxu0 %v2274
    %3220 = vmatprep.subr.mxu0 %v2271
    %3221 = vmatpush1.msra.mxu0 %v2270
    %3222 = vmatprep.subr.mxu0 %v2267
    %3223 = vmatpush1.msra.mxu0 %v2266
    %3224 = vmatprep.subr.mxu0 %v2263
    %3225 = vmatpush1.msra.mxu0 %v2262
    %3226 = vmatprep.subr.mxu0 %v2259
    %3227 = vmatpush1.msra.mxu0 %v2258
    %3228 = vmatprep.subr.mxu0 %v2255
    %3229 = vmatpush1.msra.mxu0 %v2254
    %3230 = vmatprep.subr.mxu0 %v2251
    %3231 = vmatpush1.msra.mxu0 %v2250
    %3232 = vmatprep.subr.mxu0 %v2247
    %3233 = vmatpush1.msra.mxu0 %v2246
    %3234 = vmatprep.subr.mxu0 %v2243
    %3235 = vmatpush1.msra.mxu0 %v2242
    %3236 = vmatprep.subr.mxu0 %v2239
    %3237 = vmatpush1.msra.mxu0 %v2238
    %3238 = vmatprep.subr.mxu0 %v2235
    %3239 = vmatpush1.msra.mxu0 %v2234
    %3240 = vmatprep.subr.mxu0 %v2231
    %3241 = vmatpush1.msra.mxu0 %v2230
    %3242 = vmatprep.subr.mxu0 %v2227
    %3243 = vmatpush1.msra.mxu0 %v2226
    %3244 = vmatprep.subr.mxu0 %v2223
    %3245 = vmatpush1.msra.mxu0 %v2222
    %3246 = vmatprep.subr.mxu0 0.0
    %3247 = vmatpush2.msra.mxu0 0.0
    %3248 = vmatprep.subr.mxu0 0.0
    %3249 = vmatpush2.msra.mxu0 0.0
    %3250 = vmatprep.subr.mxu0 0.0
    %3251 = vmatpush2.msra.mxu0 0.0
    %3252 = vmatprep.subr.mxu0 0.0
    %3253 = vmatpush2.msra.mxu0 0.0
    %3254 = vmatprep.subr.mxu0 0.0
    %3255 = vmatpush2.msra.mxu0 0.0
    %3256 = vmatprep.subr.mxu0 0.0
    %3257 = vmatpush2.msra.mxu0 0.0
    %3258 = vmatprep.subr.mxu0 0.0
    %3259 = vmatpush2.msra.mxu0 0.0
    %3260 = vmatprep.subr.mxu0 0.0
    %3261 = vmatpush2.msra.mxu0 0.0
    %3262 = vmatprep.subr.mxu0 0.0
    %3263 = vmatpush2.msra.mxu0 0.0
    %3264 = vmatprep.subr.mxu0 0.0
    %3265 = vmatpush2.msra.mxu0 0.0
    %3266 = vmatprep.subr.mxu0 0.0
    %3267 = vmatpush2.msra.mxu0 0.0
    %3268 = vmatprep.subr.mxu0 0.0
    %3269 = vmatpush2.msra.mxu0 0.0
    %3270 = vmatprep.subr.mxu0 0.0
    %3271 = vmatpush2.msra.mxu0 0.0
    %3272 = vmatprep.subr.mxu0 0.0
    %3273 = vmatpush2.msra.mxu0 0.0
    %3274 = vmatprep.subr.mxu0 0.0
    %3275 = vmatpush2.msra.mxu0 0.0
    %3276 = vmatprep.subr.mxu0 0.0
    %3277 = vmatpush2.msra.mxu0 0.0
    %3278 = vmatprep.mubr.f32.mxu0 0.0
    %3279 = vmatmul.mubr.f32.gmra.mxu0 %v3141
    %v3280 = vpop.f32.mrf.mxu0
    %v3281 = vadd.f32 0.0, %v3280
    %v3282 = vpop.f32.mrf.mxu0
    %v3283 = vadd.f32 0.0, %v3282
    %3284 = vdwg.mxu0
    %v3285 = vadd.f32 %v2090, %v3210
    %v3286 = vadd.f32 %v2092, %v3212
    %v3287 = vadd.f32 %v2203, %v3281
    %v3288 = vadd.f32 %v2205, %v3283
    %v3289 = vxor.u32 %v3285, 2147483648
    %v3290 = vmul.f32 %v3289, 1.442695
    %v3291 = vpow.pop %v3290
    %v3292 = vadd.f32 %v3291, 1.0
    %v3293 = vrcp.pop %v3292
    %v3294 = vmul.f32 1.0, %v3293
    %v3295 = vxor.u32 %v3286, 2147483648
    %v3296 = vmul.f32 %v3295, 1.442695
    %v3297 = vpow.pop %v3296
    %v3298 = vadd.f32 %v3297, 1.0
    %v3299 = vrcp.pop %v3298
    %v3300 = vmul.f32 1.0, %v3299
    %v3301 = vtanh.pop %v3287
    %v3302 = vxor.u32 %v3288, 2147483648
    %v3303 = vmul.f32 %v3302, 1.442695
    %v3304 = vpow.pop %v3303
    %v3305 = vadd.f32 %v3304, 1.0
    %v3306 = vrcp.pop %v3305
    %v3307 = vmul.f32 1.0, %v3306
    %v3308 = vmul.f32 %v3300, %v3139
    %v3309 = vmul.f32 %v3294, %v3301
    %v3310 = vadd.f32 %v3308, %v3309
    %v3311 = vtanh.pop %v3310
    %v3312 = vmul.f32 %v3307, %v3311
    %3313 = vst [vmem:[#allocation2 + $0x28] sm:$0xff] %v3312
    %3314 = vmatprep.subr.mxu0 %v2281
    %3315 = vmatpush1.msra.mxu0 %v2280
    %3316 = vmatprep.subr.mxu0 %v2277
    %3317 = vmatpush1.msra.mxu0 %v2276
    %3318 = vmatprep.subr.mxu0 %v2273
    %3319 = vmatpush1.msra.mxu0 %v2272
    %3320 = vmatprep.subr.mxu0 %v2269
    %3321 = vmatpush1.msra.mxu0 %v2268
    %3322 = vmatprep.subr.mxu0 %v2265
    %3323 = vmatpush1.msra.mxu0 %v2264
    %3324 = vmatprep.subr.mxu0 %v2261
    %3325 = vmatpush1.msra.mxu0 %v2260
    %3326 = vmatprep.subr.mxu0 %v2257
    %3327 = vmatpush1.msra.mxu0 %v2256
    %3328 = vmatprep.subr.mxu0 %v2253
    %3329 = vmatpush1.msra.mxu0 %v2252
    %3330 = vmatprep.subr.mxu0 %v2249
    %3331 = vmatpush1.msra.mxu0 %v2248
    %3332 = vmatprep.subr.mxu0 %v2245
    %3333 = vmatpush1.msra.mxu0 %v2244
    %3334 = vmatprep.subr.mxu0 %v2241
    %3335 = vmatpush1.msra.mxu0 %v2240
    %3336 = vmatprep.subr.mxu0 %v2237
    %3337 = vmatpush1.msra.mxu0 %v2236
    %3338 = vmatprep.subr.mxu0 %v2233
    %3339 = vmatpush1.msra.mxu0 %v2232
    %3340 = vmatprep.subr.mxu0 %v2229
    %3341 = vmatpush1.msra.mxu0 %v2228
    %3342 = vmatprep.subr.mxu0 %v2225
    %3343 = vmatpush1.msra.mxu0 %v2224
    %3344 = vmatprep.subr.mxu0 %v2221
    %3345 = vmatpush1.msra.mxu0 %v2220
    %3346 = vmatprep.subr.mxu0 0.0
    %3347 = vmatpush2.msra.mxu0 0.0
    %3348 = vmatprep.subr.mxu0 0.0
    %3349 = vmatpush2.msra.mxu0 0.0
    %3350 = vmatprep.subr.mxu0 0.0
    %3351 = vmatpush2.msra.mxu0 0.0
    %3352 = vmatprep.subr.mxu0 0.0
    %3353 = vmatpush2.msra.mxu0 0.0
    %3354 = vmatprep.subr.mxu0 0.0
    %3355 = vmatpush2.msra.mxu0 0.0
    %3356 = vmatprep.subr.mxu0 0.0
    %3357 = vmatpush2.msra.mxu0 0.0
    %3358 = vmatprep.subr.mxu0 0.0
    %3359 = vmatpush2.msra.mxu0 0.0
    %3360 = vmatprep.subr.mxu0 0.0
    %3361 = vmatpush2.msra.mxu0 0.0
    %3362 = vmatprep.subr.mxu0 0.0
    %3363 = vmatpush2.msra.mxu0 0.0
    %3364 = vmatprep.subr.mxu0 0.0
    %3365 = vmatpush2.msra.mxu0 0.0
    %3366 = vmatprep.subr.mxu0 0.0
    %3367 = vmatpush2.msra.mxu0 0.0
    %3368 = vmatprep.subr.mxu0 0.0
    %3369 = vmatpush2.msra.mxu0 0.0
    %3370 = vmatprep.subr.mxu0 0.0
    %3371 = vmatpush2.msra.mxu0 0.0
    %3372 = vmatprep.subr.mxu0 0.0
    %3373 = vmatpush2.msra.mxu0 0.0
    %3374 = vmatprep.subr.mxu0 0.0
    %3375 = vmatpush2.msra.mxu0 0.0
    %3376 = vmatprep.subr.mxu0 0.0
    %3377 = vmatpush2.msra.mxu0 0.0
    %3378 = vmatprep.mubr.f32.mxu0 0.0
    %3379 = vmatmul.mubr.f32.gmra.mxu0 %v3312
    %v3380 = vpop.f32.mrf.mxu0
    %v3381 = vadd.f32 0.0, %v3380
    %v3382 = vpop.f32.mrf.mxu0
    %v3383 = vadd.f32 0.0, %v3382
    %3384 = vdwg.mxu0
    %3385 = vmatprep.subr.mxu0 %v2283
    %3386 = vmatpush1.msra.mxu0 %v2282
    %3387 = vmatprep.subr.mxu0 %v2279
    %3388 = vmatpush1.msra.mxu0 %v2278
    %3389 = vmatprep.subr.mxu0 %v2275
    %3390 = vmatpush1.msra.mxu0 %v2274
    %3391 = vmatprep.subr.mxu0 %v2271
    %3392 = vmatpush1.msra.mxu0 %v2270
    %3393 = vmatprep.subr.mxu0 %v2267
    %3394 = vmatpush1.msra.mxu0 %v2266
    %3395 = vmatprep.subr.mxu0 %v2263
    %3396 = vmatpush1.msra.mxu0 %v2262
    %3397 = vmatprep.subr.mxu0 %v2259
    %3398 = vmatpush1.msra.mxu0 %v2258
    %3399 = vmatprep.subr.mxu0 %v2255
    %3400 = vmatpush1.msra.mxu0 %v2254
    %3401 = vmatprep.subr.mxu0 %v2251
    %3402 = vmatpush1.msra.mxu0 %v2250
    %3403 = vmatprep.subr.mxu0 %v2247
    %3404 = vmatpush1.msra.mxu0 %v2246
    %3405 = vmatprep.subr.mxu0 %v2243
    %3406 = vmatpush1.msra.mxu0 %v2242
    %3407 = vmatprep.subr.mxu0 %v2239
    %3408 = vmatpush1.msra.mxu0 %v2238
    %3409 = vmatprep.subr.mxu0 %v2235
    %3410 = vmatpush1.msra.mxu0 %v2234
    %3411 = vmatprep.subr.mxu0 %v2231
    %3412 = vmatpush1.msra.mxu0 %v2230
    %3413 = vmatprep.subr.mxu0 %v2227
    %3414 = vmatpush1.msra.mxu0 %v2226
    %3415 = vmatprep.subr.mxu0 %v2223
    %3416 = vmatpush1.msra.mxu0 %v2222
    %3417 = vmatprep.subr.mxu0 0.0
    %3418 = vmatpush2.msra.mxu0 0.0
    %3419 = vmatprep.subr.mxu0 0.0
    %3420 = vmatpush2.msra.mxu0 0.0
    %3421 = vmatprep.subr.mxu0 0.0
    %3422 = vmatpush2.msra.mxu0 0.0
    %3423 = vmatprep.subr.mxu0 0.0
    %3424 = vmatpush2.msra.mxu0 0.0
    %3425 = vmatprep.subr.mxu0 0.0
    %3426 = vmatpush2.msra.mxu0 0.0
    %3427 = vmatprep.subr.mxu0 0.0
    %3428 = vmatpush2.msra.mxu0 0.0
    %3429 = vmatprep.subr.mxu0 0.0
    %3430 = vmatpush2.msra.mxu0 0.0
    %3431 = vmatprep.subr.mxu0 0.0
    %3432 = vmatpush2.msra.mxu0 0.0
    %3433 = vmatprep.subr.mxu0 0.0
    %3434 = vmatpush2.msra.mxu0 0.0
    %3435 = vmatprep.subr.mxu0 0.0
    %3436 = vmatpush2.msra.mxu0 0.0
    %3437 = vmatprep.subr.mxu0 0.0
    %3438 = vmatpush2.msra.mxu0 0.0
    %3439 = vmatprep.subr.mxu0 0.0
    %3440 = vmatpush2.msra.mxu0 0.0
    %3441 = vmatprep.subr.mxu0 0.0
    %3442 = vmatpush2.msra.mxu0 0.0
    %3443 = vmatprep.subr.mxu0 0.0
    %3444 = vmatpush2.msra.mxu0 0.0
    %3445 = vmatprep.subr.mxu0 0.0
    %3446 = vmatpush2.msra.mxu0 0.0
    %3447 = vmatprep.subr.mxu0 0.0
    %3448 = vmatpush2.msra.mxu0 0.0
    %3449 = vmatprep.mubr.f32.mxu0 0.0
    %3450 = vmatmul.mubr.f32.gmra.mxu0 %v3312
    %v3451 = vpop.f32.mrf.mxu0
    %v3452 = vadd.f32 0.0, %v3451
    %v3453 = vpop.f32.mrf.mxu0
    %v3454 = vadd.f32 0.0, %v3453
    %3455 = vdwg.mxu0
    %v3456 = vadd.f32 %v2096, %v3381
    %v3457 = vadd.f32 %v2098, %v3383
    %v3458 = vadd.f32 %v2209, %v3452
    %v3459 = vadd.f32 %v2211, %v3454
    %v3460 = vxor.u32 %v3456, 2147483648
    %v3461 = vmul.f32 %v3460, 1.442695
    %v3462 = vpow.pop %v3461
    %v3463 = vadd.f32 %v3462, 1.0
    %v3464 = vrcp.pop %v3463
    %v3465 = vmul.f32 1.0, %v3464
    %v3466 = vxor.u32 %v3457, 2147483648
    %v3467 = vmul.f32 %v3466, 1.442695
    %v3468 = vpow.pop %v3467
    %v3469 = vadd.f32 %v3468, 1.0
    %v3470 = vrcp.pop %v3469
    %v3471 = vmul.f32 1.0, %v3470
    %v3472 = vtanh.pop %v3458
    %v3473 = vxor.u32 %v3459, 2147483648
    %v3474 = vmul.f32 %v3473, 1.442695
    %v3475 = vpow.pop %v3474
    %v3476 = vadd.f32 %v3475, 1.0
    %v3477 = vrcp.pop %v3476
    %v3478 = vmul.f32 1.0, %v3477
    %v3479 = vmul.f32 %v3471, %v3310
    %v3480 = vmul.f32 %v3465, %v3472
    %v3481 = vadd.f32 %v3479, %v3480
    %v3482 = vtanh.pop %v3481
    %v3483 = vmul.f32 %v3478, %v3482
    %3484 = vst [vmem:[#allocation2 + $0x30] sm:$0xff] %v3483
    %3485 = vmatprep.subr.mxu0 %v2281
    %3486 = vmatpush1.msra.mxu0 %v2280
    %3487 = vmatprep.subr.mxu0 %v2277
    %3488 = vmatpush1.msra.mxu0 %v2276
    %3489 = vmatprep.subr.mxu0 %v2273
    %3490 = vmatpush1.msra.mxu0 %v2272
    %3491 = vmatprep.subr.mxu0 %v2269
    %3492 = vmatpush1.msra.mxu0 %v2268
    %3493 = vmatprep.subr.mxu0 %v2265
    %3494 = vmatpush1.msra.mxu0 %v2264
    %3495 = vmatprep.subr.mxu0 %v2261
    %3496 = vmatpush1.msra.mxu0 %v2260
    %3497 = vmatprep.subr.mxu0 %v2257
    %3498 = vmatpush1.msra.mxu0 %v2256
    %3499 = vmatprep.subr.mxu0 %v2253
    %3500 = vmatpush1.msra.mxu0 %v2252
    %3501 = vmatprep.subr.mxu0 %v2249
    %3502 = vmatpush1.msra.mxu0 %v2248
    %3503 = vmatprep.subr.mxu0 %v2245
    %3504 = vmatpush1.msra.mxu0 %v2244
    %3505 = vmatprep.subr.mxu0 %v2241
    %3506 = vmatpush1.msra.mxu0 %v2240
    %3507 = vmatprep.subr.mxu0 %v2237
    %3508 = vmatpush1.msra.mxu0 %v2236
    %3509 = vmatprep.subr.mxu0 %v2233
    %3510 = vmatpush1.msra.mxu0 %v2232
    %3511 = vmatprep.subr.mxu0 %v2229
    %3512 = vmatpush1.msra.mxu0 %v2228
    %3513 = vmatprep.subr.mxu0 %v2225
    %3514 = vmatpush1.msra.mxu0 %v2224
    %3515 = vmatprep.subr.mxu0 %v2221
    %3516 = vmatpush1.msra.mxu0 %v2220
    %3517 = vmatprep.subr.mxu0 0.0
    %3518 = vmatpush2.msra.mxu0 0.0
    %3519 = vmatprep.subr.mxu0 0.0
    %3520 = vmatpush2.msra.mxu0 0.0
    %3521 = vmatprep.subr.mxu0 0.0
    %3522 = vmatpush2.msra.mxu0 0.0
    %3523 = vmatprep.subr.mxu0 0.0
    %3524 = vmatpush2.msra.mxu0 0.0
    %3525 = vmatprep.subr.mxu0 0.0
    %3526 = vmatpush2.msra.mxu0 0.0
    %3527 = vmatprep.subr.mxu0 0.0
    %3528 = vmatpush2.msra.mxu0 0.0
    %3529 = vmatprep.subr.mxu0 0.0
    %3530 = vmatpush2.msra.mxu0 0.0
    %3531 = vmatprep.subr.mxu0 0.0
    %3532 = vmatpush2.msra.mxu0 0.0
    %3533 = vmatprep.subr.mxu0 0.0
    %3534 = vmatpush2.msra.mxu0 0.0
    %3535 = vmatprep.subr.mxu0 0.0
    %3536 = vmatpush2.msra.mxu0 0.0
    %3537 = vmatprep.subr.mxu0 0.0
    %3538 = vmatpush2.msra.mxu0 0.0
    %3539 = vmatprep.subr.mxu0 0.0
    %3540 = vmatpush2.msra.mxu0 0.0
    %3541 = vmatprep.subr.mxu0 0.0
    %3542 = vmatpush2.msra.mxu0 0.0
    %3543 = vmatprep.subr.mxu0 0.0
    %3544 = vmatpush2.msra.mxu0 0.0
    %3545 = vmatprep.subr.mxu0 0.0
    %3546 = vmatpush2.msra.mxu0 0.0
    %3547 = vmatprep.subr.mxu0 0.0
    %3548 = vmatpush2.msra.mxu0 0.0
    %3549 = vmatprep.mubr.f32.mxu0 0.0
    %3550 = vmatmul.mubr.f32.gmra.mxu0 %v3483
    %v3551 = vpop.f32.mrf.mxu0
    %v3552 = vadd.f32 0.0, %v3551
    %v3553 = vpop.f32.mrf.mxu0
    %v3554 = vadd.f32 0.0, %v3553
    %3555 = vdwg.mxu0
    %3556 = vmatprep.subr.mxu0 %v2283
    %3557 = vmatpush1.msra.mxu0 %v2282
    %3558 = vmatprep.subr.mxu0 %v2279
    %3559 = vmatpush1.msra.mxu0 %v2278
    %3560 = vmatprep.subr.mxu0 %v2275
    %3561 = vmatpush1.msra.mxu0 %v2274
    %3562 = vmatprep.subr.mxu0 %v2271
    %3563 = vmatpush1.msra.mxu0 %v2270
    %3564 = vmatprep.subr.mxu0 %v2267
    %3565 = vmatpush1.msra.mxu0 %v2266
    %3566 = vmatprep.subr.mxu0 %v2263
    %3567 = vmatpush1.msra.mxu0 %v2262
    %3568 = vmatprep.subr.mxu0 %v2259
    %3569 = vmatpush1.msra.mxu0 %v2258
    %3570 = vmatprep.subr.mxu0 %v2255
    %3571 = vmatpush1.msra.mxu0 %v2254
    %3572 = vmatprep.subr.mxu0 %v2251
    %3573 = vmatpush1.msra.mxu0 %v2250
    %3574 = vmatprep.subr.mxu0 %v2247
    %3575 = vmatpush1.msra.mxu0 %v2246
    %3576 = vmatprep.subr.mxu0 %v2243
    %3577 = vmatpush1.msra.mxu0 %v2242
    %3578 = vmatprep.subr.mxu0 %v2239
    %3579 = vmatpush1.msra.mxu0 %v2238
    %3580 = vmatprep.subr.mxu0 %v2235
    %3581 = vmatpush1.msra.mxu0 %v2234
    %3582 = vmatprep.subr.mxu0 %v2231
    %3583 = vmatpush1.msra.mxu0 %v2230
    %3584 = vmatprep.subr.mxu0 %v2227
    %3585 = vmatpush1.msra.mxu0 %v2226
    %3586 = vmatprep.subr.mxu0 %v2223
    %3587 = vmatpush1.msra.mxu0 %v2222
    %3588 = vmatprep.subr.mxu0 0.0
    %3589 = vmatpush2.msra.mxu0 0.0
    %3590 = vmatprep.subr.mxu0 0.0
    %3591 = vmatpush2.msra.mxu0 0.0
    %3592 = vmatprep.subr.mxu0 0.0
    %3593 = vmatpush2.msra.mxu0 0.0
    %3594 = vmatprep.subr.mxu0 0.0
    %3595 = vmatpush2.msra.mxu0 0.0
    %3596 = vmatprep.subr.mxu0 0.0
    %3597 = vmatpush2.msra.mxu0 0.0
    %3598 = vmatprep.subr.mxu0 0.0
    %3599 = vmatpush2.msra.mxu0 0.0
    %3600 = vmatprep.subr.mxu0 0.0
    %3601 = vmatpush2.msra.mxu0 0.0
    %3602 = vmatprep.subr.mxu0 0.0
    %3603 = vmatpush2.msra.mxu0 0.0
    %3604 = vmatprep.subr.mxu0 0.0
    %3605 = vmatpush2.msra.mxu0 0.0
    %3606 = vmatprep.subr.mxu0 0.0
    %3607 = vmatpush2.msra.mxu0 0.0
    %3608 = vmatprep.subr.mxu0 0.0
    %3609 = vmatpush2.msra.mxu0 0.0
    %3610 = vmatprep.subr.mxu0 0.0
    %3611 = vmatpush2.msra.mxu0 0.0
    %3612 = vmatprep.subr.mxu0 0.0
    %3613 = vmatpush2.msra.mxu0 0.0
    %3614 = vmatprep.subr.mxu0 0.0
    %3615 = vmatpush2.msra.mxu0 0.0
    %3616 = vmatprep.subr.mxu0 0.0
    %3617 = vmatpush2.msra.mxu0 0.0
    %3618 = vmatprep.subr.mxu0 0.0
    %3619 = vmatpush2.msra.mxu0 0.0
    %3620 = vmatprep.mubr.f32.mxu0 0.0
    %3621 = vmatmul.mubr.f32.gmra.mxu0 %v3483
    %v3622 = vpop.f32.mrf.mxu0
    %v3623 = vadd.f32 0.0, %v3622
    %v3624 = vpop.f32.mrf.mxu0
    %v3625 = vadd.f32 0.0, %v3624
    %3626 = vdwg.mxu0
    %v3627 = vadd.f32 %v2102, %v3552
    %v3628 = vadd.f32 %v2104, %v3554
    %v3629 = vadd.f32 %v2215, %v3623
    %v3630 = vadd.f32 %v2217, %v3625
    %v3631 = vxor.u32 %v3627, 2147483648
    %v3632 = vmul.f32 %v3631, 1.442695
    %v3633 = vpow.pop %v3632
    %v3634 = vadd.f32 %v3633, 1.0
    %v3635 = vrcp.pop %v3634
    %v3636 = vmul.f32 1.0, %v3635
    %v3637 = vxor.u32 %v3628, 2147483648
    %v3638 = vmul.f32 %v3637, 1.442695
    %v3639 = vpow.pop %v3638
    %v3640 = vadd.f32 %v3639, 1.0
    %v3641 = vrcp.pop %v3640
    %v3642 = vmul.f32 1.0, %v3641
    %v3643 = vtanh.pop %v3629
    %v3644 = vxor.u32 %v3630, 2147483648
    %v3645 = vmul.f32 %v3644, 1.442695
    %v3646 = vpow.pop %v3645
    %v3647 = vadd.f32 %v3646, 1.0
    %v3648 = vrcp.pop %v3647
    %v3649 = vmul.f32 1.0, %v3648
    %v3650 = vmul.f32 %v3642, %v3481
    %v3651 = vmul.f32 %v3636, %v3643
    %v3652 = vadd.f32 %v3650, %v3651
    %v3653 = vtanh.pop %v3652
    %v3654 = vmul.f32 %v3649, %v3653
    %3655 = vst [vmem:[#allocation2 + $0x38] sm:$0xff] %v3654
    %s3656 = scalar_lea.vmem [#allocation12], 8
    %3657 = vst [vmem:[%s3656] sm:$0xff] %v3654
    %s3658 = scalar_lea.vmem [#allocation14], 8
    %3659 = vst [vmem:[%s3658] sm:$0xff] %v3652
    %v3660 = vld [vmem:[#allocation2] sm:$0xff]
    %v3661 = vld [vmem:[#allocation2 + $0x8] sm:$0xff]
    %v3662 = vld [vmem:[#allocation2 + $0x10] sm:$0xff]
    %v3663 = vld [vmem:[#allocation2 + $0x18] sm:$0xff]
    %v3664 = vld [vmem:[#allocation2 + $0x20] sm:$0xff]
    %v3665 = vld [vmem:[#allocation2 + $0x28] sm:$0xff]
    %v3666 = vld [vmem:[#allocation2 + $0x30] sm:$0xff]
    %v3667 = vld [vmem:[#allocation2 + $0x38] sm:$0xff]
    %v3668 = vld [vmem:[#allocation9] sm:$0xff]
    %v3669 = vld [vmem:[#allocation9 + $0x8] sm:$0xff]
    %v3670 = vld [vmem:[#allocation9 + $0x10] sm:$0xff]
    %v3671 = vld [vmem:[#allocation9 + $0x18] sm:$0xff]
    %v3672 = vld [vmem:[#allocation9 + $0x20] sm:$0xff]
    %v3673 = vld [vmem:[#allocation9 + $0x28] sm:$0xff]
    %v3674 = vld [vmem:[#allocation9 + $0x30] sm:$0xff]
    %v3675 = vld [vmem:[#allocation9 + $0x38] sm:$0xff]
    %v3676 = vld [vmem:[#allocation9 + $0x40] sm:$0xff]
    %v3677 = vld [vmem:[#allocation9 + $0x48] sm:$0xff]
    %v3678 = vld [vmem:[#allocation9 + $0x50] sm:$0xff]
    %v3679 = vld [vmem:[#allocation9 + $0x58] sm:$0xff]
    %v3680 = vld [vmem:[#allocation9 + $0x60] sm:$0xff]
    %v3681 = vld [vmem:[#allocation9 + $0x68] sm:$0xff]
    %v3682 = vld [vmem:[#allocation9 + $0x70] sm:$0xff]
    %v3683 = vld [vmem:[#allocation9 + $0x78] sm:$0xff]
    %v3684 = vld [vmem:[%s6] sm:$0x1]
    %v3686 = vlaneseq
    %v3687 = vshrl.u32 %v3686, 7
    %v3688 = vsub.s32 0, %v3687
    %v3689 = vrot.slane %v3684, %v3688
    %3691 = vmatprep.subr.mxu0 0.0
    %3692 = vmatpush1.msra.mxu0 %v3683
    %3693 = vmatprep.subr.mxu0 0.0
    %3694 = vmatpush1.msra.mxu0 %v3682
    %3695 = vmatprep.subr.mxu0 0.0
    %3696 = vmatpush1.msra.mxu0 %v3681
    %3697 = vmatprep.subr.mxu0 0.0
    %3698 = vmatpush1.msra.mxu0 %v3680
    %3699 = vmatprep.subr.mxu0 0.0
    %3700 = vmatpush1.msra.mxu0 %v3679
    %3701 = vmatprep.subr.mxu0 0.0
    %3702 = vmatpush1.msra.mxu0 %v3678
    %3703 = vmatprep.subr.mxu0 0.0
    %3704 = vmatpush1.msra.mxu0 %v3677
    %3705 = vmatprep.subr.mxu0 0.0
    %3706 = vmatpush1.msra.mxu0 %v3676
    %3707 = vmatprep.subr.mxu0 0.0
    %3708 = vmatpush1.msra.mxu0 %v3675
    %3709 = vmatprep.subr.mxu0 0.0
    %3710 = vmatpush1.msra.mxu0 %v3674
    %3711 = vmatprep.subr.mxu0 0.0
    %3712 = vmatpush1.msra.mxu0 %v3673
    %3713 = vmatprep.subr.mxu0 0.0
    %3714 = vmatpush1.msra.mxu0 %v3672
    %3715 = vmatprep.subr.mxu0 0.0
    %3716 = vmatpush1.msra.mxu0 %v3671
    %3717 = vmatprep.subr.mxu0 0.0
    %3718 = vmatpush1.msra.mxu0 %v3670
    %3719 = vmatprep.subr.mxu0 0.0
    %3720 = vmatpush1.msra.mxu0 %v3669
    %3721 = vmatprep.subr.mxu0 0.0
    %3722 = vmatpush1.msra.mxu0 %v3668
    %3723 = vmatprep.subr.mxu0 0.0
    %3724 = vmatpush2.msra.mxu0 0.0
    %3725 = vmatprep.subr.mxu0 0.0
    %3726 = vmatpush2.msra.mxu0 0.0
    %3727 = vmatprep.subr.mxu0 0.0
    %3728 = vmatpush2.msra.mxu0 0.0
    %3729 = vmatprep.subr.mxu0 0.0
    %3730 = vmatpush2.msra.mxu0 0.0
    %3731 = vmatprep.subr.mxu0 0.0
    %3732 = vmatpush2.msra.mxu0 0.0
    %3733 = vmatprep.subr.mxu0 0.0
    %3734 = vmatpush2.msra.mxu0 0.0
    %3735 = vmatprep.subr.mxu0 0.0
    %3736 = vmatpush2.msra.mxu0 0.0
    %3737 = vmatprep.subr.mxu0 0.0
    %3738 = vmatpush2.msra.mxu0 0.0
    %3739 = vmatprep.subr.mxu0 0.0
    %3740 = vmatpush2.msra.mxu0 0.0
    %3741 = vmatprep.subr.mxu0 0.0
    %3742 = vmatpush2.msra.mxu0 0.0
    %3743 = vmatprep.subr.mxu0 0.0
    %3744 = vmatpush2.msra.mxu0 0.0
    %3745 = vmatprep.subr.mxu0 0.0
    %3746 = vmatpush2.msra.mxu0 0.0
    %3747 = vmatprep.subr.mxu0 0.0
    %3748 = vmatpush2.msra.mxu0 0.0
    %3749 = vmatprep.subr.mxu0 0.0
    %3750 = vmatpush2.msra.mxu0 0.0
    %3751 = vmatprep.subr.mxu0 0.0
    %3752 = vmatpush2.msra.mxu0 0.0
    %3753 = vmatprep.subr.mxu0 0.0
    %3754 = vmatpush2.msra.mxu0 0.0
    %3755 = vmatprep.mubr.f32.mxu0 0.0
    %3756 = vmatmul.mubr.f32.gmra.mxu0 %v3660
    %v3757 = vpop.f32.mrf.mxu0
    %v3758 = vadd.f32 %v3689, %v3757
    %v3759 = vpop.f32.mrf.mxu0
    %3760 = vmatprep.mubr.f32.mxu0 0.0
    %3761 = vmatmul.mubr.f32.gmra.mxu0 %v3661
    %v3762 = vpop.f32.mrf.mxu0
    %v3763 = vadd.f32 %v3689, %v3762
    %v3764 = vpop.f32.mrf.mxu0
    %3765 = vmatprep.mubr.f32.mxu0 0.0
    %3766 = vmatmul.mubr.f32.gmra.mxu0 %v3662
    %v3767 = vpop.f32.mrf.mxu0
    %v3768 = vadd.f32 %v3689, %v3767
    %v3769 = vpop.f32.mrf.mxu0
    %3770 = vmatprep.mubr.f32.mxu0 0.0
    %3771 = vmatmul.mubr.f32.gmra.mxu0 %v3663
    %v3772 = vpop.f32.mrf.mxu0
    %v3773 = vadd.f32 %v3689, %v3772
    %v3774 = vpop.f32.mrf.mxu0
    %3775 = vmatprep.mubr.f32.mxu0 0.0
    %3776 = vmatmul.mubr.f32.gmra.mxu0 %v3664
    %v3777 = vpop.f32.mrf.mxu0
    %v3778 = vadd.f32 %v3689, %v3777
    %v3779 = vpop.f32.mrf.mxu0
    %3780 = vmatprep.mubr.f32.mxu0 0.0
    %3781 = vmatmul.mubr.f32.gmra.mxu0 %v3665
    %v3782 = vpop.f32.mrf.mxu0
    %v3783 = vadd.f32 %v3689, %v3782
    %v3784 = vpop.f32.mrf.mxu0
    %3785 = vmatprep.mubr.f32.mxu0 0.0
    %3786 = vmatmul.mubr.f32.gmra.mxu0 %v3666
    %v3787 = vpop.f32.mrf.mxu0
    %v3788 = vadd.f32 %v3689, %v3787
    %v3789 = vpop.f32.mrf.mxu0
    %3790 = vmatprep.mubr.f32.mxu0 0.0
    %3791 = vmatmul.mubr.f32.gmra.mxu0 %v3667
    %v3792 = vpop.f32.mrf.mxu0
    %v3793 = vadd.f32 %v3689, %v3792
    %v3794 = vpop.f32.mrf.mxu0
    %3795 = vdwg.mxu0
    %3796 = vst [vmem:[#allocation11] sm:$0xff] %v3758
    %3797 = vst [vmem:[#allocation11 + $0x8] sm:$0xff] %v3763
    %3798 = vst [vmem:[#allocation11 + $0x10] sm:$0xff] %v3768
    %3799 = vst [vmem:[#allocation11 + $0x18] sm:$0xff] %v3773
    %3800 = vst [vmem:[#allocation11 + $0x20] sm:$0xff] %v3778
    %3801 = vst [vmem:[#allocation11 + $0x28] sm:$0xff] %v3783
    %3802 = vst [vmem:[#allocation11 + $0x30] sm:$0xff] %v3788
    %3803 = vst [vmem:[#allocation11 + $0x38] sm:$0xff] %v3793
    // Predicated region
    $region54: #{tpu_custom_call.1} parent=1 // pred_check
      _
    $region55: #{tpu_custom_call.1} parent=1 // pred_check_branch
      %3805 = sbr.rel (0) target = $region57
    $region56: #{tpu_custom_call.1} parent=1 // pred_region
      %s3807 = ssub.s32 1024, 1024
      %3808 = vsyncadd [#allocation5], %s3807
      %s3809 = sshll.u32 [#allocation11], 4
      %s3810 = int_to_ptr.vmem [resolvable:$true] %s3809
      %3815 = dma.vmem_to_hbm [thread:$0]  %s3810, 1024, %s9, [#allocation5], 128, 128, 8
    $region57: #{tpu_custom_call.1} parent=1 // pred_fallthru
      _
    // Predicated region
    $region58: #{tpu_custom_call.1} parent=1 // pred_check
      _
    $region59: #{tpu_custom_call.1} parent=1 // pred_check_branch
      %3817 = sbr.rel (0) target = $region61
    $region60: #{tpu_custom_call.1} parent=1 // pred_region
      %s3819 = ssub.s32 256, 256
      %3820 = vsyncadd [#allocation13], %s3819
      %s3821 = sshll.u32 [#allocation12], 4
      %s3822 = int_to_ptr.vmem [resolvable:$true] %s3821
      %3827 = dma.vmem_to_hbm [thread:$0]  %s3822, 256, %s10, [#allocation13], 128, 128, 8
    $region61: #{tpu_custom_call.1} parent=1 // pred_fallthru
      _
    // Predicated region
    $region62: #{tpu_custom_call.1} parent=1 // pred_check
      _
    $region63: #{tpu_custom_call.1} parent=1 // pred_check_branch
      %3829 = sbr.rel (0) target = $region65
    $region64: #{tpu_custom_call.1} parent=1 // pred_region
      %s3831 = ssub.s32 256, 256
      %3832 = vsyncadd [#allocation13], %s3831
      %s3833 = sshll.u32 [#allocation14], 4
      %s3834 = int_to_ptr.vmem [resolvable:$true] %s3833
      %3839 = dma.vmem_to_hbm [thread:$0]  %s3834, 256, %s11, [#allocation13], 128, 128, 8
    $region65: #{tpu_custom_call.1} parent=1 // pred_fallthru
      _
    // Predicated region
    $region66: #{tpu_custom_call.1} parent=1 // pred_check
      _
    $region67: #{tpu_custom_call.1} parent=1 // pred_check_branch
      %3841 = sbr.rel (0) target = $region69
    $region68: #{tpu_custom_call.1} parent=1 // pred_region
      %3842 = dma.done [#allocation5], 1024
    $region69: #{tpu_custom_call.1} parent=1 // pred_fallthru
      _
    // Predicated region
    $region70: #{tpu_custom_call.1} parent=1 // pred_check
      _
    $region71: #{tpu_custom_call.1} parent=1 // pred_check_branch
      %3844 = sbr.rel (0) target = $region73
    $region72: #{tpu_custom_call.1} parent=1 // pred_region
      %3845 = dma.done [#allocation13], 256
    $region73: #{tpu_custom_call.1} parent=1 // pred_fallthru
      _
    // Predicated region
    $region74: #{tpu_custom_call.1} parent=1 // pred_check
      _
    $region75: #{tpu_custom_call.1} parent=1 // pred_check_branch
      %3847 = sbr.rel (0) target = $region77
    $region76: #{tpu_custom_call.1} parent=1 // pred_region
      %3848 = dma.done [#allocation13], 256
    $region77: #{tpu_custom_call.1} parent=1 // pred_fallthru
      _
    %3849 = vsyncpa [#allocation4], 1
    %3850 = vsyncpa [#allocation7], 1
    %3851 = vsyncpa [#allocation10], 1
    %3852 = vsyncpa [#allocation5], 1
    %3853 = vsyncpa [#allocation13], 1

</llo_original>
